<compile_context>
chip_gen: v5e
topology: v5e:2x2
jax: 0.10.0
libtpu: 0.0.40
codegen_flags: <defaults>
</compile_context>

<pallas_src>
import functools
import jax
import jax.numpy as jnp
from jax.experimental import pallas as pl
from jax.experimental.pallas import tpu as pltpu

# ----- small, BERT-shaped config (bert-base-cased structure, small sizes) ----
VOCAB = 100
TYPE_VOCAB = 2
MAX_POS = 16
HIDDEN = 128
N_HEADS = 4
HEAD_DIM = HIDDEN // N_HEADS
INTERMEDIATE = 512
N_LAYERS = 2
NUM_LABELS = 2
CLS_PAD = 128            # classifier output padded to 128 lanes inside Pallas
LN_EPS = 1e-12
MAX_ROW_TILE = 512       # upper bound on rows per grid step

_COMPILER_PARAMS = pltpu.CompilerParams(
    dimension_semantics=("parallel",),
    vmem_limit_bytes=64 * 1024 * 1024,   # safe bound on v5e/v6e/v7x
)


def _round_up(x, m):
    return (x + m - 1) // m * m


def _row_tiling(m):
    """(row_tile, padded_rows): tile is a multiple of 8, tail rows are padded.

    Guarantees >= 2 grid steps whenever m > 8 (v7x has 2 TensorCores and shards
    "parallel" grid axes across them) while keeping tiles <= MAX_ROW_TILE.
    """
    n_tiles = pl.cdiv(m, MAX_ROW_TILE)
    if m > 8:
        n_tiles = max(2, n_tiles)
    tm = _round_up(pl.cdiv(m, n_tiles), 8)
    m_pad = _round_up(m, tm)
    return tm, m_pad


def _pad_rows(x, m_pad):
    m = x.shape[0]
    if m_pad == m:
        return x
    return jnp.pad(x, ((0, m_pad - m), (0, 0)))


# ----------------------------- Pallas kernels --------------------------------
def _layernorm_kernel(x_ref, g_ref, b_ref, o_ref):
    x = x_ref[...].astype(jnp.float32)
    mean = jnp.mean(x, axis=-1, keepdims=True)
    xc = x - mean
    var = jnp.mean(xc * xc, axis=-1, keepdims=True)
    inv = jax.lax.rsqrt(var + LN_EPS)
    o_ref[...] = ((xc * inv) * g_ref[...] + b_ref[...]).astype(o_ref.dtype)


def layernorm(x, gamma, beta):
    """LayerNorm over the last dim; returns bf16 activations."""
    M, H = x.shape
    tm, m_pad = _row_tiling(M)
    row_spec = pl.BlockSpec((tm, H), lambda i: (i, 0))
    par_spec = pl.BlockSpec((1, H), lambda i: (0, 0))
    out = pl.pallas_call(
        _layernorm_kernel,
        out_shape=jax.ShapeDtypeStruct((m_pad, H), jnp.bfloat16),
        grid=(m_pad // tm,),
        in_specs=[row_spec, par_spec, par_spec],
        out_specs=row_spec,
        compiler_params=_COMPILER_PARAMS,
    )(_pad_rows(x, m_pad), gamma.reshape(1, H), beta.reshape(1, H))
    return out[:M]


def _attention_kernel(x_ref, wqkv_ref, bqkv_ref, bias_ref, o_ref):
    # Fused QKV projection + multi-head self-attention for one batch element.
    # x_ref: [1, S, H] bf16, wqkv: [H, 3H] bf16 (resident), bias: [1, 1, S] f32.
    x = x_ref[0]                                        # [S, H] bf16
    qkv = jnp.dot(x, wqkv_ref[...],
                  preferred_element_type=jnp.float32) + bqkv_ref[...]  # [S, 3H]
    q = qkv[:, :HIDDEN].astype(jnp.bfloat16)
    k = qkv[:, HIDDEN:2 * HIDDEN].astype(jnp.bfloat16)
    v = qkv[:, 2 * HIDDEN:].astype(jnp.bfloat16)
    bias = bias_ref[0]                                  # [1, S] additive mask
    scale = HEAD_DIM ** -0.5
    ctx_heads = []
    # TODO(synk): for real bert-base (12 heads x 64, S=512) batch heads into a
    # single dot_general (head batch dim) and flash-tile K/V to fill the MXU.
    for h in range(N_HEADS):                            # static unrolled loop
        sl = slice(h * HEAD_DIM, (h + 1) * HEAD_DIM)
        s = jnp.einsum("qd,kd->qk", q[:, sl], k[:, sl],
                       preferred_element_type=jnp.float32) * scale
        s = s + bias                                    # broadcast over rows
        m = jnp.max(s, axis=-1, keepdims=True)
        p = jnp.exp(s - m)
        denom = jnp.sum(p, axis=-1, keepdims=True)
        probs = (p * pl.reciprocal(denom, approx=True)).astype(jnp.bfloat16)
        ctx_heads.append(jnp.einsum("qk,kd->qd", probs, v[:, sl],
                                    preferred_element_type=jnp.float32))
    # Single lane-dense [S, H] store per batch element.
    o_ref[0] = jnp.concatenate(ctx_heads, axis=-1).astype(o_ref.dtype)


def attention(x_bsh, w_qkv, b_qkv, mask_bias):
    B, S, H = x_bsh.shape
    threeH = w_qkv.shape[1]
    return pl.pallas_call(
        _attention_kernel,
        out_shape=jax.ShapeDtypeStruct((B, S, H), jnp.bfloat16),
        grid=(B,),
        in_specs=[
            pl.BlockSpec((1, S, H), lambda b: (b, 0, 0)),
            pl.BlockSpec((H, threeH), lambda b: (0, 0)),
            pl.BlockSpec((1, threeH), lambda b: (0, 0)),
            pl.BlockSpec((1, 1, S), lambda b: (b, 0, 0)),
        ],
        out_specs=pl.BlockSpec((1, S, H), lambda b: (b, 0, 0)),
        compiler_params=_COMPILER_PARAMS,
    )(x_bsh, w_qkv, b_qkv.reshape(1, threeH), mask_bias)


def _proj_residual_ln_kernel(x_ref, w_ref, b_ref, res_ref, g_ref, beta_ref,
                             o_ref):
    # Fused: y = LayerNorm(x @ W + b + residual); bf16 matmul, f32 LN stats.
    y = jnp.dot(x_ref[...], w_ref[...], preferred_element_type=jnp.float32)
    y = y + b_ref[...] + res_ref[...].astype(jnp.float32)
    mean = jnp.mean(y, axis=-1, keepdims=True)
    yc = y - mean
    var = jnp.mean(yc * yc, axis=-1, keepdims=True)
    inv = jax.lax.rsqrt(var + LN_EPS)
    o_ref[...] = ((yc * inv) * g_ref[...] + beta_ref[...]).astype(o_ref.dtype)


def proj_residual_ln(x, w, b, residual, gamma, beta):
    M, K = x.shape
    N = w.shape[1]
    tm, m_pad = _row_tiling(M)
    out = pl.pallas_call(
        _proj_residual_ln_kernel,
        out_shape=jax.ShapeDtypeStruct((m_pad, N), jnp.bfloat16),
        grid=(m_pad // tm,),
        in_specs=[
            pl.BlockSpec((tm, K), lambda i: (i, 0)),
            pl.BlockSpec((K, N), lambda i: (0, 0)),
            pl.BlockSpec((1, N), lambda i: (0, 0)),
            pl.BlockSpec((tm, N), lambda i: (i, 0)),
            pl.BlockSpec((1, N), lambda i: (0, 0)),
            pl.BlockSpec((1, N), lambda i: (0, 0)),
        ],
        out_specs=pl.BlockSpec((tm, N), lambda i: (i, 0)),
        compiler_params=_COMPILER_PARAMS,
    )(_pad_rows(x, m_pad), w, b.reshape(1, N), _pad_rows(residual, m_pad),
      gamma.reshape(1, N), beta.reshape(1, N))
    return out[:M]


def _ffn_fused_kernel(x_ref, w1_ref, b1_ref, w2_ref, b2_ref, g_ref, beta_ref,
                      *rest, with_classifier):
    # Fused FFN1 + GELU + FFN2 + residual + LayerNorm (+ optional classifier).
    if with_classifier:
        cls_w_ref, cls_b_ref, o_ref, logits_ref = rest
    else:
        (o_ref,) = rest
    x = x_ref[...]                                      # [tm, H] bf16
    h = jnp.dot(x, w1_ref[...],
                preferred_element_type=jnp.float32) + b1_ref[...]
    # TODO(synk): HF BERT uses exact erf-GELU; tanh approximation used here.
    h = jax.nn.gelu(h, approximate=True).astype(jnp.bfloat16)  # stays on-chip
    y = jnp.dot(h, w2_ref[...],
                preferred_element_type=jnp.float32) + b2_ref[...]
    y = y + x.astype(jnp.float32)                       # residual
    mean = jnp.mean(y, axis=-1, keepdims=True)
    yc = y - mean
    var = jnp.mean(yc * yc, axis=-1, keepdims=True)
    inv = jax.lax.rsqrt(var + LN_EPS)
    y_ln = (yc * inv) * g_ref[...] + beta_ref[...]
    o_ref[...] = y_ln.astype(o_ref.dtype)
    if with_classifier:
        logits = jnp.dot(y_ln.astype(jnp.bfloat16), cls_w_ref[...],
                         preferred_element_type=jnp.float32) + cls_b_ref[...]
        logits_ref[...] = logits


def ffn_fused(x, w1, b1, w2, b2, gamma, beta, cls_w=None, cls_b=None):
    M, H = x.shape
    inter = w1.shape[1]
    tm, m_pad = _row_tiling(M)
    row_h = pl.BlockSpec((tm, H), lambda i: (i, 0))
    par_h = pl.BlockSpec((1, H), lambda i: (0, 0))
    in_specs = [
        row_h,
        pl.BlockSpec((H, inter), lambda i: (0, 0)),
        pl.BlockSpec((1, inter), lambda i: (0, 0)),
        pl.BlockSpec((inter, H), lambda i: (0, 0)),
        par_h, par_h, par_h,
    ]
    args = [_pad_rows(x, m_pad), w1, b1.reshape(1, inter), w2,
            b2.reshape(1, H), gamma.reshape(1, H), beta.reshape(1, H)]
    with_classifier = cls_w is not None
    if with_classifier:
        in_specs += [pl.BlockSpec((H, CLS_PAD), lambda i: (0, 0)),
                     pl.BlockSpec((1, CLS_PAD), lambda i: (0, 0))]
        args += [cls_w, cls_b.reshape(1, CLS_PAD)]
        out_shape = (jax.ShapeDtypeStruct((m_pad, H), jnp.bfloat16),
                     jax.ShapeDtypeStruct((m_pad, CLS_PAD), jnp.float32))
        out_specs = (pl.BlockSpec((tm, H), lambda i: (i, 0)),
                     pl.BlockSpec((tm, CLS_PAD), lambda i: (i, 0)))
    else:
        out_shape = jax.ShapeDtypeStruct((m_pad, H), jnp.bfloat16)
        out_specs = pl.BlockSpec((tm, H), lambda i: (i, 0))
    out = pl.pallas_call(
        functools.partial(_ffn_fused_kernel, with_classifier=with_classifier),
        out_shape=out_shape,
        grid=(m_pad // tm,),
        in_specs=in_specs,
        out_specs=out_specs,
        compiler_params=_COMPILER_PARAMS,
    )(*args)
    if with_classifier:
        y, logits = out
        return y[:M], logits[:M]
    return out[:M]


# ------------------------------- parameters ----------------------------------
def init_params(key):
    keys = iter(jax.random.split(key, 32))

    def normal(shape, dtype=jnp.bfloat16):
        return (0.02 * jax.random.normal(next(keys), shape, jnp.float32)
                ).astype(dtype)

    def zeros(shape):
        return jnp.zeros(shape, jnp.float32)

    def ones(shape):
        return jnp.ones(shape, jnp.float32)

    # classifier Linear(HIDDEN, 2), zero-padded to 128 output lanes for Pallas
    cls_w = normal((HIDDEN, NUM_LABELS), jnp.float32)
    cls_w_pad = jnp.zeros((HIDDEN, CLS_PAD), jnp.float32
                          ).at[:, :NUM_LABELS].set(cls_w).astype(jnp.bfloat16)

    params = {
        "word_emb": normal((VOCAB, HIDDEN), jnp.float32),
        "pos_emb": normal((MAX_POS, HIDDEN), jnp.float32),
        "type_emb": normal((TYPE_VOCAB, HIDDEN), jnp.float32),
        "emb_ln_g": ones((HIDDEN,)),
        "emb_ln_b": zeros((HIDDEN,)),
        "layers": [],
        "cls_w_pad": cls_w_pad,
        "cls_b_pad": zeros((CLS_PAD,)),
    }
    for _ in range(N_LAYERS):
        params["layers"].append({
            # fused QKV projection: [H, 3H] (wq | wk | wv), bf16 weights
            "w_qkv": normal((HIDDEN, 3 * HIDDEN)), "b_qkv": zeros((3 * HIDDEN,)),
            "wo": normal((HIDDEN, HIDDEN)), "bo": zeros((HIDDEN,)),
            "ln1_g": ones((HIDDEN,)), "ln1_b": zeros((HIDDEN,)),
            "w1": normal((HIDDEN, INTERMEDIATE)), "b1": zeros((INTERMEDIATE,)),
            "w2": normal((INTERMEDIATE, HIDDEN)), "b2": zeros((HIDDEN,)),
            "ln2_g": ones((HIDDEN,)), "ln2_b": zeros((HIDDEN,)),
        })
    return params


# -------------------------------- forward ------------------------------------
def bert_base_cased_forward(params, ids, mask, token_type_ids):
    """Equivalent of BertBaseCased.forward -> (start_logits, end_logits)."""
    B, S = ids.shape

    # Embeddings (gathers = glue in plain JAX), then Pallas LayerNorm (-> bf16).
    emb = (params["word_emb"][ids]
           + params["pos_emb"][jnp.arange(S)][None, :, :]
           + params["type_emb"][token_type_ids])
    x = layernorm(emb.reshape(B * S, HIDDEN),
                  params["emb_ln_g"], params["emb_ln_b"])

    # HF-style extended attention mask: (1 - mask) * -10000, shape [B, 1, S].
    mask_bias = ((1.0 - mask.astype(jnp.float32)) * -10000.0)[:, None, :]

    n_layers = len(params["layers"])
    logits_pad = None
    for li, layer in enumerate(params["layers"]):
        # 1) fused QKV projection + multi-head attention (per batch element)
        ctx = attention(x.reshape(B, S, HIDDEN), layer["w_qkv"],
                        layer["b_qkv"], mask_bias)
        ctx = ctx.reshape(B * S, HIDDEN)
        # 2) output projection + residual + LayerNorm fused
        x = proj_residual_ln(ctx, layer["wo"], layer["bo"], x,
                             layer["ln1_g"], layer["ln1_b"])
        # 3) FFN1 + GELU + FFN2 + residual + LayerNorm fused
        #    (classifier epilogue folded into the last layer's call)
        if li == n_layers - 1:
            x, logits_pad = ffn_fused(x, layer["w1"], layer["b1"],
                                      layer["w2"], layer["b2"],
                                      layer["ln2_g"], layer["ln2_b"],
                                      params["cls_w_pad"], params["cls_b_pad"])
        else:
            x = ffn_fused(x, layer["w1"], layer["b1"], layer["w2"], layer["b2"],
                          layer["ln2_g"], layer["ln2_b"])

    logits = logits_pad[:, :NUM_LABELS].reshape(B, S, NUM_LABELS)
    start_logits = logits[..., 0]
    end_logits = logits[..., 1]
    return start_logits, end_logits


# --------------------------------- main ---------------------------------------
if __name__ == "__main__":
    B, S = 2, 8
    key = jax.random.PRNGKey(0)
    k_ids, _ = jax.random.split(key)
    ids = jax.random.randint(k_ids, (B, S), 0, VOCAB, dtype=jnp.int32)
    token_type_ids = jnp.zeros((B, S), dtype=jnp.int32)
    mask = jnp.ones((B, S), dtype=jnp.int32).at[:, -2:].set(0)  # some padding

    params = init_params(jax.random.PRNGKey(42))

    fwd = jax.jit(bert_base_cased_forward)
    start_logits, end_logits = fwd(params, ids, mask, token_type_ids)
    jax.block_until_ready((start_logits, end_logits))
    assert start_logits.shape == (B, S) and start_logits.dtype == jnp.float32
    assert end_logits.shape == (B, S) and end_logits.dtype == jnp.float32
    assert bool(jnp.all(jnp.isfinite(start_logits))) and bool(
        jnp.all(jnp.isfinite(end_logits)))
    print("KERNEL_OK")
</pallas_src>

<mosaic_0001>
module attributes {stable_mosaic.version = 11 : i64} {
  func.func @_attention_kernel(%arg0: i32, %arg1: memref<1x8x128xbf16, #tpu.memory_space<vmem>>, %arg2: memref<128x384xbf16, #tpu.memory_space<vmem>>, %arg3: memref<1x384xf32, #tpu.memory_space<vmem>>, %arg4: memref<1x1x8xf32, #tpu.memory_space<vmem>>, %arg5: memref<1x8x128xbf16, #tpu.memory_space<vmem>>) attributes {dimension_semantics = [#tpu.dimension_semantics<parallel>], iteration_bounds = array<i64: 2>, scalar_prefetch = 0 : i64, scratch_operands = 0 : i64, tpu.core_type = #tpu.core_type<tc>, window_params = [{transform_indices = @transform_0, window_bounds = array<i64: 1, 8, 128>}, {pipeline_mode = #tpu.pipeline_mode<synchronous>, transform_indices = @transform_1, window_bounds = array<i64: 128, 384>}, {pipeline_mode = #tpu.pipeline_mode<synchronous>, transform_indices = @transform_2, window_bounds = array<i64: 1, 384>}, {transform_indices = @transform_3, window_bounds = array<i64: 1, 1, 8>}, {transform_indices = @transform_4, window_bounds = array<i64: 1, 8, 128>}]} {
    %c0 = arith.constant 0 : index
    %c0_0 = arith.constant 0 : index
    %c0_1 = arith.constant 0 : index
    %0 = vector.load %arg1[%c0, %c0_0, %c0_1] : memref<1x8x128xbf16, #tpu.memory_space<vmem>>, vector<1x8x128xbf16>
    %1 = vector.shape_cast %0 : vector<1x8x128xbf16> to vector<8x128xbf16>
    %c0_2 = arith.constant 0 : index
    %c0_3 = arith.constant 0 : index
    %2 = vector.load %arg2[%c0_2, %c0_3] : memref<128x384xbf16, #tpu.memory_space<vmem>>, vector<128x384xbf16>
    %cst = arith.constant dense<0.000000e+00> : vector<8x384xf32>
    %3 = tpu.matmul %1, %2, %cst {dimension_numbers = #tpu.dot_dimension_numbers<[1], [0], [0], [1], [0, 0, 1, 1], [], []>} : vector<8x128xbf16>, vector<128x384xbf16>, vector<8x384xf32> -> vector<8x384xf32>
    %c0_4 = arith.constant 0 : index
    %c0_5 = arith.constant 0 : index
    %4 = vector.load %arg3[%c0_4, %c0_5] : memref<1x384xf32, #tpu.memory_space<vmem>>, vector<1x384xf32>
    %5 = vector.broadcast %4 : vector<1x384xf32> to vector<8x384xf32>
    %6 = arith.addf %3, %5 : vector<8x384xf32>
    %7 = vector.extract_strided_slice %6 {offsets = [0, 0], sizes = [8, 128], strides = [1, 1]} : vector<8x384xf32> to vector<8x128xf32>
    %8 = arith.truncf %7 : vector<8x128xf32> to vector<8x128xbf16>
    %9 = vector.extract_strided_slice %6 {offsets = [0, 128], sizes = [8, 128], strides = [1, 1]} : vector<8x384xf32> to vector<8x128xf32>
    %10 = arith.truncf %9 : vector<8x128xf32> to vector<8x128xbf16>
    %11 = vector.extract_strided_slice %6 {offsets = [0, 256], sizes = [8, 128], strides = [1, 1]} : vector<8x384xf32> to vector<8x128xf32>
    %12 = arith.truncf %11 : vector<8x128xf32> to vector<8x128xbf16>
    %c0_6 = arith.constant 0 : index
    %c0_7 = arith.constant 0 : index
    %c0_8 = arith.constant 0 : index
    %13 = vector.load %arg4[%c0_6, %c0_7, %c0_8] : memref<1x1x8xf32, #tpu.memory_space<vmem>>, vector<1x1x8xf32>
    %14 = vector.shape_cast %13 : vector<1x1x8xf32> to vector<1x8xf32>
    %15 = vector.extract_strided_slice %8 {offsets = [0, 0], sizes = [8, 32], strides = [1, 1]} : vector<8x128xbf16> to vector<8x32xbf16>
    %16 = vector.extract_strided_slice %10 {offsets = [0, 0], sizes = [8, 32], strides = [1, 1]} : vector<8x128xbf16> to vector<8x32xbf16>
    "tpu.trace_start"() <{level = 10 : i32, message = "qd,kd->qk"}> : () -> ()
    %cst_9 = arith.constant dense<0.000000e+00> : vector<8x8xf32>
    %17 = tpu.matmul %15, %16, %cst_9 {dimension_numbers = #tpu.dot_dimension_numbers<[1], [1], [0], [0], [0, 0, 1, 0], [], []>} : vector<8x32xbf16>, vector<8x32xbf16>, vector<8x8xf32> -> vector<8x8xf32>
    "tpu.trace_stop"() : () -> ()
    %cst_10 = arith.constant 0.176776692 : f32
    %18 = vector.broadcast %cst_10 : f32 to vector<8x8xf32>
    %19 = arith.mulf %17, %18 : vector<8x8xf32>
    %20 = vector.broadcast %14 : vector<1x8xf32> to vector<8x8xf32>
    %21 = arith.addf %19, %20 : vector<8x8xf32>
    %cst_11 = arith.constant dense<0xFF800000> : vector<8xf32>
    %22 = vector.multi_reduction <maximumf>, %21, %cst_11 [1] : vector<8x8xf32> to vector<8xf32>
    %23 = vector.shape_cast %22 : vector<8xf32> to vector<8x1xf32>
    %24 = vector.broadcast %23 : vector<8x1xf32> to vector<8x8xf32>
    %25 = arith.subf %21, %24 : vector<8x8xf32>
    %26 = math.exp %25 : vector<8x8xf32>
    %cst_12 = arith.constant dense<0.000000e+00> : vector<8xf32>
    %27 = vector.multi_reduction <add>, %26, %cst_12 [1] : vector<8x8xf32> to vector<8xf32>
    %28 = vector.shape_cast %27 : vector<8xf32> to vector<8x1xf32>
    %29 = tpu.reciprocal %28 {approx = true} : vector<8x1xf32> -> vector<8x1xf32>
    %30 = vector.broadcast %29 : vector<8x1xf32> to vector<8x8xf32>
    %31 = arith.mulf %26, %30 : vector<8x8xf32>
    %32 = arith.truncf %31 : vector<8x8xf32> to vector<8x8xbf16>
    %33 = vector.extract_strided_slice %12 {offsets = [0, 0], sizes = [8, 32], strides = [1, 1]} : vector<8x128xbf16> to vector<8x32xbf16>
    "tpu.trace_start"() <{level = 10 : i32, message = "qk,kd->qd"}> : () -> ()
    %cst_13 = arith.constant dense<0.000000e+00> : vector<8x32xf32>
    %34 = tpu.matmul %32, %33, %cst_13 {dimension_numbers = #tpu.dot_dimension_numbers<[1], [0], [0], [1], [0, 0, 1, 1], [], []>} : vector<8x8xbf16>, vector<8x32xbf16>, vector<8x32xf32> -> vector<8x32xf32>
    "tpu.trace_stop"() : () -> ()
    %35 = vector.extract_strided_slice %8 {offsets = [0, 32], sizes = [8, 32], strides = [1, 1]} : vector<8x128xbf16> to vector<8x32xbf16>
    %36 = vector.extract_strided_slice %10 {offsets = [0, 32], sizes = [8, 32], strides = [1, 1]} : vector<8x128xbf16> to vector<8x32xbf16>
    "tpu.trace_start"() <{level = 10 : i32, message = "qd,kd->qk"}> : () -> ()
    %cst_14 = arith.constant dense<0.000000e+00> : vector<8x8xf32>
    %37 = tpu.matmul %35, %36, %cst_14 {dimension_numbers = #tpu.dot_dimension_numbers<[1], [1], [0], [0], [0, 0, 1, 0], [], []>} : vector<8x32xbf16>, vector<8x32xbf16>, vector<8x8xf32> -> vector<8x8xf32>
    "tpu.trace_stop"() : () -> ()
    %cst_15 = arith.constant 0.176776692 : f32
    %38 = vector.broadcast %cst_15 : f32 to vector<8x8xf32>
    %39 = arith.mulf %37, %38 : vector<8x8xf32>
    %40 = vector.broadcast %14 : vector<1x8xf32> to vector<8x8xf32>
    %41 = arith.addf %39, %40 : vector<8x8xf32>
    %cst_16 = arith.constant dense<0xFF800000> : vector<8xf32>
    %42 = vector.multi_reduction <maximumf>, %41, %cst_16 [1] : vector<8x8xf32> to vector<8xf32>
    %43 = vector.shape_cast %42 : vector<8xf32> to vector<8x1xf32>
    %44 = vector.broadcast %43 : vector<8x1xf32> to vector<8x8xf32>
    %45 = arith.subf %41, %44 : vector<8x8xf32>
    %46 = math.exp %45 : vector<8x8xf32>
    %cst_17 = arith.constant dense<0.000000e+00> : vector<8xf32>
    %47 = vector.multi_reduction <add>, %46, %cst_17 [1] : vector<8x8xf32> to vector<8xf32>
    %48 = vector.shape_cast %47 : vector<8xf32> to vector<8x1xf32>
    %49 = tpu.reciprocal %48 {approx = true} : vector<8x1xf32> -> vector<8x1xf32>
    %50 = vector.broadcast %49 : vector<8x1xf32> to vector<8x8xf32>
    %51 = arith.mulf %46, %50 : vector<8x8xf32>
    %52 = arith.truncf %51 : vector<8x8xf32> to vector<8x8xbf16>
    %53 = vector.extract_strided_slice %12 {offsets = [0, 32], sizes = [8, 32], strides = [1, 1]} : vector<8x128xbf16> to vector<8x32xbf16>
    "tpu.trace_start"() <{level = 10 : i32, message = "qk,kd->qd"}> : () -> ()
    %cst_18 = arith.constant dense<0.000000e+00> : vector<8x32xf32>
    %54 = tpu.matmul %52, %53, %cst_18 {dimension_numbers = #tpu.dot_dimension_numbers<[1], [0], [0], [1], [0, 0, 1, 1], [], []>} : vector<8x8xbf16>, vector<8x32xbf16>, vector<8x32xf32> -> vector<8x32xf32>
    "tpu.trace_stop"() : () -> ()
    %55 = vector.extract_strided_slice %8 {offsets = [0, 64], sizes = [8, 32], strides = [1, 1]} : vector<8x128xbf16> to vector<8x32xbf16>
    %56 = vector.extract_strided_slice %10 {offsets = [0, 64], sizes = [8, 32], strides = [1, 1]} : vector<8x128xbf16> to vector<8x32xbf16>
    "tpu.trace_start"() <{level = 10 : i32, message = "qd,kd->qk"}> : () -> ()
    %cst_19 = arith.constant dense<0.000000e+00> : vector<8x8xf32>
    %57 = tpu.matmul %55, %56, %cst_19 {dimension_numbers = #tpu.dot_dimension_numbers<[1], [1], [0], [0], [0, 0, 1, 0], [], []>} : vector<8x32xbf16>, vector<8x32xbf16>, vector<8x8xf32> -> vector<8x8xf32>
    "tpu.trace_stop"() : () -> ()
    %cst_20 = arith.constant 0.176776692 : f32
    %58 = vector.broadcast %cst_20 : f32 to vector<8x8xf32>
    %59 = arith.mulf %57, %58 : vector<8x8xf32>
    %60 = vector.broadcast %14 : vector<1x8xf32> to vector<8x8xf32>
    %61 = arith.addf %59, %60 : vector<8x8xf32>
    %cst_21 = arith.constant dense<0xFF800000> : vector<8xf32>
    %62 = vector.multi_reduction <maximumf>, %61, %cst_21 [1] : vector<8x8xf32> to vector<8xf32>
    %63 = vector.shape_cast %62 : vector<8xf32> to vector<8x1xf32>
    %64 = vector.broadcast %63 : vector<8x1xf32> to vector<8x8xf32>
    %65 = arith.subf %61, %64 : vector<8x8xf32>
    %66 = math.exp %65 : vector<8x8xf32>
    %cst_22 = arith.constant dense<0.000000e+00> : vector<8xf32>
    %67 = vector.multi_reduction <add>, %66, %cst_22 [1] : vector<8x8xf32> to vector<8xf32>
    %68 = vector.shape_cast %67 : vector<8xf32> to vector<8x1xf32>
    %69 = tpu.reciprocal %68 {approx = true} : vector<8x1xf32> -> vector<8x1xf32>
    %70 = vector.broadcast %69 : vector<8x1xf32> to vector<8x8xf32>
    %71 = arith.mulf %66, %70 : vector<8x8xf32>
    %72 = arith.truncf %71 : vector<8x8xf32> to vector<8x8xbf16>
    %73 = vector.extract_strided_slice %12 {offsets = [0, 64], sizes = [8, 32], strides = [1, 1]} : vector<8x128xbf16> to vector<8x32xbf16>
    "tpu.trace_start"() <{level = 10 : i32, message = "qk,kd->qd"}> : () -> ()
    %cst_23 = arith.constant dense<0.000000e+00> : vector<8x32xf32>
    %74 = tpu.matmul %72, %73, %cst_23 {dimension_numbers = #tpu.dot_dimension_numbers<[1], [0], [0], [1], [0, 0, 1, 1], [], []>} : vector<8x8xbf16>, vector<8x32xbf16>, vector<8x32xf32> -> vector<8x32xf32>
    "tpu.trace_stop"() : () -> ()
    %75 = vector.extract_strided_slice %8 {offsets = [0, 96], sizes = [8, 32], strides = [1, 1]} : vector<8x128xbf16> to vector<8x32xbf16>
    %76 = vector.extract_strided_slice %10 {offsets = [0, 96], sizes = [8, 32], strides = [1, 1]} : vector<8x128xbf16> to vector<8x32xbf16>
    "tpu.trace_start"() <{level = 10 : i32, message = "qd,kd->qk"}> : () -> ()
    %cst_24 = arith.constant dense<0.000000e+00> : vector<8x8xf32>
    %77 = tpu.matmul %75, %76, %cst_24 {dimension_numbers = #tpu.dot_dimension_numbers<[1], [1], [0], [0], [0, 0, 1, 0], [], []>} : vector<8x32xbf16>, vector<8x32xbf16>, vector<8x8xf32> -> vector<8x8xf32>
    "tpu.trace_stop"() : () -> ()
    %cst_25 = arith.constant 0.176776692 : f32
    %78 = vector.broadcast %cst_25 : f32 to vector<8x8xf32>
    %79 = arith.mulf %77, %78 : vector<8x8xf32>
    %80 = vector.broadcast %14 : vector<1x8xf32> to vector<8x8xf32>
    %81 = arith.addf %79, %80 : vector<8x8xf32>
    %cst_26 = arith.constant dense<0xFF800000> : vector<8xf32>
    %82 = vector.multi_reduction <maximumf>, %81, %cst_26 [1] : vector<8x8xf32> to vector<8xf32>
    %83 = vector.shape_cast %82 : vector<8xf32> to vector<8x1xf32>
    %84 = vector.broadcast %83 : vector<8x1xf32> to vector<8x8xf32>
    %85 = arith.subf %81, %84 : vector<8x8xf32>
    %86 = math.exp %85 : vector<8x8xf32>
    %cst_27 = arith.constant dense<0.000000e+00> : vector<8xf32>
    %87 = vector.multi_reduction <add>, %86, %cst_27 [1] : vector<8x8xf32> to vector<8xf32>
    %88 = vector.shape_cast %87 : vector<8xf32> to vector<8x1xf32>
    %89 = tpu.reciprocal %88 {approx = true} : vector<8x1xf32> -> vector<8x1xf32>
    %90 = vector.broadcast %89 : vector<8x1xf32> to vector<8x8xf32>
    %91 = arith.mulf %86, %90 : vector<8x8xf32>
    %92 = arith.truncf %91 : vector<8x8xf32> to vector<8x8xbf16>
    %93 = vector.extract_strided_slice %12 {offsets = [0, 96], sizes = [8, 32], strides = [1, 1]} : vector<8x128xbf16> to vector<8x32xbf16>
    "tpu.trace_start"() <{level = 10 : i32, message = "qk,kd->qd"}> : () -> ()
    %cst_28 = arith.constant dense<0.000000e+00> : vector<8x32xf32>
    %94 = tpu.matmul %92, %93, %cst_28 {dimension_numbers = #tpu.dot_dimension_numbers<[1], [0], [0], [1], [0, 0, 1, 1], [], []>} : vector<8x8xbf16>, vector<8x32xbf16>, vector<8x32xf32> -> vector<8x32xf32>
    "tpu.trace_stop"() : () -> ()
    %95 = tpu.concatenate %34, %54, %74, %94 in 1 : vector<8x32xf32>, vector<8x32xf32>, vector<8x32xf32>, vector<8x32xf32> -> vector<8x128xf32>
    %96 = arith.truncf %95 : vector<8x128xf32> to vector<8x128xbf16>
    %c0_29 = arith.constant 0 : index
    %c0_30 = arith.constant 0 : index
    %c0_31 = arith.constant 0 : index
    %97 = vector.load %arg5[%c0_29, %c0_30, %c0_31] : memref<1x8x128xbf16, #tpu.memory_space<vmem>>, vector<1x8x128xbf16>
    %98 = vector.shape_cast %97 : vector<1x8x128xbf16> to vector<8x128xbf16>
    %99 = vector.shape_cast %96 : vector<8x128xbf16> to vector<1x8x128xbf16>
    tpu.vector_store %arg5[%c0_29, %c0_30, %c0_31], %99 {strides = array<i32>} : memref<1x8x128xbf16, #tpu.memory_space<vmem>>, vector<1x8x128xbf16>,
    return
  }
  func.func @transform_0(%arg0: i32) -> (i32, i32, i32) {
    %c0_i32 = arith.constant 0 : i32
    %c0_i32_0 = arith.constant 0 : i32
    %c0_i32_1 = arith.constant 0 : i32
    return %arg0, %c0_i32, %c0_i32_0 : i32, i32, i32
  }
  func.func @transform_1(%arg0: i32) -> (i32, i32) {
    %c0_i32 = arith.constant 0 : i32
    %c0_i32_0 = arith.constant 0 : i32
    %c0_i32_1 = arith.constant 0 : i32
    return %c0_i32, %c0_i32_0 : i32, i32
  }
  func.func @transform_2(%arg0: i32) -> (i32, i32) {
    %c0_i32 = arith.constant 0 : i32
    %c0_i32_0 = arith.constant 0 : i32
    %c0_i32_1 = arith.constant 0 : i32
    return %c0_i32, %c0_i32_0 : i32, i32
  }
  func.func @transform_3(%arg0: i32) -> (i32, i32, i32) {
    %c0_i32 = arith.constant 0 : i32
    %c0_i32_0 = arith.constant 0 : i32
    %c0_i32_1 = arith.constant 0 : i32
    return %arg0, %c0_i32, %c0_i32_0 : i32, i32, i32
  }
  func.func @transform_4(%arg0: i32) -> (i32, i32, i32) {
    %c0_i32 = arith.constant 0 : i32
    %c0_i32_0 = arith.constant 0 : i32
    %c0_i32_1 = arith.constant 0 : i32
    return %arg0, %c0_i32, %c0_i32_0 : i32, i32, i32
  }
}

module attributes {stable_mosaic.version = 11 : i64} {
  func.func @_layernorm_kernel(%arg0: i32, %arg1: memref<8x128xf32, #tpu.memory_space<vmem>>, %arg2: memref<1x128xf32, #tpu.memory_space<vmem>>, %arg3: memref<1x128xf32, #tpu.memory_space<vmem>>, %arg4: memref<8x128xbf16, #tpu.memory_space<vmem>>) attributes {dimension_semantics = [#tpu.dimension_semantics<parallel>], iteration_bounds = array<i64: 2>, scalar_prefetch = 0 : i64, scratch_operands = 0 : i64, tpu.core_type = #tpu.core_type<tc>, window_params = [{transform_indices = @transform_0, window_bounds = array<i64: 8, 128>}, {pipeline_mode = #tpu.pipeline_mode<synchronous>, transform_indices = @transform_1, window_bounds = array<i64: 1, 128>}, {pipeline_mode = #tpu.pipeline_mode<synchronous>, transform_indices = @transform_2, window_bounds = array<i64: 1, 128>}, {transform_indices = @transform_3, window_bounds = array<i64: 8, 128>}]} {
    %c0 = arith.constant 0 : index
    %c0_0 = arith.constant 0 : index
    %0 = vector.load %arg1[%c0, %c0_0] : memref<8x128xf32, #tpu.memory_space<vmem>>, vector<8x128xf32>
    %cst = arith.constant dense<0.000000e+00> : vector<8xf32>
    %1 = vector.multi_reduction <add>, %0, %cst [1] : vector<8x128xf32> to vector<8xf32>
    %2 = vector.shape_cast %1 : vector<8xf32> to vector<8x1xf32>
    %cst_1 = arith.constant 1.280000e+02 : f32
    %3 = vector.broadcast %cst_1 : f32 to vector<8x1xf32>
    %4 = arith.divf %2, %3 : vector<8x1xf32>
    %5 = vector.broadcast %4 : vector<8x1xf32> to vector<8x128xf32>
    %6 = arith.subf %0, %5 : vector<8x128xf32>
    %7 = arith.mulf %6, %6 : vector<8x128xf32>
    %cst_2 = arith.constant dense<0.000000e+00> : vector<8xf32>
    %8 = vector.multi_reduction <add>, %7, %cst_2 [1] : vector<8x128xf32> to vector<8xf32>
    %9 = vector.shape_cast %8 : vector<8xf32> to vector<8x1xf32>
    %cst_3 = arith.constant 1.280000e+02 : f32
    %10 = vector.broadcast %cst_3 : f32 to vector<8x1xf32>
    %11 = arith.divf %9, %10 : vector<8x1xf32>
    %cst_4 = arith.constant 9.99999996E-13 : f32
    %12 = vector.broadcast %cst_4 : f32 to vector<8x1xf32>
    %13 = arith.addf %11, %12 : vector<8x1xf32>
    %14 = math.rsqrt %13 : vector<8x1xf32>
    %15 = vector.broadcast %14 : vector<8x1xf32> to vector<8x128xf32>
    %16 = arith.mulf %6, %15 : vector<8x128xf32>
    %c0_5 = arith.constant 0 : index
    %c0_6 = arith.constant 0 : index
    %17 = vector.load %arg2[%c0_5, %c0_6] : memref<1x128xf32, #tpu.memory_space<vmem>>, vector<1x128xf32>
    %18 = vector.broadcast %17 : vector<1x128xf32> to vector<8x128xf32>
    %19 = arith.mulf %16, %18 : vector<8x128xf32>
    %c0_7 = arith.constant 0 : index
    %c0_8 = arith.constant 0 : index
    %20 = vector.load %arg3[%c0_7, %c0_8] : memref<1x128xf32, #tpu.memory_space<vmem>>, vector<1x128xf32>
    %21 = vector.broadcast %20 : vector<1x128xf32> to vector<8x128xf32>
    %22 = arith.addf %19, %21 : vector<8x128xf32>
    %23 = arith.truncf %22 : vector<8x128xf32> to vector<8x128xbf16>
    %c0_9 = arith.constant 0 : index
    %c0_10 = arith.constant 0 : index
    %24 = vector.load %arg4[%c0_9, %c0_10] : memref<8x128xbf16, #tpu.memory_space<vmem>>, vector<8x128xbf16>
    tpu.vector_store %arg4[%c0_9, %c0_10], %23 {strides = array<i32>} : memref<8x128xbf16, #tpu.memory_space<vmem>>, vector<8x128xbf16>,
    return
  }
  func.func @transform_0(%arg0: i32) -> (i32, i32) {
    %c0_i32 = arith.constant 0 : i32
    %c0_i32_0 = arith.constant 0 : i32
    return %arg0, %c0_i32 : i32, i32
  }
  func.func @transform_1(%arg0: i32) -> (i32, i32) {
    %c0_i32 = arith.constant 0 : i32
    %c0_i32_0 = arith.constant 0 : i32
    %c0_i32_1 = arith.constant 0 : i32
    return %c0_i32, %c0_i32_0 : i32, i32
  }
  func.func @transform_2(%arg0: i32) -> (i32, i32) {
    %c0_i32 = arith.constant 0 : i32
    %c0_i32_0 = arith.constant 0 : i32
    %c0_i32_1 = arith.constant 0 : i32
    return %c0_i32, %c0_i32_0 : i32, i32
  }
  func.func @transform_3(%arg0: i32) -> (i32, i32) {
    %c0_i32 = arith.constant 0 : i32
    %c0_i32_0 = arith.constant 0 : i32
    return %arg0, %c0_i32 : i32, i32
  }
}

module attributes {stable_mosaic.version = 11 : i64} {
  func.func @_ffn_fused_kernel(%arg0: i32, %arg1: memref<8x128xbf16, #tpu.memory_space<vmem>>, %arg2: memref<128x512xbf16, #tpu.memory_space<vmem>>, %arg3: memref<1x512xf32, #tpu.memory_space<vmem>>, %arg4: memref<512x128xbf16, #tpu.memory_space<vmem>>, %arg5: memref<1x128xf32, #tpu.memory_space<vmem>>, %arg6: memref<1x128xf32, #tpu.memory_space<vmem>>, %arg7: memref<1x128xf32, #tpu.memory_space<vmem>>, %arg8: memref<8x128xbf16, #tpu.memory_space<vmem>>) attributes {dimension_semantics = [#tpu.dimension_semantics<parallel>], iteration_bounds = array<i64: 2>, scalar_prefetch = 0 : i64, scratch_operands = 0 : i64, tpu.core_type = #tpu.core_type<tc>, window_params = [{transform_indices = @transform_0, window_bounds = array<i64: 8, 128>}, {pipeline_mode = #tpu.pipeline_mode<synchronous>, transform_indices = @transform_1, window_bounds = array<i64: 128, 512>}, {pipeline_mode = #tpu.pipeline_mode<synchronous>, transform_indices = @transform_2, window_bounds = array<i64: 1, 512>}, {pipeline_mode = #tpu.pipeline_mode<synchronous>, transform_indices = @transform_3, window_bounds = array<i64: 512, 128>}, {pipeline_mode = #tpu.pipeline_mode<synchronous>, transform_indices = @transform_4, window_bounds = array<i64: 1, 128>}, {pipeline_mode = #tpu.pipeline_mode<synchronous>, transform_indices = @transform_5, window_bounds = array<i64: 1, 128>}, {pipeline_mode = #tpu.pipeline_mode<synchronous>, transform_indices = @transform_6, window_bounds = array<i64: 1, 128>}, {transform_indices = @transform_7, window_bounds = array<i64: 8, 128>}]} {
    %c0 = arith.constant 0 : index
    %c0_0 = arith.constant 0 : index
    %0 = vector.load %arg1[%c0, %c0_0] : memref<8x128xbf16, #tpu.memory_space<vmem>>, vector<8x128xbf16>
    %c0_1 = arith.constant 0 : index
    %c0_2 = arith.constant 0 : index
    %1 = vector.load %arg2[%c0_1, %c0_2] : memref<128x512xbf16, #tpu.memory_space<vmem>>, vector<128x512xbf16>
    %cst = arith.constant dense<0.000000e+00> : vector<8x512xf32>
    %2 = tpu.matmul %0, %1, %cst {dimension_numbers = #tpu.dot_dimension_numbers<[1], [0], [0], [1], [0, 0, 1, 1], [], []>} : vector<8x128xbf16>, vector<128x512xbf16>, vector<8x512xf32> -> vector<8x512xf32>
    %c0_3 = arith.constant 0 : index
    %c0_4 = arith.constant 0 : index
    %3 = vector.load %arg3[%c0_3, %c0_4] : memref<1x512xf32, #tpu.memory_space<vmem>>, vector<1x512xf32>
    %4 = vector.broadcast %3 : vector<1x512xf32> to vector<8x512xf32>
    %5 = arith.addf %2, %4 : vector<8x512xf32>
    %6 = arith.mulf %5, %5 : vector<8x512xf32>
    %7 = arith.mulf %5, %6 : vector<8x512xf32>
    %cst_5 = arith.constant 4.471500e-02 : f32
    %8 = vector.broadcast %cst_5 : f32 to vector<8x512xf32>
    %9 = arith.mulf %8, %7 : vector<8x512xf32>
    %10 = arith.addf %5, %9 : vector<8x512xf32>
    %cst_6 = arith.constant 0.797884583 : f32
    %11 = vector.broadcast %cst_6 : f32 to vector<8x512xf32>
    %12 = arith.mulf %11, %10 : vector<8x512xf32>
    %13 = math.tanh %12 : vector<8x512xf32>
    %cst_7 = arith.constant 1.000000e+00 : f32
    %14 = vector.broadcast %cst_7 : f32 to vector<8x512xf32>
    %15 = arith.addf %14, %13 : vector<8x512xf32>
    %cst_8 = arith.constant 5.000000e-01 : f32
    %16 = vector.broadcast %cst_8 : f32 to vector<8x512xf32>
    %17 = arith.mulf %16, %15 : vector<8x512xf32>
    %18 = arith.mulf %5, %17 : vector<8x512xf32>
    %19 = arith.truncf %18 : vector<8x512xf32> to vector<8x512xbf16>
    %c0_9 = arith.constant 0 : index
    %c0_10 = arith.constant 0 : index
    %20 = vector.load %arg4[%c0_9, %c0_10] : memref<512x128xbf16, #tpu.memory_space<vmem>>, vector<512x128xbf16>
    %cst_11 = arith.constant dense<0.000000e+00> : vector<8x128xf32>
    %21 = tpu.matmul %19, %20, %cst_11 {dimension_numbers = #tpu.dot_dimension_numbers<[1], [0], [0], [1], [0, 0, 1, 1], [], []>} : vector<8x512xbf16>, vector<512x128xbf16>, vector<8x128xf32> -> vector<8x128xf32>
    %c0_12 = arith.constant 0 : index
    %c0_13 = arith.constant 0 : index
    %22 = vector.load %arg5[%c0_12, %c0_13] : memref<1x128xf32, #tpu.memory_space<vmem>>, vector<1x128xf32>
    %23 = vector.broadcast %22 : vector<1x128xf32> to vector<8x128xf32>
    %24 = arith.addf %21, %23 : vector<8x128xf32>
    %25 = arith.extf %0 : vector<8x128xbf16> to vector<8x128xf32>
    %26 = arith.addf %24, %25 : vector<8x128xf32>
    %cst_14 = arith.constant dense<0.000000e+00> : vector<8xf32>
    %27 = vector.multi_reduction <add>, %26, %cst_14 [1] : vector<8x128xf32> to vector<8xf32>
    %28 = vector.shape_cast %27 : vector<8xf32> to vector<8x1xf32>
    %cst_15 = arith.constant 1.280000e+02 : f32
    %29 = vector.broadcast %cst_15 : f32 to vector<8x1xf32>
    %30 = arith.divf %28, %29 : vector<8x1xf32>
    %31 = vector.broadcast %30 : vector<8x1xf32> to vector<8x128xf32>
    %32 = arith.subf %26, %31 : vector<8x128xf32>
    %33 = arith.mulf %32, %32 : vector<8x128xf32>
    %cst_16 = arith.constant dense<0.000000e+00> : vector<8xf32>
    %34 = vector.multi_reduction <add>, %33, %cst_16 [1] : vector<8x128xf32> to vector<8xf32>
    %35 = vector.shape_cast %34 : vector<8xf32> to vector<8x1xf32>
    %cst_17 = arith.constant 1.280000e+02 : f32
    %36 = vector.broadcast %cst_17 : f32 to vector<8x1xf32>
    %37 = arith.divf %35, %36 : vector<8x1xf32>
    %cst_18 = arith.constant 9.99999996E-13 : f32
    %38 = vector.broadcast %cst_18 : f32 to vector<8x1xf32>
    %39 = arith.addf %37, %38 : vector<8x1xf32>
    %40 = math.rsqrt %39 : vector<8x1xf32>
    %41 = vector.broadcast %40 : vector<8x1xf32> to vector<8x128xf32>
    %42 = arith.mulf %32, %41 : vector<8x128xf32>
    %c0_19 = arith.constant 0 : index
    %c0_20 = arith.constant 0 : index
    %43 = vector.load %arg6[%c0_19, %c0_20] : memref<1x128xf32, #tpu.memory_space<vmem>>, vector<1x128xf32>
    %44 = vector.broadcast %43 : vector<1x128xf32> to vector<8x128xf32>
    %45 = arith.mulf %42, %44 : vector<8x128xf32>
    %c0_21 = arith.constant 0 : index
    %c0_22 = arith.constant 0 : index
    %46 = vector.load %arg7[%c0_21, %c0_22] : memref<1x128xf32, #tpu.memory_space<vmem>>, vector<1x128xf32>
    %47 = vector.broadcast %46 : vector<1x128xf32> to vector<8x128xf32>
    %48 = arith.addf %45, %47 : vector<8x128xf32>
    %49 = arith.truncf %48 : vector<8x128xf32> to vector<8x128xbf16>
    %c0_23 = arith.constant 0 : index
    %c0_24 = arith.constant 0 : index
    %50 = vector.load %arg8[%c0_23, %c0_24] : memref<8x128xbf16, #tpu.memory_space<vmem>>, vector<8x128xbf16>
    tpu.vector_store %arg8[%c0_23, %c0_24], %49 {strides = array<i32>} : memref<8x128xbf16, #tpu.memory_space<vmem>>, vector<8x128xbf16>,
    return
  }
  func.func @transform_0(%arg0: i32) -> (i32, i32) {
    %c0_i32 = arith.constant 0 : i32
    %c0_i32_0 = arith.constant 0 : i32
    return %arg0, %c0_i32 : i32, i32
  }
  func.func @transform_1(%arg0: i32) -> (i32, i32) {
    %c0_i32 = arith.constant 0 : i32
    %c0_i32_0 = arith.constant 0 : i32
    %c0_i32_1 = arith.constant 0 : i32
    return %c0_i32, %c0_i32_0 : i32, i32
  }
  func.func @transform_2(%arg0: i32) -> (i32, i32) {
    %c0_i32 = arith.constant 0 : i32
    %c0_i32_0 = arith.constant 0 : i32
    %c0_i32_1 = arith.constant 0 : i32
    return %c0_i32, %c0_i32_0 : i32, i32
  }
  func.func @transform_3(%arg0: i32) -> (i32, i32) {
    %c0_i32 = arith.constant 0 : i32
    %c0_i32_0 = arith.constant 0 : i32
    %c0_i32_1 = arith.constant 0 : i32
    return %c0_i32, %c0_i32_0 : i32, i32
  }
  func.func @transform_4(%arg0: i32) -> (i32, i32) {
    %c0_i32 = arith.constant 0 : i32
    %c0_i32_0 = arith.constant 0 : i32
    %c0_i32_1 = arith.constant 0 : i32
    return %c0_i32, %c0_i32_0 : i32, i32
  }
  func.func @transform_5(%arg0: i32) -> (i32, i32) {
    %c0_i32 = arith.constant 0 : i32
    %c0_i32_0 = arith.constant 0 : i32
    %c0_i32_1 = arith.constant 0 : i32
    return %c0_i32, %c0_i32_0 : i32, i32
  }
  func.func @transform_6(%arg0: i32) -> (i32, i32) {
    %c0_i32 = arith.constant 0 : i32
    %c0_i32_0 = arith.constant 0 : i32
    %c0_i32_1 = arith.constant 0 : i32
    return %c0_i32, %c0_i32_0 : i32, i32
  }
  func.func @transform_7(%arg0: i32) -> (i32, i32) {
    %c0_i32 = arith.constant 0 : i32
    %c0_i32_0 = arith.constant 0 : i32
    return %arg0, %c0_i32 : i32, i32
  }
}

module attributes {stable_mosaic.version = 11 : i64} {
  func.func @_proj_residual_ln_kernel(%arg0: i32, %arg1: memref<8x128xbf16, #tpu.memory_space<vmem>>, %arg2: memref<128x128xbf16, #tpu.memory_space<vmem>>, %arg3: memref<1x128xf32, #tpu.memory_space<vmem>>, %arg4: memref<8x128xbf16, #tpu.memory_space<vmem>>, %arg5: memref<1x128xf32, #tpu.memory_space<vmem>>, %arg6: memref<1x128xf32, #tpu.memory_space<vmem>>, %arg7: memref<8x128xbf16, #tpu.memory_space<vmem>>) attributes {dimension_semantics = [#tpu.dimension_semantics<parallel>], iteration_bounds = array<i64: 2>, scalar_prefetch = 0 : i64, scratch_operands = 0 : i64, tpu.core_type = #tpu.core_type<tc>, window_params = [{transform_indices = @transform_0, window_bounds = array<i64: 8, 128>}, {pipeline_mode = #tpu.pipeline_mode<synchronous>, transform_indices = @transform_1, window_bounds = array<i64: 128, 128>}, {pipeline_mode = #tpu.pipeline_mode<synchronous>, transform_indices = @transform_2, window_bounds = array<i64: 1, 128>}, {transform_indices = @transform_3, window_bounds = array<i64: 8, 128>}, {pipeline_mode = #tpu.pipeline_mode<synchronous>, transform_indices = @transform_4, window_bounds = array<i64: 1, 128>}, {pipeline_mode = #tpu.pipeline_mode<synchronous>, transform_indices = @transform_5, window_bounds = array<i64: 1, 128>}, {transform_indices = @transform_6, window_bounds = array<i64: 8, 128>}]} {
    %c0 = arith.constant 0 : index
    %c0_0 = arith.constant 0 : index
    %0 = vector.load %arg1[%c0, %c0_0] : memref<8x128xbf16, #tpu.memory_space<vmem>>, vector<8x128xbf16>
    %c0_1 = arith.constant 0 : index
    %c0_2 = arith.constant 0 : index
    %1 = vector.load %arg2[%c0_1, %c0_2] : memref<128x128xbf16, #tpu.memory_space<vmem>>, vector<128x128xbf16>
    %cst = arith.constant dense<0.000000e+00> : vector<8x128xf32>
    %2 = tpu.matmul %0, %1, %cst {dimension_numbers = #tpu.dot_dimension_numbers<[1], [0], [0], [1], [0, 0, 1, 1], [], []>} : vector<8x128xbf16>, vector<128x128xbf16>, vector<8x128xf32> -> vector<8x128xf32>
    %c0_3 = arith.constant 0 : index
    %c0_4 = arith.constant 0 : index
    %3 = vector.load %arg3[%c0_3, %c0_4] : memref<1x128xf32, #tpu.memory_space<vmem>>, vector<1x128xf32>
    %4 = vector.broadcast %3 : vector<1x128xf32> to vector<8x128xf32>
    %5 = arith.addf %2, %4 : vector<8x128xf32>
    %c0_5 = arith.constant 0 : index
    %c0_6 = arith.constant 0 : index
    %6 = vector.load %arg4[%c0_5, %c0_6] : memref<8x128xbf16, #tpu.memory_space<vmem>>, vector<8x128xbf16>
    %7 = arith.extf %6 : vector<8x128xbf16> to vector<8x128xf32>
    %8 = arith.addf %5, %7 : vector<8x128xf32>
    %cst_7 = arith.constant dense<0.000000e+00> : vector<8xf32>
    %9 = vector.multi_reduction <add>, %8, %cst_7 [1] : vector<8x128xf32> to vector<8xf32>
    %10 = vector.shape_cast %9 : vector<8xf32> to vector<8x1xf32>
    %cst_8 = arith.constant 1.280000e+02 : f32
    %11 = vector.broadcast %cst_8 : f32 to vector<8x1xf32>
    %12 = arith.divf %10, %11 : vector<8x1xf32>
    %13 = vector.broadcast %12 : vector<8x1xf32> to vector<8x128xf32>
    %14 = arith.subf %8, %13 : vector<8x128xf32>
    %15 = arith.mulf %14, %14 : vector<8x128xf32>
    %cst_9 = arith.constant dense<0.000000e+00> : vector<8xf32>
    %16 = vector.multi_reduction <add>, %15, %cst_9 [1] : vector<8x128xf32> to vector<8xf32>
    %17 = vector.shape_cast %16 : vector<8xf32> to vector<8x1xf32>
    %cst_10 = arith.constant 1.280000e+02 : f32
    %18 = vector.broadcast %cst_10 : f32 to vector<8x1xf32>
    %19 = arith.divf %17, %18 : vector<8x1xf32>
    %cst_11 = arith.constant 9.99999996E-13 : f32
    %20 = vector.broadcast %cst_11 : f32 to vector<8x1xf32>
    %21 = arith.addf %19, %20 : vector<8x1xf32>
    %22 = math.rsqrt %21 : vector<8x1xf32>
    %23 = vector.broadcast %22 : vector<8x1xf32> to vector<8x128xf32>
    %24 = arith.mulf %14, %23 : vector<8x128xf32>
    %c0_12 = arith.constant 0 : index
    %c0_13 = arith.constant 0 : index
    %25 = vector.load %arg5[%c0_12, %c0_13] : memref<1x128xf32, #tpu.memory_space<vmem>>, vector<1x128xf32>
    %26 = vector.broadcast %25 : vector<1x128xf32> to vector<8x128xf32>
    %27 = arith.mulf %24, %26 : vector<8x128xf32>
    %c0_14 = arith.constant 0 : index
    %c0_15 = arith.constant 0 : index
    %28 = vector.load %arg6[%c0_14, %c0_15] : memref<1x128xf32, #tpu.memory_space<vmem>>, vector<1x128xf32>
    %29 = vector.broadcast %28 : vector<1x128xf32> to vector<8x128xf32>
    %30 = arith.addf %27, %29 : vector<8x128xf32>
    %31 = arith.truncf %30 : vector<8x128xf32> to vector<8x128xbf16>
    %c0_16 = arith.constant 0 : index
    %c0_17 = arith.constant 0 : index
    %32 = vector.load %arg7[%c0_16, %c0_17] : memref<8x128xbf16, #tpu.memory_space<vmem>>, vector<8x128xbf16>
    tpu.vector_store %arg7[%c0_16, %c0_17], %31 {strides = array<i32>} : memref<8x128xbf16, #tpu.memory_space<vmem>>, vector<8x128xbf16>,
    return
  }
  func.func @transform_0(%arg0: i32) -> (i32, i32) {
    %c0_i32 = arith.constant 0 : i32
    %c0_i32_0 = arith.constant 0 : i32
    return %arg0, %c0_i32 : i32, i32
  }
  func.func @transform_1(%arg0: i32) -> (i32, i32) {
    %c0_i32 = arith.constant 0 : i32
    %c0_i32_0 = arith.constant 0 : i32
    %c0_i32_1 = arith.constant 0 : i32
    return %c0_i32, %c0_i32_0 : i32, i32
  }
  func.func @transform_2(%arg0: i32) -> (i32, i32) {
    %c0_i32 = arith.constant 0 : i32
    %c0_i32_0 = arith.constant 0 : i32
    %c0_i32_1 = arith.constant 0 : i32
    return %c0_i32, %c0_i32_0 : i32, i32
  }
  func.func @transform_3(%arg0: i32) -> (i32, i32) {
    %c0_i32 = arith.constant 0 : i32
    %c0_i32_0 = arith.constant 0 : i32
    return %arg0, %c0_i32 : i32, i32
  }
  func.func @transform_4(%arg0: i32) -> (i32, i32) {
    %c0_i32 = arith.constant 0 : i32
    %c0_i32_0 = arith.constant 0 : i32
    %c0_i32_1 = arith.constant 0 : i32
    return %c0_i32, %c0_i32_0 : i32, i32
  }
  func.func @transform_5(%arg0: i32) -> (i32, i32) {
    %c0_i32 = arith.constant 0 : i32
    %c0_i32_0 = arith.constant 0 : i32
    %c0_i32_1 = arith.constant 0 : i32
    return %c0_i32, %c0_i32_0 : i32, i32
  }
  func.func @transform_6(%arg0: i32) -> (i32, i32) {
    %c0_i32 = arith.constant 0 : i32
    %c0_i32_0 = arith.constant 0 : i32
    return %arg0, %c0_i32 : i32, i32
  }
}

module attributes {stable_mosaic.version = 11 : i64} {
  func.func @_ffn_fused_kernel(%arg0: i32, %arg1: memref<8x128xbf16, #tpu.memory_space<vmem>>, %arg2: memref<128x512xbf16, #tpu.memory_space<vmem>>, %arg3: memref<1x512xf32, #tpu.memory_space<vmem>>, %arg4: memref<512x128xbf16, #tpu.memory_space<vmem>>, %arg5: memref<1x128xf32, #tpu.memory_space<vmem>>, %arg6: memref<1x128xf32, #tpu.memory_space<vmem>>, %arg7: memref<1x128xf32, #tpu.memory_space<vmem>>, %arg8: memref<128x128xbf16, #tpu.memory_space<vmem>>, %arg9: memref<1x128xf32, #tpu.memory_space<vmem>>, %arg10: memref<8x128xbf16, #tpu.memory_space<vmem>>, %arg11: memref<8x128xf32, #tpu.memory_space<vmem>>) attributes {dimension_semantics = [#tpu.dimension_semantics<parallel>], iteration_bounds = array<i64: 2>, scalar_prefetch = 0 : i64, scratch_operands = 0 : i64, tpu.core_type = #tpu.core_type<tc>, window_params = [{transform_indices = @transform_0, window_bounds = array<i64: 8, 128>}, {pipeline_mode = #tpu.pipeline_mode<synchronous>, transform_indices = @transform_1, window_bounds = array<i64: 128, 512>}, {pipeline_mode = #tpu.pipeline_mode<synchronous>, transform_indices = @transform_2, window_bounds = array<i64: 1, 512>}, {pipeline_mode = #tpu.pipeline_mode<synchronous>, transform_indices = @transform_3, window_bounds = array<i64: 512, 128>}, {pipeline_mode = #tpu.pipeline_mode<synchronous>, transform_indices = @transform_4, window_bounds = array<i64: 1, 128>}, {pipeline_mode = #tpu.pipeline_mode<synchronous>, transform_indices = @transform_5, window_bounds = array<i64: 1, 128>}, {pipeline_mode = #tpu.pipeline_mode<synchronous>, transform_indices = @transform_6, window_bounds = array<i64: 1, 128>}, {pipeline_mode = #tpu.pipeline_mode<synchronous>, transform_indices = @transform_7, window_bounds = array<i64: 128, 128>}, {pipeline_mode = #tpu.pipeline_mode<synchronous>, transform_indices = @transform_8, window_bounds = array<i64: 1, 128>}, {transform_indices = @transform_9, window_bounds = array<i64: 8, 128>}, {transform_indices = @transform_10, window_bounds = array<i64: 8, 128>}]} {
    %c0 = arith.constant 0 : index
    %c0_0 = arith.constant 0 : index
    %0 = vector.load %arg1[%c0, %c0_0] : memref<8x128xbf16, #tpu.memory_space<vmem>>, vector<8x128xbf16>
    %c0_1 = arith.constant 0 : index
    %c0_2 = arith.constant 0 : index
    %1 = vector.load %arg2[%c0_1, %c0_2] : memref<128x512xbf16, #tpu.memory_space<vmem>>, vector<128x512xbf16>
    %cst = arith.constant dense<0.000000e+00> : vector<8x512xf32>
    %2 = tpu.matmul %0, %1, %cst {dimension_numbers = #tpu.dot_dimension_numbers<[1], [0], [0], [1], [0, 0, 1, 1], [], []>} : vector<8x128xbf16>, vector<128x512xbf16>, vector<8x512xf32> -> vector<8x512xf32>
    %c0_3 = arith.constant 0 : index
    %c0_4 = arith.constant 0 : index
    %3 = vector.load %arg3[%c0_3, %c0_4] : memref<1x512xf32, #tpu.memory_space<vmem>>, vector<1x512xf32>
    %4 = vector.broadcast %3 : vector<1x512xf32> to vector<8x512xf32>
    %5 = arith.addf %2, %4 : vector<8x512xf32>
    %6 = arith.mulf %5, %5 : vector<8x512xf32>
    %7 = arith.mulf %5, %6 : vector<8x512xf32>
    %cst_5 = arith.constant 4.471500e-02 : f32
    %8 = vector.broadcast %cst_5 : f32 to vector<8x512xf32>
    %9 = arith.mulf %8, %7 : vector<8x512xf32>
    %10 = arith.addf %5, %9 : vector<8x512xf32>
    %cst_6 = arith.constant 0.797884583 : f32
    %11 = vector.broadcast %cst_6 : f32 to vector<8x512xf32>
    %12 = arith.mulf %11, %10 : vector<8x512xf32>
    %13 = math.tanh %12 : vector<8x512xf32>
    %cst_7 = arith.constant 1.000000e+00 : f32
    %14 = vector.broadcast %cst_7 : f32 to vector<8x512xf32>
    %15 = arith.addf %14, %13 : vector<8x512xf32>
    %cst_8 = arith.constant 5.000000e-01 : f32
    %16 = vector.broadcast %cst_8 : f32 to vector<8x512xf32>
    %17 = arith.mulf %16, %15 : vector<8x512xf32>
    %18 = arith.mulf %5, %17 : vector<8x512xf32>
    %19 = arith.truncf %18 : vector<8x512xf32> to vector<8x512xbf16>
    %c0_9 = arith.constant 0 : index
    %c0_10 = arith.constant 0 : index
    %20 = vector.load %arg4[%c0_9, %c0_10] : memref<512x128xbf16, #tpu.memory_space<vmem>>, vector<512x128xbf16>
    %cst_11 = arith.constant dense<0.000000e+00> : vector<8x128xf32>
    %21 = tpu.matmul %19, %20, %cst_11 {dimension_numbers = #tpu.dot_dimension_numbers<[1], [0], [0], [1], [0, 0, 1, 1], [], []>} : vector<8x512xbf16>, vector<512x128xbf16>, vector<8x128xf32> -> vector<8x128xf32>
    %c0_12 = arith.constant 0 : index
    %c0_13 = arith.constant 0 : index
    %22 = vector.load %arg5[%c0_12, %c0_13] : memref<1x128xf32, #tpu.memory_space<vmem>>, vector<1x128xf32>
    %23 = vector.broadcast %22 : vector<1x128xf32> to vector<8x128xf32>
    %24 = arith.addf %21, %23 : vector<8x128xf32>
    %25 = arith.extf %0 : vector<8x128xbf16> to vector<8x128xf32>
    %26 = arith.addf %24, %25 : vector<8x128xf32>
    %cst_14 = arith.constant dense<0.000000e+00> : vector<8xf32>
    %27 = vector.multi_reduction <add>, %26, %cst_14 [1] : vector<8x128xf32> to vector<8xf32>
    %28 = vector.shape_cast %27 : vector<8xf32> to vector<8x1xf32>
    %cst_15 = arith.constant 1.280000e+02 : f32
    %29 = vector.broadcast %cst_15 : f32 to vector<8x1xf32>
    %30 = arith.divf %28, %29 : vector<8x1xf32>
    %31 = vector.broadcast %30 : vector<8x1xf32> to vector<8x128xf32>
    %32 = arith.subf %26, %31 : vector<8x128xf32>
    %33 = arith.mulf %32, %32 : vector<8x128xf32>
    %cst_16 = arith.constant dense<0.000000e+00> : vector<8xf32>
    %34 = vector.multi_reduction <add>, %33, %cst_16 [1] : vector<8x128xf32> to vector<8xf32>
    %35 = vector.shape_cast %34 : vector<8xf32> to vector<8x1xf32>
    %cst_17 = arith.constant 1.280000e+02 : f32
    %36 = vector.broadcast %cst_17 : f32 to vector<8x1xf32>
    %37 = arith.divf %35, %36 : vector<8x1xf32>
    %cst_18 = arith.constant 9.99999996E-13 : f32
    %38 = vector.broadcast %cst_18 : f32 to vector<8x1xf32>
    %39 = arith.addf %37, %38 : vector<8x1xf32>
    %40 = math.rsqrt %39 : vector<8x1xf32>
    %41 = vector.broadcast %40 : vector<8x1xf32> to vector<8x128xf32>
    %42 = arith.mulf %32, %41 : vector<8x128xf32>
    %c0_19 = arith.constant 0 : index
    %c0_20 = arith.constant 0 : index
    %43 = vector.load %arg6[%c0_19, %c0_20] : memref<1x128xf32, #tpu.memory_space<vmem>>, vector<1x128xf32>
    %44 = vector.broadcast %43 : vector<1x128xf32> to vector<8x128xf32>
    %45 = arith.mulf %42, %44 : vector<8x128xf32>
    %c0_21 = arith.constant 0 : index
    %c0_22 = arith.constant 0 : index
    %46 = vector.load %arg7[%c0_21, %c0_22] : memref<1x128xf32, #tpu.memory_space<vmem>>, vector<1x128xf32>
    %47 = vector.broadcast %46 : vector<1x128xf32> to vector<8x128xf32>
    %48 = arith.addf %45, %47 : vector<8x128xf32>
    %49 = arith.truncf %48 : vector<8x128xf32> to vector<8x128xbf16>
    %c0_23 = arith.constant 0 : index
    %c0_24 = arith.constant 0 : index
    %50 = vector.load %arg10[%c0_23, %c0_24] : memref<8x128xbf16, #tpu.memory_space<vmem>>, vector<8x128xbf16>
    tpu.vector_store %arg10[%c0_23, %c0_24], %49 {strides = array<i32>} : memref<8x128xbf16, #tpu.memory_space<vmem>>, vector<8x128xbf16>,
    %51 = arith.truncf %48 : vector<8x128xf32> to vector<8x128xbf16>
    %c0_25 = arith.constant 0 : index
    %c0_26 = arith.constant 0 : index
    %52 = vector.load %arg8[%c0_25, %c0_26] : memref<128x128xbf16, #tpu.memory_space<vmem>>, vector<128x128xbf16>
    %cst_27 = arith.constant dense<0.000000e+00> : vector<8x128xf32>
    %53 = tpu.matmul %51, %52, %cst_27 {dimension_numbers = #tpu.dot_dimension_numbers<[1], [0], [0], [1], [0, 0, 1, 1], [], []>} : vector<8x128xbf16>, vector<128x128xbf16>, vector<8x128xf32> -> vector<8x128xf32>
    %c0_28 = arith.constant 0 : index
    %c0_29 = arith.constant 0 : index
    %54 = vector.load %arg9[%c0_28, %c0_29] : memref<1x128xf32, #tpu.memory_space<vmem>>, vector<1x128xf32>
    %55 = vector.broadcast %54 : vector<1x128xf32> to vector<8x128xf32>
    %56 = arith.addf %53, %55 : vector<8x128xf32>
    %c0_30 = arith.constant 0 : index
    %c0_31 = arith.constant 0 : index
    %57 = vector.load %arg11[%c0_30, %c0_31] : memref<8x128xf32, #tpu.memory_space<vmem>>, vector<8x128xf32>
    tpu.vector_store %arg11[%c0_30, %c0_31], %56 {strides = array<i32>} : memref<8x128xf32, #tpu.memory_space<vmem>>, vector<8x128xf32>,
    return
  }
  func.func @transform_0(%arg0: i32) -> (i32, i32) {
    %c0_i32 = arith.constant 0 : i32
    %c0_i32_0 = arith.constant 0 : i32
    return %arg0, %c0_i32 : i32, i32
  }
  func.func @transform_1(%arg0: i32) -> (i32, i32) {
    %c0_i32 = arith.constant 0 : i32
    %c0_i32_0 = arith.constant 0 : i32
    %c0_i32_1 = arith.constant 0 : i32
    return %c0_i32, %c0_i32_0 : i32, i32
  }
  func.func @transform_2(%arg0: i32) -> (i32, i32) {
    %c0_i32 = arith.constant 0 : i32
    %c0_i32_0 = arith.constant 0 : i32
    %c0_i32_1 = arith.constant 0 : i32
    return %c0_i32, %c0_i32_0 : i32, i32
  }
  func.func @transform_3(%arg0: i32) -> (i32, i32) {
    %c0_i32 = arith.constant 0 : i32
    %c0_i32_0 = arith.constant 0 : i32
    %c0_i32_1 = arith.constant 0 : i32
    return %c0_i32, %c0_i32_0 : i32, i32
  }
  func.func @transform_4(%arg0: i32) -> (i32, i32) {
    %c0_i32 = arith.constant 0 : i32
    %c0_i32_0 = arith.constant 0 : i32
    %c0_i32_1 = arith.constant 0 : i32
    return %c0_i32, %c0_i32_0 : i32, i32
  }
  func.func @transform_5(%arg0: i32) -> (i32, i32) {
    %c0_i32 = arith.constant 0 : i32
    %c0_i32_0 = arith.constant 0 : i32
    %c0_i32_1 = arith.constant 0 : i32
    return %c0_i32, %c0_i32_0 : i32, i32
  }
  func.func @transform_6(%arg0: i32) -> (i32, i32) {
    %c0_i32 = arith.constant 0 : i32
    %c0_i32_0 = arith.constant 0 : i32
    %c0_i32_1 = arith.constant 0 : i32
    return %c0_i32, %c0_i32_0 : i32, i32
  }
  func.func @transform_7(%arg0: i32) -> (i32, i32) {
    %c0_i32 = arith.constant 0 : i32
    %c0_i32_0 = arith.constant 0 : i32
    %c0_i32_1 = arith.constant 0 : i32
    return %c0_i32, %c0_i32_0 : i32, i32
  }
  func.func @transform_8(%arg0: i32) -> (i32, i32) {
    %c0_i32 = arith.constant 0 : i32
    %c0_i32_0 = arith.constant 0 : i32
    %c0_i32_1 = arith.constant 0 : i32
    return %c0_i32, %c0_i32_0 : i32, i32
  }
  func.func @transform_9(%arg0: i32) -> (i32, i32) {
    %c0_i32 = arith.constant 0 : i32
    %c0_i32_0 = arith.constant 0 : i32
    return %arg0, %c0_i32 : i32, i32
  }
  func.func @transform_10(%arg0: i32) -> (i32, i32) {
    %c0_i32 = arith.constant 0 : i32
    %c0_i32_0 = arith.constant 0 : i32
    return %arg0, %c0_i32 : i32, i32
  }
}

</mosaic_0001>

<llo_original>
// kernel: bert_base_cased_forward.7
$region0: #{bert_base_cased_forward.7}
  #allocation0 [shape = 'u32[]', space=smem, size = 0x4, offset = 0x4, fixed_abs, tag = 'smem constant byte address 0x4 - core index']
  #allocation1 [shape = 'u32[72,128]{1,0:T(1,128)}', space=vmem, size = 0x9000, scoped, tag = 'internal scratch']
  %s0 = inlined_call_operand.vmem [shape: f32[16,128], index: 0, kind: input, shape index: {}]
  %s1 = inlined_call_operand.vmem [shape: f32[1,128], index: 1, kind: input, shape index: {}]
  %s2 = inlined_call_operand.vmem [shape: f32[1,128], index: 2, kind: input, shape index: {}]
  %s3 = inlined_call_operand.vmem [shape: bf16[16,128], index: 3, kind: output, shape index: {}]
  %s4 = sld [smem:[#allocation0]]
  $region45: #{bert_base_cased_forward.7} parent=0
    _
  %s6 = ssub.s32 1, %s4
  %s7 = scalar_select 0, %s6, %s4
  loop: start=0, step=1, limit=4
  $region2: #{bert_base_cased_forward.7} parent=0 // loop_pre_header
    _
  $region3: #{bert_base_cased_forward.7} parent=0 // loop_header
    %s9 = sphi 0, %s13
    %p10 = scmp.ge.s32.totalorder %s9, 4
    %s19 = sphi 0, %s21
    %s22 = sphi 0, %s19
    %s23 = sphi 0, %s22
    %s39 = sphi 0, %s23
    %s43 = sphi 0, %s43
    %s45 = sphi 0, %s43
    %s46 = sphi 0, %s45
    %s60 = sphi 0, %s46
    %s64 = sphi 0, %s64
    %s66 = sphi 0, %s64
    %s67 = sphi 0, %s66
    %s81 = sphi 0, %s67
    %s87 = sphi 0, %s89
    %s90 = sphi 0, %s87
    %s91 = sphi 0, %s90
    %s107 = sphi 0, %s91
  $region4: #{bert_base_cased_forward.7} parent=0 // loop_header_branch
    %12 = sbr.rel (%p10) target = $region8
  $region5: #{bert_base_cased_forward.7} parent=0 // loop_body
    %s14 = ssub.s32 %s9, 1
    %s15 = ssub.s32 %s9, 2
    %s16 = sadd.s32 %s9, 1
    %s17 = ssub.s32 %s9, %s16
    %p18 = scmp.eq.s32.totalorder %s17, 0
    %s20 = sadd.s32 %s19, 1
    %s21 = scalar_select %p18, %s19, %s20
    %p24 = pneg %p18
    %p25 = scmp.eq.s32.totalorder %s9, 1
    %p26 = por %p24, %p25
    %p27 = scmp.ne.s32.totalorder %s19, %s22
    %p28 = scmp.eq.s32.totalorder %s9, 0
    %p29 = por %p27, %p28
    %p30 = scmp.ne.s32.totalorder %s19, %s22
    %p31 = scmp.eq.s32.totalorder %s14, 1
    %p32 = por %p30, %p31
    %p33 = scmp.ne.s32.totalorder %s22, %s23
    %p34 = scmp.eq.s32.totalorder %s14, 0
    %p35 = por %p33, %p34
    %p36 = scmp.ne.s32.totalorder %s22, %s23
    %p37 = scmp.eq.s32.totalorder %s15, 1
    %p38 = por %p36, %p37
    %p40 = scmp.ne.s32.totalorder %s23, %s39
    %p41 = scmp.eq.s32.totalorder %s15, 0
    %p42 = por %p40, %p41
    %s44 = sadd.s32 %s43, 1
    %p47 = scmp.eq.s32.totalorder %s9, 1
    %p48 = scmp.ne.s32.totalorder %s43, %s45
    %p49 = scmp.eq.s32.totalorder %s9, 0
    %p50 = por %p48, %p49
    %p51 = scmp.ne.s32.totalorder %s43, %s45
    %p52 = scmp.eq.s32.totalorder %s14, 1
    %p53 = por %p51, %p52
    %p54 = scmp.ne.s32.totalorder %s45, %s46
    %p55 = scmp.eq.s32.totalorder %s14, 0
    %p56 = por %p54, %p55
    %p57 = scmp.ne.s32.totalorder %s45, %s46
    %p58 = scmp.eq.s32.totalorder %s15, 1
    %p59 = por %p57, %p58
    %p61 = scmp.ne.s32.totalorder %s46, %s60
    %p62 = scmp.eq.s32.totalorder %s15, 0
    %p63 = por %p61, %p62
    %s65 = sadd.s32 %s64, 1
    %p68 = scmp.eq.s32.totalorder %s9, 1
    %p69 = scmp.ne.s32.totalorder %s64, %s66
    %p70 = scmp.eq.s32.totalorder %s9, 0
    %p71 = por %p69, %p70
    %p72 = scmp.ne.s32.totalorder %s64, %s66
    %p73 = scmp.eq.s32.totalorder %s14, 1
    %p74 = por %p72, %p73
    %p75 = scmp.ne.s32.totalorder %s66, %s67
    %p76 = scmp.eq.s32.totalorder %s14, 0
    %p77 = por %p75, %p76
    %p78 = scmp.ne.s32.totalorder %s66, %s67
    %p79 = scmp.eq.s32.totalorder %s15, 1
    %p80 = por %p78, %p79
    %p82 = scmp.ne.s32.totalorder %s67, %s81
    %p83 = scmp.eq.s32.totalorder %s15, 0
    %p84 = por %p82, %p83
    %s85 = ssub.s32 %s9, %s16
    %p86 = scmp.eq.s32.totalorder %s85, 0
    %s88 = sadd.s32 %s87, 1
    %s89 = scalar_select %p86, %s87, %s88
    %p92 = pneg %p86
    %p93 = scmp.eq.s32.totalorder %s9, 1
    %p94 = por %p92, %p93
    %p95 = scmp.ne.s32.totalorder %s87, %s90
    %p96 = scmp.eq.s32.totalorder %s9, 0
    %p97 = por %p95, %p96
    %p98 = scmp.ne.s32.totalorder %s87, %s90
    %p99 = scmp.eq.s32.totalorder %s14, 1
    %p100 = por %p98, %p99
    %p101 = scmp.ne.s32.totalorder %s90, %s91
    %p102 = scmp.eq.s32.totalorder %s14, 0
    %p103 = por %p101, %p102
    %p104 = scmp.ne.s32.totalorder %s90, %s91
    %p105 = scmp.eq.s32.totalorder %s15, 1
    %p106 = por %p104, %p105
    %p108 = scmp.ne.s32.totalorder %s91, %s107
    %p109 = scmp.eq.s32.totalorder %s15, 0
    %p110 = por %p108, %p109
    %p111 = scmp.le.s32.totalorder 1, %s9
    %p112 = scmp.lt.s32.totalorder %s9, 3
    %p113 = pnand %p111, %p112
    %p114 = pneg %p113
    // Predicated region
    $region9: #{bert_base_cased_forward.7} parent=5 // pred_check
      _
    $region10: #{bert_base_cased_forward.7} parent=5 // pred_check_branch
      %116 = sbr.rel (%p113) target = $region12
    $region11: #{bert_base_cased_forward.7} parent=5 // pred_region
      %s117 = ssub.s32 %s9, 1
      // Predicated region
      $region13: #{bert_base_cased_forward.7} parent=11 // pred_check
        %p118 = pneg %p56
      $region14: #{bert_base_cased_forward.7} parent=11 // pred_check_branch
        %120 = sbr.rel (%p118) target = $region16
      $region15: #{bert_base_cased_forward.7} parent=11 // pred_region
        _
      $region16: #{bert_base_cased_forward.7} parent=11 // pred_fallthru
        _
      // Predicated region
      $region17: #{bert_base_cased_forward.7} parent=11 // pred_check
        %p121 = pneg %p77
      $region18: #{bert_base_cased_forward.7} parent=11 // pred_check_branch
        %123 = sbr.rel (%p121) target = $region20
      $region19: #{bert_base_cased_forward.7} parent=11 // pred_region
        _
      $region20: #{bert_base_cased_forward.7} parent=11 // pred_fallthru
        _
    $region12: #{bert_base_cased_forward.7} parent=5 // pred_fallthru
      _
    %p124 = scmp.lt.s32.totalorder %s9, 2
    // Predicated region
    $region21: #{bert_base_cased_forward.7} parent=5 // pred_check
      %p125 = pneg %p124
    $region22: #{bert_base_cased_forward.7} parent=5 // pred_check_branch
      %127 = sbr.rel (%p125) target = $region24
    $region23: #{bert_base_cased_forward.7} parent=5 // pred_region
      // Predicated region
      $region25: #{bert_base_cased_forward.7} parent=23 // pred_check
        %p128 = pneg %p29
      $region26: #{bert_base_cased_forward.7} parent=23 // pred_check_branch
        %130 = sbr.rel (%p128) target = $region28
      $region27: #{bert_base_cased_forward.7} parent=23 // pred_region
        %p131 = scmp.lt.s32.totalorder %s9, 1
        %s132 = scalar_select %p131, %s9, 1
        %s133 = smul.addr %s132, 8
        %s134 = scalar_lea.vmem %s0, %s133
      $region28: #{bert_base_cased_forward.7} parent=23 // pred_fallthru
        _
    $region24: #{bert_base_cased_forward.7} parent=5 // pred_fallthru
      _
    %p135 = scmp.le.s32.totalorder 1, %s9
    %p136 = scmp.lt.s32.totalorder %s9, 3
    %p137 = pnand %p135, %p136
    %p138 = pneg %p137
    // Predicated region
    $region29: #{bert_base_cased_forward.7} parent=5 // pred_check
      _
    $region30: #{bert_base_cased_forward.7} parent=5 // pred_check_branch
      %140 = sbr.rel (%p137) target = $region32
    $region31: #{bert_base_cased_forward.7} parent=5 // pred_region
      %s141 = ssub.s32 %s9, 1
      %p142 = scmp.lt.s32.totalorder %s14, 1
      %s143 = scalar_select %p142, %s14, 1
      %s144 = smul.addr %s143, 8
      %s145 = scalar_lea.vmem %s0, %s144
      %p146 = pneg %p35
      %p147 = pneg %p32
      %p148 = pneg %p56
      %p149 = pneg %p53
      %p150 = pneg %p77
      %p151 = pneg %p74
      %p152 = pneg %p103
      %p153 = pneg %p100
      %p154 = scmp.lt.s32.totalorder %s14, 1
      %s155 = scalar_select %p154, %s14, 1
      %s156 = smul.addr %s155, 4
      %s157 = scalar_lea.vmem %s3, %s156
      %p158 = scmp.lt.s32.totalorder %s14, 1
      %s159 = scalar_select %p158, %s14, 1
      %s160 = smul.addr %s159, 8
      %s161 = scalar_lea.vmem %s0, %s160
      %p162 = scmp.lt.s32.totalorder %s14, 1
      %s163 = scalar_select %p162, %s14, 1
      %s164 = smul.addr %s163, 4
      %s165 = scalar_lea.vmem %s3, %s164
      %v166 = vld [vmem:[%s161] sm:$0xff]
      %167 = vadd.xlane.f32.xlu0 %v166
      %v168 = vpop.xlane.xlu0 %167
      %v169 = vrcp.pop 128.0
      %v170 = vmul.f32 128.0, %v169
      %v171 = vsub.f32 1.0, %v170
      %v172 = vmul.f32 %v169, %v171
      %v173 = vadd.f32 %v169, %v172
      %vm174 = vweird.f32 %v169
      %v175 = vsel %vm174, %v169, %v173
      %v176 = vmul.f32 %v168, %v175
      %v177 = vsub.f32 %v166, %v176
      %v178 = vmul.f32 %v177, %v177
      %179 = vadd.xlane.f32.xlu0 %v178
      %v180 = vpop.xlane.xlu0 %179
      %v181 = vmul.f32 %v180, %v175
      %v182 = vadd.f32 %v181, 1e-12
      %v183 = vrsqrt.pop %v182
      %v184 = vmul.f32 %v183, %v182
      %v185 = vmul.f32 %v184, %v183
      %v186 = vmul.f32 0.5, %v185
      %v187 = vsub.f32 1.5, %v186
      %v188 = vmul.f32 %v183, %v187
      %vm189 = vweird.f32 %v182
      %vm190 = vweird.f32 %v183
      %vm191 = vmor %vm189, %vm190
      %v192 = vsel %vm191, %v183, %v188
      %v193 = vmul.f32 %v177, %v192
      %v194 = vld [vmem:[%s1] sm:$0x1]
      %v196 = vperm.slane %v194, 0
      %v198 = vmul.f32 %v193, %v196
      %v199 = vld [vmem:[%s2] sm:$0x1]
      %v201 = vperm.slane %v199, 0
      %v203 = vadd.f32 %v198, %v201
      %v204 = vpack.c.bf16 %v203, %v203
      %205 = vst [vmem:[%s165] sm:$0xf] %v204
      %p206 = scmp.lt.s32.totalorder %s14, 1
      %s207 = scalar_select %p206, %s14, 1
      %s208 = smul.addr %s207, 4
      %s209 = scalar_lea.vmem %s3, %s208
      // Predicated region
      $region33: #{bert_base_cased_forward.7} parent=31 // pred_check
        %p210 = pneg %p100
      $region34: #{bert_base_cased_forward.7} parent=31 // pred_check_branch
        %212 = sbr.rel (%p210) target = $region36
      $region35: #{bert_base_cased_forward.7} parent=31 // pred_region
        _
      $region36: #{bert_base_cased_forward.7} parent=31 // pred_fallthru
        _
    $region32: #{bert_base_cased_forward.7} parent=5 // pred_fallthru
      _
    %p213 = scmp.le.s32.totalorder 2, %s9
    // Predicated region
    $region37: #{bert_base_cased_forward.7} parent=5 // pred_check
      %p214 = pneg %p213
    $region38: #{bert_base_cased_forward.7} parent=5 // pred_check_branch
      %216 = sbr.rel (%p214) target = $region40
    $region39: #{bert_base_cased_forward.7} parent=5 // pred_region
      %s217 = ssub.s32 %s9, 2
      // Predicated region
      $region41: #{bert_base_cased_forward.7} parent=39 // pred_check
        %p218 = pneg %p106
      $region42: #{bert_base_cased_forward.7} parent=39 // pred_check_branch
        %220 = sbr.rel (%p218) target = $region44
      $region43: #{bert_base_cased_forward.7} parent=39 // pred_region
        %p221 = scmp.lt.s32.totalorder %s15, 1
        %s222 = scalar_select %p221, %s15, 1
        %s223 = smul.addr %s222, 4
        %s224 = scalar_lea.vmem %s3, %s223
      $region44: #{bert_base_cased_forward.7} parent=39 // pred_fallthru
        _
    $region40: #{bert_base_cased_forward.7} parent=5 // pred_fallthru
      _
  $region6: #{bert_base_cased_forward.7} parent=0 // loop_footer
    %s13 = sadd.s32 1, %s9
  $region7: #{bert_base_cased_forward.7} parent=0 // loop_footer_branch
    %8 = sbr.rel target = $region3
  $region8: #{bert_base_cased_forward.7} parent=0 // loop_exit
    _

// kernel: bert_base_cased_forward.9
$region0: #{bert_base_cased_forward.9}
  #allocation0 [shape = 'u32[]', space=smem, size = 0x4, offset = 0x4, fixed_abs, tag = 'smem constant byte address 0x4 - core index']
  #allocation1 [shape = 'u32[72,128]{1,0:T(1,128)}', space=vmem, size = 0x9000, scoped, tag = 'internal scratch']
  %s0 = inlined_call_operand.vmem [shape: bf16[16,128], index: 0, kind: input, shape index: {}]
  %s1 = inlined_call_operand.vmem [shape: bf16[128,128], index: 1, kind: input, shape index: {}]
  %s2 = inlined_call_operand.vmem [shape: f32[1,128], index: 2, kind: input, shape index: {}]
  %s3 = inlined_call_operand.vmem [shape: bf16[16,128], index: 3, kind: input, shape index: {}]
  %s4 = inlined_call_operand.vmem [shape: f32[1,128], index: 4, kind: input, shape index: {}]
  %s5 = inlined_call_operand.vmem [shape: f32[1,128], index: 5, kind: input, shape index: {}]
  %s6 = inlined_call_operand.vmem [shape: bf16[16,128], index: 6, kind: output, shape index: {}]
  %s7 = sld [smem:[#allocation0]]
  $region57: #{bert_base_cased_forward.9} parent=0
    _
  %s9 = ssub.s32 1, %s7
  %s10 = scalar_select 0, %s9, %s7
  loop: start=0, step=1, limit=4
  $region2: #{bert_base_cased_forward.9} parent=0 // loop_pre_header
    _
  $region3: #{bert_base_cased_forward.9} parent=0 // loop_header
    %s12 = sphi 0, %s16
    %p13 = scmp.ge.s32.totalorder %s12, 4
    %s22 = sphi 0, %s24
    %s25 = sphi 0, %s22
    %s26 = sphi 0, %s25
    %s42 = sphi 0, %s26
    %s46 = sphi 0, %s46
    %s48 = sphi 0, %s46
    %s49 = sphi 0, %s48
    %s63 = sphi 0, %s49
    %s67 = sphi 0, %s67
    %s69 = sphi 0, %s67
    %s70 = sphi 0, %s69
    %s84 = sphi 0, %s70
    %s90 = sphi 0, %s92
    %s93 = sphi 0, %s90
    %s94 = sphi 0, %s93
    %s110 = sphi 0, %s94
    %s114 = sphi 0, %s114
    %s116 = sphi 0, %s114
    %s117 = sphi 0, %s116
    %s131 = sphi 0, %s117
    %s135 = sphi 0, %s135
    %s137 = sphi 0, %s135
    %s138 = sphi 0, %s137
    %s152 = sphi 0, %s138
    %s158 = sphi 0, %s160
    %s161 = sphi 0, %s158
    %s162 = sphi 0, %s161
    %s178 = sphi 0, %s162
  $region4: #{bert_base_cased_forward.9} parent=0 // loop_header_branch
    %15 = sbr.rel (%p13) target = $region8
  $region5: #{bert_base_cased_forward.9} parent=0 // loop_body
    %s17 = ssub.s32 %s12, 1
    %s18 = ssub.s32 %s12, 2
    %s19 = sadd.s32 %s12, 1
    %s20 = ssub.s32 %s12, %s19
    %p21 = scmp.eq.s32.totalorder %s20, 0
    %s23 = sadd.s32 %s22, 1
    %s24 = scalar_select %p21, %s22, %s23
    %p27 = pneg %p21
    %p28 = scmp.eq.s32.totalorder %s12, 1
    %p29 = por %p27, %p28
    %p30 = scmp.ne.s32.totalorder %s22, %s25
    %p31 = scmp.eq.s32.totalorder %s12, 0
    %p32 = por %p30, %p31
    %p33 = scmp.ne.s32.totalorder %s22, %s25
    %p34 = scmp.eq.s32.totalorder %s17, 1
    %p35 = por %p33, %p34
    %p36 = scmp.ne.s32.totalorder %s25, %s26
    %p37 = scmp.eq.s32.totalorder %s17, 0
    %p38 = por %p36, %p37
    %p39 = scmp.ne.s32.totalorder %s25, %s26
    %p40 = scmp.eq.s32.totalorder %s18, 1
    %p41 = por %p39, %p40
    %p43 = scmp.ne.s32.totalorder %s26, %s42
    %p44 = scmp.eq.s32.totalorder %s18, 0
    %p45 = por %p43, %p44
    %s47 = sadd.s32 %s46, 1
    %p50 = scmp.eq.s32.totalorder %s12, 1
    %p51 = scmp.ne.s32.totalorder %s46, %s48
    %p52 = scmp.eq.s32.totalorder %s12, 0
    %p53 = por %p51, %p52
    %p54 = scmp.ne.s32.totalorder %s46, %s48
    %p55 = scmp.eq.s32.totalorder %s17, 1
    %p56 = por %p54, %p55
    %p57 = scmp.ne.s32.totalorder %s48, %s49
    %p58 = scmp.eq.s32.totalorder %s17, 0
    %p59 = por %p57, %p58
    %p60 = scmp.ne.s32.totalorder %s48, %s49
    %p61 = scmp.eq.s32.totalorder %s18, 1
    %p62 = por %p60, %p61
    %p64 = scmp.ne.s32.totalorder %s49, %s63
    %p65 = scmp.eq.s32.totalorder %s18, 0
    %p66 = por %p64, %p65
    %s68 = sadd.s32 %s67, 1
    %p71 = scmp.eq.s32.totalorder %s12, 1
    %p72 = scmp.ne.s32.totalorder %s67, %s69
    %p73 = scmp.eq.s32.totalorder %s12, 0
    %p74 = por %p72, %p73
    %p75 = scmp.ne.s32.totalorder %s67, %s69
    %p76 = scmp.eq.s32.totalorder %s17, 1
    %p77 = por %p75, %p76
    %p78 = scmp.ne.s32.totalorder %s69, %s70
    %p79 = scmp.eq.s32.totalorder %s17, 0
    %p80 = por %p78, %p79
    %p81 = scmp.ne.s32.totalorder %s69, %s70
    %p82 = scmp.eq.s32.totalorder %s18, 1
    %p83 = por %p81, %p82
    %p85 = scmp.ne.s32.totalorder %s70, %s84
    %p86 = scmp.eq.s32.totalorder %s18, 0
    %p87 = por %p85, %p86
    %s88 = ssub.s32 %s12, %s19
    %p89 = scmp.eq.s32.totalorder %s88, 0
    %s91 = sadd.s32 %s90, 1
    %s92 = scalar_select %p89, %s90, %s91
    %p95 = pneg %p89
    %p96 = scmp.eq.s32.totalorder %s12, 1
    %p97 = por %p95, %p96
    %p98 = scmp.ne.s32.totalorder %s90, %s93
    %p99 = scmp.eq.s32.totalorder %s12, 0
    %p100 = por %p98, %p99
    %p101 = scmp.ne.s32.totalorder %s90, %s93
    %p102 = scmp.eq.s32.totalorder %s17, 1
    %p103 = por %p101, %p102
    %p104 = scmp.ne.s32.totalorder %s93, %s94
    %p105 = scmp.eq.s32.totalorder %s17, 0
    %p106 = por %p104, %p105
    %p107 = scmp.ne.s32.totalorder %s93, %s94
    %p108 = scmp.eq.s32.totalorder %s18, 1
    %p109 = por %p107, %p108
    %p111 = scmp.ne.s32.totalorder %s94, %s110
    %p112 = scmp.eq.s32.totalorder %s18, 0
    %p113 = por %p111, %p112
    %s115 = sadd.s32 %s114, 1
    %p118 = scmp.eq.s32.totalorder %s12, 1
    %p119 = scmp.ne.s32.totalorder %s114, %s116
    %p120 = scmp.eq.s32.totalorder %s12, 0
    %p121 = por %p119, %p120
    %p122 = scmp.ne.s32.totalorder %s114, %s116
    %p123 = scmp.eq.s32.totalorder %s17, 1
    %p124 = por %p122, %p123
    %p125 = scmp.ne.s32.totalorder %s116, %s117
    %p126 = scmp.eq.s32.totalorder %s17, 0
    %p127 = por %p125, %p126
    %p128 = scmp.ne.s32.totalorder %s116, %s117
    %p129 = scmp.eq.s32.totalorder %s18, 1
    %p130 = por %p128, %p129
    %p132 = scmp.ne.s32.totalorder %s117, %s131
    %p133 = scmp.eq.s32.totalorder %s18, 0
    %p134 = por %p132, %p133
    %s136 = sadd.s32 %s135, 1
    %p139 = scmp.eq.s32.totalorder %s12, 1
    %p140 = scmp.ne.s32.totalorder %s135, %s137
    %p141 = scmp.eq.s32.totalorder %s12, 0
    %p142 = por %p140, %p141
    %p143 = scmp.ne.s32.totalorder %s135, %s137
    %p144 = scmp.eq.s32.totalorder %s17, 1
    %p145 = por %p143, %p144
    %p146 = scmp.ne.s32.totalorder %s137, %s138
    %p147 = scmp.eq.s32.totalorder %s17, 0
    %p148 = por %p146, %p147
    %p149 = scmp.ne.s32.totalorder %s137, %s138
    %p150 = scmp.eq.s32.totalorder %s18, 1
    %p151 = por %p149, %p150
    %p153 = scmp.ne.s32.totalorder %s138, %s152
    %p154 = scmp.eq.s32.totalorder %s18, 0
    %p155 = por %p153, %p154
    %s156 = ssub.s32 %s12, %s19
    %p157 = scmp.eq.s32.totalorder %s156, 0
    %s159 = sadd.s32 %s158, 1
    %s160 = scalar_select %p157, %s158, %s159
    %p163 = pneg %p157
    %p164 = scmp.eq.s32.totalorder %s12, 1
    %p165 = por %p163, %p164
    %p166 = scmp.ne.s32.totalorder %s158, %s161
    %p167 = scmp.eq.s32.totalorder %s12, 0
    %p168 = por %p166, %p167
    %p169 = scmp.ne.s32.totalorder %s158, %s161
    %p170 = scmp.eq.s32.totalorder %s17, 1
    %p171 = por %p169, %p170
    %p172 = scmp.ne.s32.totalorder %s161, %s162
    %p173 = scmp.eq.s32.totalorder %s17, 0
    %p174 = por %p172, %p173
    %p175 = scmp.ne.s32.totalorder %s161, %s162
    %p176 = scmp.eq.s32.totalorder %s18, 1
    %p177 = por %p175, %p176
    %p179 = scmp.ne.s32.totalorder %s162, %s178
    %p180 = scmp.eq.s32.totalorder %s18, 0
    %p181 = por %p179, %p180
    %p182 = scmp.le.s32.totalorder 1, %s12
    %p183 = scmp.lt.s32.totalorder %s12, 3
    %p184 = pnand %p182, %p183
    %p185 = pneg %p184
    // Predicated region
    $region9: #{bert_base_cased_forward.9} parent=5 // pred_check
      _
    $region10: #{bert_base_cased_forward.9} parent=5 // pred_check_branch
      %187 = sbr.rel (%p184) target = $region12
    $region11: #{bert_base_cased_forward.9} parent=5 // pred_region
      %s188 = ssub.s32 %s12, 1
      // Predicated region
      $region13: #{bert_base_cased_forward.9} parent=11 // pred_check
        %p189 = pneg %p59
      $region14: #{bert_base_cased_forward.9} parent=11 // pred_check_branch
        %191 = sbr.rel (%p189) target = $region16
      $region15: #{bert_base_cased_forward.9} parent=11 // pred_region
        _
      $region16: #{bert_base_cased_forward.9} parent=11 // pred_fallthru
        _
      // Predicated region
      $region17: #{bert_base_cased_forward.9} parent=11 // pred_check
        %p192 = pneg %p80
      $region18: #{bert_base_cased_forward.9} parent=11 // pred_check_branch
        %194 = sbr.rel (%p192) target = $region20
      $region19: #{bert_base_cased_forward.9} parent=11 // pred_region
        _
      $region20: #{bert_base_cased_forward.9} parent=11 // pred_fallthru
        _
      // Predicated region
      $region21: #{bert_base_cased_forward.9} parent=11 // pred_check
        %p195 = pneg %p127
      $region22: #{bert_base_cased_forward.9} parent=11 // pred_check_branch
        %197 = sbr.rel (%p195) target = $region24
      $region23: #{bert_base_cased_forward.9} parent=11 // pred_region
        _
      $region24: #{bert_base_cased_forward.9} parent=11 // pred_fallthru
        _
      // Predicated region
      $region25: #{bert_base_cased_forward.9} parent=11 // pred_check
        %p198 = pneg %p148
      $region26: #{bert_base_cased_forward.9} parent=11 // pred_check_branch
        %200 = sbr.rel (%p198) target = $region28
      $region27: #{bert_base_cased_forward.9} parent=11 // pred_region
        _
      $region28: #{bert_base_cased_forward.9} parent=11 // pred_fallthru
        _
    $region12: #{bert_base_cased_forward.9} parent=5 // pred_fallthru
      _
    %p201 = scmp.lt.s32.totalorder %s12, 2
    // Predicated region
    $region29: #{bert_base_cased_forward.9} parent=5 // pred_check
      %p202 = pneg %p201
    $region30: #{bert_base_cased_forward.9} parent=5 // pred_check_branch
      %204 = sbr.rel (%p202) target = $region32
    $region31: #{bert_base_cased_forward.9} parent=5 // pred_region
      // Predicated region
      $region33: #{bert_base_cased_forward.9} parent=31 // pred_check
        %p205 = pneg %p32
      $region34: #{bert_base_cased_forward.9} parent=31 // pred_check_branch
        %207 = sbr.rel (%p205) target = $region36
      $region35: #{bert_base_cased_forward.9} parent=31 // pred_region
        %p208 = scmp.lt.s32.totalorder %s12, 1
        %s209 = scalar_select %p208, %s12, 1
        %s210 = smul.addr %s209, 4
        %s211 = scalar_lea.vmem %s0, %s210
      $region36: #{bert_base_cased_forward.9} parent=31 // pred_fallthru
        _
      // Predicated region
      $region37: #{bert_base_cased_forward.9} parent=31 // pred_check
        %p212 = pneg %p100
      $region38: #{bert_base_cased_forward.9} parent=31 // pred_check_branch
        %214 = sbr.rel (%p212) target = $region40
      $region39: #{bert_base_cased_forward.9} parent=31 // pred_region
        %p215 = scmp.lt.s32.totalorder %s12, 1
        %s216 = scalar_select %p215, %s12, 1
        %s217 = smul.addr %s216, 4
        %s218 = scalar_lea.vmem %s3, %s217
      $region40: #{bert_base_cased_forward.9} parent=31 // pred_fallthru
        _
    $region32: #{bert_base_cased_forward.9} parent=5 // pred_fallthru
      _
    %p219 = scmp.le.s32.totalorder 1, %s12
    %p220 = scmp.lt.s32.totalorder %s12, 3
    %p221 = pnand %p219, %p220
    %p222 = pneg %p221
    // Predicated region
    $region41: #{bert_base_cased_forward.9} parent=5 // pred_check
      _
    $region42: #{bert_base_cased_forward.9} parent=5 // pred_check_branch
      %224 = sbr.rel (%p221) target = $region44
    $region43: #{bert_base_cased_forward.9} parent=5 // pred_region
      %s225 = ssub.s32 %s12, 1
      %p226 = scmp.lt.s32.totalorder %s17, 1
      %s227 = scalar_select %p226, %s17, 1
      %s228 = smul.addr %s227, 4
      %s229 = scalar_lea.vmem %s0, %s228
      %p230 = pneg %p38
      %p231 = pneg %p35
      %p232 = pneg %p59
      %p233 = pneg %p56
      %p234 = pneg %p80
      %p235 = pneg %p77
      %p236 = scmp.lt.s32.totalorder %s17, 1
      %s237 = scalar_select %p236, %s17, 1
      %s238 = smul.addr %s237, 4
      %s239 = scalar_lea.vmem %s3, %s238
      %p240 = pneg %p106
      %p241 = pneg %p103
      %p242 = pneg %p127
      %p243 = pneg %p124
      %p244 = pneg %p148
      %p245 = pneg %p145
      %p246 = pneg %p174
      %p247 = pneg %p171
      %p248 = scmp.lt.s32.totalorder %s17, 1
      %s249 = scalar_select %p248, %s17, 1
      %s250 = smul.addr %s249, 4
      %s251 = scalar_lea.vmem %s6, %s250
      %p252 = scmp.lt.s32.totalorder %s17, 1
      %s253 = scalar_select %p252, %s17, 1
      %s254 = smul.addr %s253, 4
      %s255 = scalar_lea.vmem %s0, %s254
      %p256 = scmp.lt.s32.totalorder %s17, 1
      %s257 = scalar_select %p256, %s17, 1
      %s258 = smul.addr %s257, 4
      %s259 = scalar_lea.vmem %s3, %s258
      %p260 = scmp.lt.s32.totalorder %s17, 1
      %s261 = scalar_select %p260, %s17, 1
      %s262 = smul.addr %s261, 4
      %s263 = scalar_lea.vmem %s6, %s262
      %v264 = vld [vmem:[%s255] sm:$0xf]
      %v265 = vld [vmem:[%s1] sm:$0xf]
      %v266 = vld [vmem:[%s1 + $0x4] sm:$0xf]
      %v267 = vld [vmem:[%s1 + $0x8] sm:$0xf]
      %v268 = vld [vmem:[%s1 + $0xc] sm:$0xf]
      %v269 = vld [vmem:[%s1 + $0x10] sm:$0xf]
      %v270 = vld [vmem:[%s1 + $0x14] sm:$0xf]
      %v271 = vld [vmem:[%s1 + $0x18] sm:$0xf]
      %v272 = vld [vmem:[%s1 + $0x1c] sm:$0xf]
      %v273 = vld [vmem:[%s1 + $0x20] sm:$0xf]
      %v274 = vld [vmem:[%s1 + $0x24] sm:$0xf]
      %v275 = vld [vmem:[%s1 + $0x28] sm:$0xf]
      %v276 = vld [vmem:[%s1 + $0x2c] sm:$0xf]
      %v277 = vld [vmem:[%s1 + $0x30] sm:$0xf]
      %v278 = vld [vmem:[%s1 + $0x34] sm:$0xf]
      %v279 = vld [vmem:[%s1 + $0x38] sm:$0xf]
      %v280 = vld [vmem:[%s1 + $0x3c] sm:$0xf]
      %v281 = vld [vmem:[%s2] sm:$0x1]
      %v283 = vperm.slane %v281, 0
      %v301 = vunpack.c.l.b16 %v265
      %v302 = vunpack.c.l.b16 %v266
      %v303 = vunpack.c.l.b16 %v267
      %v304 = vunpack.c.l.b16 %v268
      %v305 = vunpack.c.l.b16 %v269
      %v306 = vunpack.c.l.b16 %v270
      %v307 = vunpack.c.l.b16 %v271
      %v308 = vunpack.c.l.b16 %v272
      %v309 = vunpack.c.l.b16 %v273
      %v310 = vunpack.c.l.b16 %v274
      %v311 = vunpack.c.l.b16 %v275
      %v312 = vunpack.c.l.b16 %v276
      %v313 = vunpack.c.l.b16 %v277
      %v314 = vunpack.c.l.b16 %v278
      %v315 = vunpack.c.l.b16 %v279
      %v316 = vunpack.c.l.b16 %v280
      %v317 = vpack.c.b16 %v302, %v301
      %v318 = vpack.c.b16 %v304, %v303
      %v319 = vpack.c.b16 %v306, %v305
      %v320 = vpack.c.b16 %v308, %v307
      %v321 = vpack.c.b16 %v310, %v309
      %v322 = vpack.c.b16 %v312, %v311
      %v323 = vpack.c.b16 %v314, %v313
      %v324 = vpack.c.b16 %v316, %v315
      %333 = vmatpush.bf16.msra.mxu0 %v324
      %334 = vmatpush.bf16.msra.mxu0 %v323
      %335 = vmatpush.bf16.msra.mxu0 %v322
      %336 = vmatpush.bf16.msra.mxu0 %v321
      %337 = vmatpush.bf16.msra.mxu0 %v320
      %338 = vmatpush.bf16.msra.mxu0 %v319
      %339 = vmatpush.bf16.msra.mxu0 %v318
      %340 = vmatpush.bf16.msra.mxu0 %v317
      %341 = vmatmul.bf16.gmra.mxu0 %v264
      %v342 = vpop.f32.mrf.mxu0
      %v343 = vadd.f32 %v283, %v342
      %v344 = vpop.f32.mrf.mxu0
      %345 = vdwg.mxu0
      %v346 = vld [vmem:[%s259] sm:$0xf]
      %v347 = vunpack.c.l.bf16 %v346
      %v348 = vadd.f32 %v343, %v347
      %349 = vadd.xlane.f32.xlu0 %v348
      %v350 = vpop.xlane.xlu0 %349
      %v351 = vrcp.pop 128.0
      %v352 = vmul.f32 128.0, %v351
      %v353 = vsub.f32 1.0, %v352
      %v354 = vmul.f32 %v351, %v353
      %v355 = vadd.f32 %v351, %v354
      %vm356 = vweird.f32 %v351
      %v357 = vsel %vm356, %v351, %v355
      %v358 = vmul.f32 %v350, %v357
      %v359 = vsub.f32 %v348, %v358
      %v360 = vmul.f32 %v359, %v359
      %361 = vadd.xlane.f32.xlu0 %v360
      %v362 = vpop.xlane.xlu0 %361
      %v363 = vmul.f32 %v362, %v357
      %v364 = vadd.f32 %v363, 1e-12
      %v365 = vrsqrt.pop %v364
      %v366 = vmul.f32 %v365, %v364
      %v367 = vmul.f32 %v366, %v365
      %v368 = vmul.f32 0.5, %v367
      %v369 = vsub.f32 1.5, %v368
      %v370 = vmul.f32 %v365, %v369
      %vm371 = vweird.f32 %v364
      %vm372 = vweird.f32 %v365
      %vm373 = vmor %vm371, %vm372
      %v374 = vsel %vm373, %v365, %v370
      %v375 = vmul.f32 %v359, %v374
      %v376 = vld [vmem:[%s4] sm:$0x1]
      %v378 = vperm.slane %v376, 0
      %v380 = vmul.f32 %v375, %v378
      %v381 = vld [vmem:[%s5] sm:$0x1]
      %v383 = vperm.slane %v381, 0
      %v385 = vadd.f32 %v380, %v383
      %v386 = vpack.c.bf16 %v385, %v385
      %387 = vst [vmem:[%s263] sm:$0xf] %v386
      %p388 = scmp.lt.s32.totalorder %s17, 1
      %s389 = scalar_select %p388, %s17, 1
      %s390 = smul.addr %s389, 4
      %s391 = scalar_lea.vmem %s6, %s390
      // Predicated region
      $region45: #{bert_base_cased_forward.9} parent=43 // pred_check
        %p392 = pneg %p171
      $region46: #{bert_base_cased_forward.9} parent=43 // pred_check_branch
        %394 = sbr.rel (%p392) target = $region48
      $region47: #{bert_base_cased_forward.9} parent=43 // pred_region
        _
      $region48: #{bert_base_cased_forward.9} parent=43 // pred_fallthru
        _
    $region44: #{bert_base_cased_forward.9} parent=5 // pred_fallthru
      _
    %p395 = scmp.le.s32.totalorder 2, %s12
    // Predicated region
    $region49: #{bert_base_cased_forward.9} parent=5 // pred_check
      %p396 = pneg %p395
    $region50: #{bert_base_cased_forward.9} parent=5 // pred_check_branch
      %398 = sbr.rel (%p396) target = $region52
    $region51: #{bert_base_cased_forward.9} parent=5 // pred_region
      %s399 = ssub.s32 %s12, 2
      // Predicated region
      $region53: #{bert_base_cased_forward.9} parent=51 // pred_check
        %p400 = pneg %p177
      $region54: #{bert_base_cased_forward.9} parent=51 // pred_check_branch
        %402 = sbr.rel (%p400) target = $region56
      $region55: #{bert_base_cased_forward.9} parent=51 // pred_region
        %p403 = scmp.lt.s32.totalorder %s18, 1
        %s404 = scalar_select %p403, %s18, 1
        %s405 = smul.addr %s404, 4
        %s406 = scalar_lea.vmem %s6, %s405
      $region56: #{bert_base_cased_forward.9} parent=51 // pred_fallthru
        _
    $region52: #{bert_base_cased_forward.9} parent=5 // pred_fallthru
      _
  $region6: #{bert_base_cased_forward.9} parent=0 // loop_footer
    %s16 = sadd.s32 1, %s12
  $region7: #{bert_base_cased_forward.9} parent=0 // loop_footer_branch
    %11 = sbr.rel target = $region3
  $region8: #{bert_base_cased_forward.9} parent=0 // loop_exit
    _

// kernel: bert_base_cased_forward.8
$region0: #{bert_base_cased_forward.8}
  #allocation0 [shape = 'u32[]', space=smem, size = 0x4, offset = 0x4, fixed_abs, tag = 'smem constant byte address 0x4 - core index']
  #allocation1 [shape = 'u32[72,128]{1,0:T(1,128)}', space=vmem, size = 0x9000, scoped, tag = 'internal scratch']
  %s0 = inlined_call_operand.vmem [shape: bf16[2,8,128], index: 0, kind: input, shape index: {}]
  %s1 = inlined_call_operand.hbm [shape: bf16[128,384], index: 1, kind: input, shape index: {}]
  %s2 = inlined_call_operand.vmem [shape: f32[1,384], index: 2, kind: input, shape index: {}]
  %s3 = inlined_call_operand.vmem [shape: f32[2,1,8], index: 3, kind: input, shape index: {}]
  %s4 = inlined_call_operand.vmem [shape: bf16[2,8,128], index: 4, kind: output, shape index: {}]
  %s5 = sld [smem:[#allocation0]]
  $region53: #{bert_base_cased_forward.8} parent=0
    _
  %s7 = ssub.s32 1, %s5
  %s8 = scalar_select 0, %s7, %s5
  $region1: #{bert_base_cased_forward.8} parent=0
    #allocation2 [shape = 'u8[98304]{0}', space=vmem, size = 0x18000, scoped, tag = 'input window, operand 1, single buffered']
    #allocation3 [shape = 's32[2]{0}', space=sflag, size = 0x8, scoped, tag = 'scoped memory for bert_base_cased_forward.8']
    %9 = vsyncpa [#allocation3], 0
    loop: start=0, step=1, limit=4
    $region2: #{bert_base_cased_forward.8} parent=1 // loop_pre_header
      _
    $region3: #{bert_base_cased_forward.8} parent=1 // loop_header
      %s11 = sphi 0, %s15
      %p12 = scmp.ge.s32.totalorder %s11, 4
      %s21 = sphi 0, %s23
      %s24 = sphi 0, %s21
      %s25 = sphi 0, %s24
      %s41 = sphi 0, %s25
      %s45 = sphi 0, %s45
      %s47 = sphi 0, %s45
      %s48 = sphi 0, %s47
      %s62 = sphi 0, %s48
      %s66 = sphi 0, %s66
      %s68 = sphi 0, %s66
      %s69 = sphi 0, %s68
      %s83 = sphi 0, %s69
      %s89 = sphi 0, %s91
      %s92 = sphi 0, %s89
      %s93 = sphi 0, %s92
      %s109 = sphi 0, %s93
      %s115 = sphi 0, %s117
      %s118 = sphi 0, %s115
      %s119 = sphi 0, %s118
      %s135 = sphi 0, %s119
    $region4: #{bert_base_cased_forward.8} parent=1 // loop_header_branch
      %14 = sbr.rel (%p12) target = $region8
    $region5: #{bert_base_cased_forward.8} parent=1 // loop_body
      %s16 = ssub.s32 %s11, 1
      %s17 = ssub.s32 %s11, 2
      %s18 = sadd.s32 %s11, 1
      %s19 = ssub.s32 %s11, %s18
      %p20 = scmp.eq.s32.totalorder %s19, 0
      %s22 = sadd.s32 %s21, 1
      %s23 = scalar_select %p20, %s21, %s22
      %p26 = pneg %p20
      %p27 = scmp.eq.s32.totalorder %s11, 1
      %p28 = por %p26, %p27
      %p29 = scmp.ne.s32.totalorder %s21, %s24
      %p30 = scmp.eq.s32.totalorder %s11, 0
      %p31 = por %p29, %p30
      %p32 = scmp.ne.s32.totalorder %s21, %s24
      %p33 = scmp.eq.s32.totalorder %s16, 1
      %p34 = por %p32, %p33
      %p35 = scmp.ne.s32.totalorder %s24, %s25
      %p36 = scmp.eq.s32.totalorder %s16, 0
      %p37 = por %p35, %p36
      %p38 = scmp.ne.s32.totalorder %s24, %s25
      %p39 = scmp.eq.s32.totalorder %s17, 1
      %p40 = por %p38, %p39
      %p42 = scmp.ne.s32.totalorder %s25, %s41
      %p43 = scmp.eq.s32.totalorder %s17, 0
      %p44 = por %p42, %p43
      %s46 = sadd.s32 %s45, 1
      %p49 = scmp.eq.s32.totalorder %s11, 1
      %p50 = scmp.ne.s32.totalorder %s45, %s47
      %p51 = scmp.eq.s32.totalorder %s11, 0
      %p52 = por %p50, %p51
      %p53 = scmp.ne.s32.totalorder %s45, %s47
      %p54 = scmp.eq.s32.totalorder %s16, 1
      %p55 = por %p53, %p54
      %p56 = scmp.ne.s32.totalorder %s47, %s48
      %p57 = scmp.eq.s32.totalorder %s16, 0
      %p58 = por %p56, %p57
      %p59 = scmp.ne.s32.totalorder %s47, %s48
      %p60 = scmp.eq.s32.totalorder %s17, 1
      %p61 = por %p59, %p60
      %p63 = scmp.ne.s32.totalorder %s48, %s62
      %p64 = scmp.eq.s32.totalorder %s17, 0
      %p65 = por %p63, %p64
      %s67 = sadd.s32 %s66, 1
      %p70 = scmp.eq.s32.totalorder %s11, 1
      %p71 = scmp.ne.s32.totalorder %s66, %s68
      %p72 = scmp.eq.s32.totalorder %s11, 0
      %p73 = por %p71, %p72
      %p74 = scmp.ne.s32.totalorder %s66, %s68
      %p75 = scmp.eq.s32.totalorder %s16, 1
      %p76 = por %p74, %p75
      %p77 = scmp.ne.s32.totalorder %s68, %s69
      %p78 = scmp.eq.s32.totalorder %s16, 0
      %p79 = por %p77, %p78
      %p80 = scmp.ne.s32.totalorder %s68, %s69
      %p81 = scmp.eq.s32.totalorder %s17, 1
      %p82 = por %p80, %p81
      %p84 = scmp.ne.s32.totalorder %s69, %s83
      %p85 = scmp.eq.s32.totalorder %s17, 0
      %p86 = por %p84, %p85
      %s87 = ssub.s32 %s11, %s18
      %p88 = scmp.eq.s32.totalorder %s87, 0
      %s90 = sadd.s32 %s89, 1
      %s91 = scalar_select %p88, %s89, %s90
      %p94 = pneg %p88
      %p95 = scmp.eq.s32.totalorder %s11, 1
      %p96 = por %p94, %p95
      %p97 = scmp.ne.s32.totalorder %s89, %s92
      %p98 = scmp.eq.s32.totalorder %s11, 0
      %p99 = por %p97, %p98
      %p100 = scmp.ne.s32.totalorder %s89, %s92
      %p101 = scmp.eq.s32.totalorder %s16, 1
      %p102 = por %p100, %p101
      %p103 = scmp.ne.s32.totalorder %s92, %s93
      %p104 = scmp.eq.s32.totalorder %s16, 0
      %p105 = por %p103, %p104
      %p106 = scmp.ne.s32.totalorder %s92, %s93
      %p107 = scmp.eq.s32.totalorder %s17, 1
      %p108 = por %p106, %p107
      %p110 = scmp.ne.s32.totalorder %s93, %s109
      %p111 = scmp.eq.s32.totalorder %s17, 0
      %p112 = por %p110, %p111
      %s113 = ssub.s32 %s11, %s18
      %p114 = scmp.eq.s32.totalorder %s113, 0
      %s116 = sadd.s32 %s115, 1
      %s117 = scalar_select %p114, %s115, %s116
      %p120 = pneg %p114
      %p121 = scmp.eq.s32.totalorder %s11, 1
      %p122 = por %p120, %p121
      %p123 = scmp.ne.s32.totalorder %s115, %s118
      %p124 = scmp.eq.s32.totalorder %s11, 0
      %p125 = por %p123, %p124
      %p126 = scmp.ne.s32.totalorder %s115, %s118
      %p127 = scmp.eq.s32.totalorder %s16, 1
      %p128 = por %p126, %p127
      %p129 = scmp.ne.s32.totalorder %s118, %s119
      %p130 = scmp.eq.s32.totalorder %s16, 0
      %p131 = por %p129, %p130
      %p132 = scmp.ne.s32.totalorder %s118, %s119
      %p133 = scmp.eq.s32.totalorder %s17, 1
      %p134 = por %p132, %p133
      %p136 = scmp.ne.s32.totalorder %s119, %s135
      %p137 = scmp.eq.s32.totalorder %s17, 0
      %p138 = por %p136, %p137
      %p139 = scmp.le.s32.totalorder 1, %s11
      %p140 = scmp.lt.s32.totalorder %s11, 3
      %p141 = pnand %p139, %p140
      %p142 = pneg %p141
      // Predicated region
      $region9: #{bert_base_cased_forward.8} parent=5 // pred_check
        _
      $region10: #{bert_base_cased_forward.8} parent=5 // pred_check_branch
        %144 = sbr.rel (%p141) target = $region12
      $region11: #{bert_base_cased_forward.8} parent=5 // pred_region
        %s145 = ssub.s32 %s11, 1
        // Predicated region
        $region13: #{bert_base_cased_forward.8} parent=11 // pred_check
          %p146 = pneg %p58
        $region14: #{bert_base_cased_forward.8} parent=11 // pred_check_branch
          %148 = sbr.rel (%p146) target = $region16
        $region15: #{bert_base_cased_forward.8} parent=11 // pred_region
          %150 = vsyncadd [#allocation3], 0
          %s151 = sshll.u32 %s1, 4
          %s152 = int_to_ptr.hbm [resolvable:$true] %s151
          %s153 = sshll.u32 [#allocation2], 4
          %s154 = int_to_ptr.vmem [resolvable:$true] %s153
          %159 = dma.hbm_to_vmem [thread:$0]  %s152, 3072, %s154, [#allocation3], 192, 192, 12
        $region16: #{bert_base_cased_forward.8} parent=11 // pred_fallthru
          _
        // Predicated region
        $region17: #{bert_base_cased_forward.8} parent=11 // pred_check
          %p160 = pneg %p79
        $region18: #{bert_base_cased_forward.8} parent=11 // pred_check_branch
          %162 = sbr.rel (%p160) target = $region20
        $region19: #{bert_base_cased_forward.8} parent=11 // pred_region
          _
        $region20: #{bert_base_cased_forward.8} parent=11 // pred_fallthru
          _
      $region12: #{bert_base_cased_forward.8} parent=5 // pred_fallthru
        _
      %p163 = scmp.lt.s32.totalorder %s11, 2
      // Predicated region
      $region21: #{bert_base_cased_forward.8} parent=5 // pred_check
        %p164 = pneg %p163
      $region22: #{bert_base_cased_forward.8} parent=5 // pred_check_branch
        %166 = sbr.rel (%p164) target = $region24
      $region23: #{bert_base_cased_forward.8} parent=5 // pred_region
        // Predicated region
        $region25: #{bert_base_cased_forward.8} parent=23 // pred_check
          %p167 = pneg %p31
        $region26: #{bert_base_cased_forward.8} parent=23 // pred_check_branch
          %169 = sbr.rel (%p167) target = $region28
        $region27: #{bert_base_cased_forward.8} parent=23 // pred_region
          %p170 = scmp.lt.s32.totalorder %s11, 1
          %s171 = scalar_select %p170, %s11, 1
          %s172 = smul.addr %s171, 4
          %s173 = scalar_lea.vmem %s0, %s172
        $region28: #{bert_base_cased_forward.8} parent=23 // pred_fallthru
          _
        // Predicated region
        $region29: #{bert_base_cased_forward.8} parent=23 // pred_check
          %p174 = pneg %p99
        $region30: #{bert_base_cased_forward.8} parent=23 // pred_check_branch
          %176 = sbr.rel (%p174) target = $region32
        $region31: #{bert_base_cased_forward.8} parent=23 // pred_region
          %p177 = scmp.lt.s32.totalorder %s11, 1
          %s178 = scalar_select %p177, %s11, 1
          %s179 = scalar_lea.vmem %s3, %s178
        $region32: #{bert_base_cased_forward.8} parent=23 // pred_fallthru
          _
      $region24: #{bert_base_cased_forward.8} parent=5 // pred_fallthru
        _
      %p180 = scmp.le.s32.totalorder 1, %s11
      %p181 = scmp.lt.s32.totalorder %s11, 3
      %p182 = pnand %p180, %p181
      %p183 = pneg %p182
      // Predicated region
      $region33: #{bert_base_cased_forward.8} parent=5 // pred_check
        _
      $region34: #{bert_base_cased_forward.8} parent=5 // pred_check_branch
        %185 = sbr.rel (%p182) target = $region36
      $region35: #{bert_base_cased_forward.8} parent=5 // pred_region
        %s186 = ssub.s32 %s11, 1
        // Predicated region
        $region37: #{bert_base_cased_forward.8} parent=35 // pred_check
          %p187 = pneg %p58
        $region38: #{bert_base_cased_forward.8} parent=35 // pred_check_branch
          %189 = sbr.rel (%p187) target = $region40
        $region39: #{bert_base_cased_forward.8} parent=35 // pred_region
          %191 = dma.done [#allocation3], 3072
        $region40: #{bert_base_cased_forward.8} parent=35 // pred_fallthru
          _
        %p192 = scmp.lt.s32.totalorder %s16, 1
        %s193 = scalar_select %p192, %s16, 1
        %s194 = smul.addr %s193, 4
        %s195 = scalar_lea.vmem %s0, %s194
        %p196 = pneg %p37
        %p197 = pneg %p34
        %p198 = pneg %p58
        %p199 = pneg %p55
        %p200 = pneg %p79
        %p201 = pneg %p76
        %p202 = scmp.lt.s32.totalorder %s16, 1
        %s203 = scalar_select %p202, %s16, 1
        %s204 = scalar_lea.vmem %s3, %s203
        %p205 = pneg %p105
        %p206 = pneg %p102
        %p207 = pneg %p131
        %p208 = pneg %p128
        %p209 = scmp.lt.s32.totalorder %s16, 1
        %s210 = scalar_select %p209, %s16, 1
        %s211 = smul.addr %s210, 4
        %s212 = scalar_lea.vmem %s4, %s211
        %p213 = scmp.lt.s32.totalorder %s16, 1
        %s214 = scalar_select %p213, %s16, 1
        %s215 = smul.addr %s214, 4
        %s216 = scalar_lea.vmem %s0, %s215
        %p217 = scmp.lt.s32.totalorder %s16, 1
        %s218 = scalar_select %p217, %s16, 1
        %s219 = scalar_lea.vmem %s3, %s218
        %p220 = scmp.lt.s32.totalorder %s16, 1
        %s221 = scalar_select %p220, %s16, 1
        %s222 = smul.addr %s221, 4
        %s223 = scalar_lea.vmem %s4, %s222
        %v225 = vld [vmem:[%s216] sm:$0xf]
        %v226 = vld [vmem:[#allocation2] sm:$0xff]
        %v227 = vld [vmem:[#allocation2 + $0x8] sm:$0xf]
        %v228 = vld [vmem:[#allocation2 + $0xc] sm:$0xff]
        %v229 = vld [vmem:[#allocation2 + $0x14] sm:$0xf]
        %v230 = vld [vmem:[#allocation2 + $0x18] sm:$0xff]
        %v231 = vld [vmem:[#allocation2 + $0x20] sm:$0xf]
        %v232 = vld [vmem:[#allocation2 + $0x24] sm:$0xff]
        %v233 = vld [vmem:[#allocation2 + $0x2c] sm:$0xf]
        %v234 = vld [vmem:[#allocation2 + $0x30] sm:$0xff]
        %v235 = vld [vmem:[#allocation2 + $0x38] sm:$0xf]
        %v236 = vld [vmem:[#allocation2 + $0x3c] sm:$0xff]
        %v237 = vld [vmem:[#allocation2 + $0x44] sm:$0xf]
        %v238 = vld [vmem:[#allocation2 + $0x48] sm:$0xff]
        %v239 = vld [vmem:[#allocation2 + $0x50] sm:$0xf]
        %v240 = vld [vmem:[#allocation2 + $0x54] sm:$0xff]
        %v241 = vld [vmem:[#allocation2 + $0x5c] sm:$0xf]
        %v242 = vld [vmem:[#allocation2 + $0x60] sm:$0xff]
        %v243 = vld [vmem:[#allocation2 + $0x68] sm:$0xf]
        %v244 = vld [vmem:[#allocation2 + $0x6c] sm:$0xff]
        %v245 = vld [vmem:[#allocation2 + $0x74] sm:$0xf]
        %v246 = vld [vmem:[#allocation2 + $0x78] sm:$0xff]
        %v247 = vld [vmem:[#allocation2 + $0x80] sm:$0xf]
        %v248 = vld [vmem:[#allocation2 + $0x84] sm:$0xff]
        %v249 = vld [vmem:[#allocation2 + $0x8c] sm:$0xf]
        %v250 = vld [vmem:[#allocation2 + $0x90] sm:$0xff]
        %v251 = vld [vmem:[#allocation2 + $0x98] sm:$0xf]
        %v252 = vld [vmem:[#allocation2 + $0x9c] sm:$0xff]
        %v253 = vld [vmem:[#allocation2 + $0xa4] sm:$0xf]
        %v254 = vld [vmem:[#allocation2 + $0xa8] sm:$0xff]
        %v255 = vld [vmem:[#allocation2 + $0xb0] sm:$0xf]
        %v256 = vld [vmem:[#allocation2 + $0xb4] sm:$0xff]
        %v257 = vld [vmem:[#allocation2 + $0xbc] sm:$0xf]
        %v258 = vld [vmem:[%s2] sm:$0x7]
        %v260 = vperm.slane %v258, 0
        %v261 = vperm.slane %v258, 1
        %v262 = vperm.slane %v258, 2
        %v298 = vunpack.c.l.b16 %v226
        %v299 = vunpack.c.h.b16 %v226
        %v300 = vunpack.c.l.b16 %v227
        %v301 = vunpack.c.l.b16 %v228
        %v302 = vunpack.c.h.b16 %v228
        %v303 = vunpack.c.l.b16 %v229
        %v304 = vunpack.c.l.b16 %v230
        %v305 = vunpack.c.h.b16 %v230
        %v306 = vunpack.c.l.b16 %v231
        %v307 = vunpack.c.l.b16 %v232
        %v308 = vunpack.c.h.b16 %v232
        %v309 = vunpack.c.l.b16 %v233
        %v310 = vunpack.c.l.b16 %v234
        %v311 = vunpack.c.h.b16 %v234
        %v312 = vunpack.c.l.b16 %v235
        %v313 = vunpack.c.l.b16 %v236
        %v314 = vunpack.c.h.b16 %v236
        %v315 = vunpack.c.l.b16 %v237
        %v316 = vunpack.c.l.b16 %v238
        %v317 = vunpack.c.h.b16 %v238
        %v318 = vunpack.c.l.b16 %v239
        %v319 = vunpack.c.l.b16 %v240
        %v320 = vunpack.c.h.b16 %v240
        %v321 = vunpack.c.l.b16 %v241
        %v322 = vunpack.c.l.b16 %v242
        %v323 = vunpack.c.h.b16 %v242
        %v324 = vunpack.c.l.b16 %v243
        %v325 = vunpack.c.l.b16 %v244
        %v326 = vunpack.c.h.b16 %v244
        %v327 = vunpack.c.l.b16 %v245
        %v328 = vunpack.c.l.b16 %v246
        %v329 = vunpack.c.h.b16 %v246
        %v330 = vunpack.c.l.b16 %v247
        %v331 = vunpack.c.l.b16 %v248
        %v332 = vunpack.c.h.b16 %v248
        %v333 = vunpack.c.l.b16 %v249
        %v334 = vunpack.c.l.b16 %v250
        %v335 = vunpack.c.h.b16 %v250
        %v336 = vunpack.c.l.b16 %v251
        %v337 = vunpack.c.l.b16 %v252
        %v338 = vunpack.c.h.b16 %v252
        %v339 = vunpack.c.l.b16 %v253
        %v340 = vunpack.c.l.b16 %v254
        %v341 = vunpack.c.h.b16 %v254
        %v342 = vunpack.c.l.b16 %v255
        %v343 = vunpack.c.l.b16 %v256
        %v344 = vunpack.c.h.b16 %v256
        %v345 = vunpack.c.l.b16 %v257
        %v346 = vpack.c.b16 %v301, %v298
        %v347 = vpack.c.b16 %v302, %v299
        %v348 = vpack.c.b16 %v303, %v300
        %v349 = vpack.c.b16 %v307, %v304
        %v350 = vpack.c.b16 %v308, %v305
        %v351 = vpack.c.b16 %v309, %v306
        %v352 = vpack.c.b16 %v313, %v310
        %v353 = vpack.c.b16 %v314, %v311
        %v354 = vpack.c.b16 %v315, %v312
        %v355 = vpack.c.b16 %v319, %v316
        %v356 = vpack.c.b16 %v320, %v317
        %v357 = vpack.c.b16 %v321, %v318
        %v358 = vpack.c.b16 %v325, %v322
        %v359 = vpack.c.b16 %v326, %v323
        %v360 = vpack.c.b16 %v327, %v324
        %v361 = vpack.c.b16 %v331, %v328
        %v362 = vpack.c.b16 %v332, %v329
        %v363 = vpack.c.b16 %v333, %v330
        %v364 = vpack.c.b16 %v337, %v334
        %v365 = vpack.c.b16 %v338, %v335
        %v366 = vpack.c.b16 %v339, %v336
        %v367 = vpack.c.b16 %v343, %v340
        %v368 = vpack.c.b16 %v344, %v341
        %v369 = vpack.c.b16 %v345, %v342
        %394 = vmatpush.bf16.msra.mxu0 %v367
        %395 = vmatpush.bf16.msra.mxu0 %v364
        %396 = vmatpush.bf16.msra.mxu0 %v361
        %397 = vmatpush.bf16.msra.mxu0 %v358
        %398 = vmatpush.bf16.msra.mxu0 %v355
        %399 = vmatpush.bf16.msra.mxu0 %v352
        %400 = vmatpush.bf16.msra.mxu0 %v349
        %401 = vmatpush.bf16.msra.mxu0 %v346
        %402 = vmatmul.bf16.gmra.mxu0 %v225
        %v403 = vpop.f32.mrf.mxu0
        %v404 = vadd.f32 %v260, %v403
        %v405 = vpop.f32.mrf.mxu0
        %406 = vdwg.mxu0
        %407 = vmatpush.bf16.msra.mxu0 %v368
        %408 = vmatpush.bf16.msra.mxu0 %v365
        %409 = vmatpush.bf16.msra.mxu0 %v362
        %410 = vmatpush.bf16.msra.mxu0 %v359
        %411 = vmatpush.bf16.msra.mxu0 %v356
        %412 = vmatpush.bf16.msra.mxu0 %v353
        %413 = vmatpush.bf16.msra.mxu0 %v350
        %414 = vmatpush.bf16.msra.mxu0 %v347
        %415 = vmatmul.bf16.gmra.mxu0 %v225
        %v416 = vpop.f32.mrf.mxu0
        %v417 = vadd.f32 %v261, %v416
        %v418 = vpop.f32.mrf.mxu0
        %419 = vdwg.mxu0
        %420 = vmatpush.bf16.msra.mxu0 %v369
        %421 = vmatpush.bf16.msra.mxu0 %v366
        %422 = vmatpush.bf16.msra.mxu0 %v363
        %423 = vmatpush.bf16.msra.mxu0 %v360
        %424 = vmatpush.bf16.msra.mxu0 %v357
        %425 = vmatpush.bf16.msra.mxu0 %v354
        %426 = vmatpush.bf16.msra.mxu0 %v351
        %427 = vmatpush.bf16.msra.mxu0 %v348
        %428 = vmatmul.bf16.gmra.mxu0 %v225
        %v429 = vpop.f32.mrf.mxu0
        %v430 = vadd.f32 %v262, %v429
        %v431 = vpop.f32.mrf.mxu0
        %432 = vdwg.mxu0
        %v433 = vpack.c.bf16 %v404, %v404
        %v434 = vpack.c.bf16 %v417, %v417
        %v435 = vpack.c.bf16 %v430, %v430
        %v436 = vld [vmem:[%s219] sm:$0x1]
        %vm437 = vcmask 261120
        %v439 = vsel %vm437, %v433, 0
        %v442 = vsel %vm437, %v434, 0
        %444 = vmatpush.bf16.xpose.msra.mxu0 0
        %445 = vmatpush.bf16.xpose.msra.mxu0 0
        %446 = vmatpush.bf16.xpose.msra.mxu0 0
        %447 = vmatpush.bf16.xpose.msra.mxu0 0
        %448 = vmatpush.bf16.xpose.msra.mxu0 0
        %449 = vmatpush.bf16.xpose.msra.mxu0 0
        %450 = vmatpush.bf16.xpose.msra.mxu0 0
        %451 = vmatpush.bf16.xpose.msra.mxu0 %v442
        %452 = vmatmul.bf16.gmra.mxu0 %v439
        %v453 = vpop.f32.mrf.mxu0
        %v454 = vadd.f32 0.0, %v453
        %v455 = vpop.f32.mrf.mxu0
        %456 = vdwg.mxu0
        %v457 = vmul.f32 %v454, 0.17677669
        %v459 = vperm.slane %v436, 0
        %v461 = vadd.f32 %v457, %v459
        %vm462 = vcmask 64512
        %v463 = vsel %vm462, %v461, -inf
        %464 = vmax.xlane.f32.xlu0 %v463
        %v465 = vpop.xlane.xlu0 %464
        %v466 = vsub.f32 %v461, %v465
        %v467 = vmul.f32 %v466, 1.442695
        %v468 = vpow.pop %v467
        %v469 = vsel %vm462, %v468, 0.0
        %470 = vadd.xlane.f32.xlu0 %v469
        %v471 = vpop.xlane.xlu0 %470
        %v472 = vrcp.pop %v471
        %v473 = vmul.f32 %v468, %v472
        %v474 = vpack.c.bf16 %v473, %v473
        %v476 = vsel %vm462, %v474, 0
        %vm478 = vcmask 1043456
        %v480 = vsel %vm478, %v435, 0
        %482 = vmatpush.bf16.msra.mxu0 0
        %483 = vmatpush.bf16.msra.mxu0 0
        %484 = vmatpush.bf16.msra.mxu0 0
        %485 = vmatpush.bf16.msra.mxu0 0
        %486 = vmatpush.bf16.msra.mxu0 0
        %487 = vmatpush.bf16.msra.mxu0 0
        %488 = vmatpush.bf16.msra.mxu0 0
        %489 = vmatpush.bf16.msra.mxu0 %v480
        %490 = vmatmul.bf16.gmra.mxu0 %v476
        %v491 = vpop.f32.mrf.mxu0
        %v492 = vadd.f32 0.0, %v491
        %v493 = vpop.f32.mrf.mxu0
        %494 = vdwg.mxu0
        %v496 = vunpack.c.l.b16 %v433
        %v497 = vpack.c.b16 %v496, %v496
        %498 = vrot.lane.b32.xlu0 %v497, 96
        %v499 = vpop.permute.xlu0 %498
        %v501 = vunpack.c.l.b16 %v434
        %v502 = vpack.c.b16 %v501, %v501
        %503 = vrot.lane.b32.xlu0 %v502, 96
        %v504 = vpop.permute.xlu0 %503
        %v506 = vsel %vm437, %v499, 0
        %v509 = vsel %vm437, %v504, 0
        %511 = vmatpush.bf16.xpose.msra.mxu0 0
        %512 = vmatpush.bf16.xpose.msra.mxu0 0
        %513 = vmatpush.bf16.xpose.msra.mxu0 0
        %514 = vmatpush.bf16.xpose.msra.mxu0 0
        %515 = vmatpush.bf16.xpose.msra.mxu0 0
        %516 = vmatpush.bf16.xpose.msra.mxu0 0
        %517 = vmatpush.bf16.xpose.msra.mxu0 0
        %518 = vmatpush.bf16.xpose.msra.mxu0 %v509
        %519 = vmatmul.bf16.gmra.mxu0 %v506
        %v520 = vpop.f32.mrf.mxu0
        %v521 = vadd.f32 0.0, %v520
        %v522 = vpop.f32.mrf.mxu0
        %523 = vdwg.mxu0
        %v524 = vmul.f32 %v521, 0.17677669
        %v525 = vadd.f32 %v524, %v459
        %v526 = vsel %vm462, %v525, -inf
        %527 = vmax.xlane.f32.xlu0 %v526
        %v528 = vpop.xlane.xlu0 %527
        %v529 = vsub.f32 %v525, %v528
        %v530 = vmul.f32 %v529, 1.442695
        %v531 = vpow.pop %v530
        %v532 = vsel %vm462, %v531, 0.0
        %533 = vadd.xlane.f32.xlu0 %v532
        %v534 = vpop.xlane.xlu0 %533
        %v535 = vrcp.pop %v534
        %v536 = vmul.f32 %v531, %v535
        %v537 = vpack.c.bf16 %v536, %v536
        %v539 = vunpack.c.l.b16 %v435
        %v540 = vpack.c.b16 %v539, %v539
        %541 = vrot.lane.b32.xlu0 %v540, 96
        %v542 = vpop.permute.xlu0 %541
        %v544 = vsel %vm462, %v537, 0
        %v547 = vsel %vm478, %v542, 0
        %549 = vmatpush.bf16.msra.mxu0 0
        %550 = vmatpush.bf16.msra.mxu0 0
        %551 = vmatpush.bf16.msra.mxu0 0
        %552 = vmatpush.bf16.msra.mxu0 0
        %553 = vmatpush.bf16.msra.mxu0 0
        %554 = vmatpush.bf16.msra.mxu0 0
        %555 = vmatpush.bf16.msra.mxu0 0
        %556 = vmatpush.bf16.msra.mxu0 %v547
        %557 = vmatmul.bf16.gmra.mxu0 %v544
        %v558 = vpop.f32.mrf.mxu0
        %v559 = vadd.f32 0.0, %v558
        %v560 = vpop.f32.mrf.mxu0
        %561 = vdwg.mxu0
        %562 = vrot.lane.b32.xlu0 %v497, 64
        %v563 = vpop.permute.xlu0 %562
        %564 = vrot.lane.b32.xlu0 %v502, 64
        %v565 = vpop.permute.xlu0 %564
        %v567 = vsel %vm437, %v563, 0
        %v570 = vsel %vm437, %v565, 0
        %572 = vmatpush.bf16.xpose.msra.mxu0 0
        %573 = vmatpush.bf16.xpose.msra.mxu0 0
        %574 = vmatpush.bf16.xpose.msra.mxu0 0
        %575 = vmatpush.bf16.xpose.msra.mxu0 0
        %576 = vmatpush.bf16.xpose.msra.mxu0 0
        %577 = vmatpush.bf16.xpose.msra.mxu0 0
        %578 = vmatpush.bf16.xpose.msra.mxu0 0
        %579 = vmatpush.bf16.xpose.msra.mxu0 %v570
        %580 = vmatmul.bf16.gmra.mxu0 %v567
        %v581 = vpop.f32.mrf.mxu0
        %v582 = vadd.f32 0.0, %v581
        %v583 = vpop.f32.mrf.mxu0
        %584 = vdwg.mxu0
        %v585 = vmul.f32 %v582, 0.17677669
        %v586 = vadd.f32 %v585, %v459
        %v587 = vsel %vm462, %v586, -inf
        %588 = vmax.xlane.f32.xlu0 %v587
        %v589 = vpop.xlane.xlu0 %588
        %v590 = vsub.f32 %v586, %v589
        %v591 = vmul.f32 %v590, 1.442695
        %v592 = vpow.pop %v591
        %v593 = vsel %vm462, %v592, 0.0
        %594 = vadd.xlane.f32.xlu0 %v593
        %v595 = vpop.xlane.xlu0 %594
        %v596 = vrcp.pop %v595
        %v597 = vmul.f32 %v592, %v596
        %v598 = vpack.c.bf16 %v597, %v597
        %599 = vrot.lane.b32.xlu0 %v540, 64
        %v600 = vpop.permute.xlu0 %599
        %v602 = vsel %vm462, %v598, 0
        %v605 = vsel %vm478, %v600, 0
        %607 = vmatpush.bf16.msra.mxu0 0
        %608 = vmatpush.bf16.msra.mxu0 0
        %609 = vmatpush.bf16.msra.mxu0 0
        %610 = vmatpush.bf16.msra.mxu0 0
        %611 = vmatpush.bf16.msra.mxu0 0
        %612 = vmatpush.bf16.msra.mxu0 0
        %613 = vmatpush.bf16.msra.mxu0 0
        %614 = vmatpush.bf16.msra.mxu0 %v605
        %615 = vmatmul.bf16.gmra.mxu0 %v602
        %v616 = vpop.f32.mrf.mxu0
        %v617 = vadd.f32 0.0, %v616
        %v618 = vpop.f32.mrf.mxu0
        %619 = vdwg.mxu0
        %620 = vrot.lane.b32.xlu0 %v497, 32
        %v621 = vpop.permute.xlu0 %620
        %622 = vrot.lane.b32.xlu0 %v502, 32
        %v623 = vpop.permute.xlu0 %622
        %v625 = vsel %vm437, %v621, 0
        %v628 = vsel %vm437, %v623, 0
        %630 = vmatpush.bf16.xpose.msra.mxu0 0
        %631 = vmatpush.bf16.xpose.msra.mxu0 0
        %632 = vmatpush.bf16.xpose.msra.mxu0 0
        %633 = vmatpush.bf16.xpose.msra.mxu0 0
        %634 = vmatpush.bf16.xpose.msra.mxu0 0
        %635 = vmatpush.bf16.xpose.msra.mxu0 0
        %636 = vmatpush.bf16.xpose.msra.mxu0 0
        %637 = vmatpush.bf16.xpose.msra.mxu0 %v628
        %638 = vmatmul.bf16.gmra.mxu0 %v625
        %v639 = vpop.f32.mrf.mxu0
        %v640 = vadd.f32 0.0, %v639
        %v641 = vpop.f32.mrf.mxu0
        %642 = vdwg.mxu0
        %v643 = vmul.f32 %v640, 0.17677669
        %v644 = vadd.f32 %v643, %v459
        %v645 = vsel %vm462, %v644, -inf
        %646 = vmax.xlane.f32.xlu0 %v645
        %v647 = vpop.xlane.xlu0 %646
        %v648 = vsub.f32 %v644, %v647
        %v649 = vmul.f32 %v648, 1.442695
        %v650 = vpow.pop %v649
        %v651 = vsel %vm462, %v650, 0.0
        %652 = vadd.xlane.f32.xlu0 %v651
        %v653 = vpop.xlane.xlu0 %652
        %v654 = vrcp.pop %v653
        %v655 = vmul.f32 %v650, %v654
        %v656 = vpack.c.bf16 %v655, %v655
        %657 = vrot.lane.b32.xlu0 %v540, 32
        %v658 = vpop.permute.xlu0 %657
        %v660 = vsel %vm462, %v656, 0
        %v663 = vsel %vm478, %v658, 0
        %665 = vmatpush.bf16.msra.mxu0 0
        %666 = vmatpush.bf16.msra.mxu0 0
        %667 = vmatpush.bf16.msra.mxu0 0
        %668 = vmatpush.bf16.msra.mxu0 0
        %669 = vmatpush.bf16.msra.mxu0 0
        %670 = vmatpush.bf16.msra.mxu0 0
        %671 = vmatpush.bf16.msra.mxu0 0
        %672 = vmatpush.bf16.msra.mxu0 %v663
        %673 = vmatmul.bf16.gmra.mxu0 %v660
        %v674 = vpop.f32.mrf.mxu0
        %v675 = vadd.f32 0.0, %v674
        %v676 = vpop.f32.mrf.mxu0
        %677 = vdwg.mxu0
        %679 = vrot.lane.b32.xlu0 %v559, 32
        %v680 = vpop.permute.xlu0 %679
        %683 = vrot.lane.b32.xlu0 %v617, 64
        %v684 = vpop.permute.xlu0 %683
        %687 = vrot.lane.b32.xlu0 %v675, 96
        %v688 = vpop.permute.xlu0 %687
        %v690 = vsel %vm437, %v492, %v680
        %vm691 = vcmask 523264
        %v692 = vsel %vm691, %v690, %v684
        %vm693 = vcmask 785408
        %v694 = vsel %vm693, %v692, %v688
        %v695 = vpack.c.bf16 %v694, %v694
        %696 = vst [vmem:[%s223] sm:$0xf] %v695
        %p697 = scmp.lt.s32.totalorder %s16, 1
        %s698 = scalar_select %p697, %s16, 1
        %s699 = smul.addr %s698, 4
        %s700 = scalar_lea.vmem %s4, %s699
        // Predicated region
        $region41: #{bert_base_cased_forward.8} parent=35 // pred_check
          %p701 = pneg %p128
        $region42: #{bert_base_cased_forward.8} parent=35 // pred_check_branch
          %703 = sbr.rel (%p701) target = $region44
        $region43: #{bert_base_cased_forward.8} parent=35 // pred_region
          _
        $region44: #{bert_base_cased_forward.8} parent=35 // pred_fallthru
          _
      $region36: #{bert_base_cased_forward.8} parent=5 // pred_fallthru
        _
      %p704 = scmp.le.s32.totalorder 2, %s11
      // Predicated region
      $region45: #{bert_base_cased_forward.8} parent=5 // pred_check
        %p705 = pneg %p704
      $region46: #{bert_base_cased_forward.8} parent=5 // pred_check_branch
        %707 = sbr.rel (%p705) target = $region48
      $region47: #{bert_base_cased_forward.8} parent=5 // pred_region
        %s708 = ssub.s32 %s11, 2
        // Predicated region
        $region49: #{bert_base_cased_forward.8} parent=47 // pred_check
          %p709 = pneg %p134
        $region50: #{bert_base_cased_forward.8} parent=47 // pred_check_branch
          %711 = sbr.rel (%p709) target = $region52
        $region51: #{bert_base_cased_forward.8} parent=47 // pred_region
          %p712 = scmp.lt.s32.totalorder %s17, 1
          %s713 = scalar_select %p712, %s17, 1
          %s714 = smul.addr %s713, 4
          %s715 = scalar_lea.vmem %s4, %s714
        $region52: #{bert_base_cased_forward.8} parent=47 // pred_fallthru
          _
      $region48: #{bert_base_cased_forward.8} parent=5 // pred_fallthru
        _
    $region6: #{bert_base_cased_forward.8} parent=1 // loop_footer
      %s15 = sadd.s32 1, %s11
    $region7: #{bert_base_cased_forward.8} parent=1 // loop_footer_branch
      %10 = sbr.rel target = $region3
    $region8: #{bert_base_cased_forward.8} parent=1 // loop_exit
      _
    %716 = vsyncpa [#allocation3], 1
    %s717 = scalar_lea.sflag [#allocation3], 1
    %718 = vsyncpa %s717, 1

// kernel: bert_base_cased_forward.10
$region0: #{bert_base_cased_forward.10}
  #allocation0 [shape = 'u32[]', space=smem, size = 0x4, offset = 0x4, fixed_abs, tag = 'smem constant byte address 0x4 - core index']
  #allocation1 [shape = 'u32[72,128]{1,0:T(1,128)}', space=vmem, size = 0x9000, scoped, tag = 'internal scratch']
  %s0 = inlined_call_operand.vmem [shape: bf16[16,128], index: 0, kind: input, shape index: {}]
  %s1 = inlined_call_operand.vmem [shape: bf16[128,512], index: 1, kind: input, shape index: {}]
  %s2 = inlined_call_operand.vmem [shape: f32[1,512], index: 2, kind: input, shape index: {}]
  %s3 = inlined_call_operand.hbm [shape: bf16[512,128], index: 3, kind: input, shape index: {}]
  %s4 = inlined_call_operand.vmem [shape: f32[1,128], index: 4, kind: input, shape index: {}]
  %s5 = inlined_call_operand.vmem [shape: f32[1,128], index: 5, kind: input, shape index: {}]
  %s6 = inlined_call_operand.vmem [shape: f32[1,128], index: 6, kind: input, shape index: {}]
  %s7 = inlined_call_operand.vmem [shape: bf16[16,128], index: 7, kind: output, shape index: {}]
  %s8 = sld [smem:[#allocation0]]
  $region65: #{bert_base_cased_forward.10} parent=0
    _
  %s10 = ssub.s32 1, %s8
  %s11 = scalar_select 0, %s10, %s8
  $region1: #{bert_base_cased_forward.10} parent=0
    #allocation2 [shape = 'u8[131072]{0}', space=vmem, size = 0x20000, scoped, tag = 'input window, operand 3, single buffered']
    #allocation3 [shape = 's32[2]{0}', space=sflag, size = 0x8, scoped, tag = 'scoped memory for bert_base_cased_forward.10']
    %12 = vsyncpa [#allocation3], 0
    loop: start=0, step=1, limit=4
    $region2: #{bert_base_cased_forward.10} parent=1 // loop_pre_header
      _
    $region3: #{bert_base_cased_forward.10} parent=1 // loop_header
      %s14 = sphi 0, %s18
      %p15 = scmp.ge.s32.totalorder %s14, 4
      %s24 = sphi 0, %s26
      %s27 = sphi 0, %s24
      %s28 = sphi 0, %s27
      %s44 = sphi 0, %s28
      %s48 = sphi 0, %s48
      %s50 = sphi 0, %s48
      %s51 = sphi 0, %s50
      %s65 = sphi 0, %s51
      %s69 = sphi 0, %s69
      %s71 = sphi 0, %s69
      %s72 = sphi 0, %s71
      %s86 = sphi 0, %s72
      %s90 = sphi 0, %s90
      %s92 = sphi 0, %s90
      %s93 = sphi 0, %s92
      %s107 = sphi 0, %s93
      %s111 = sphi 0, %s111
      %s113 = sphi 0, %s111
      %s114 = sphi 0, %s113
      %s128 = sphi 0, %s114
      %s132 = sphi 0, %s132
      %s134 = sphi 0, %s132
      %s135 = sphi 0, %s134
      %s149 = sphi 0, %s135
      %s153 = sphi 0, %s153
      %s155 = sphi 0, %s153
      %s156 = sphi 0, %s155
      %s170 = sphi 0, %s156
      %s176 = sphi 0, %s178
      %s179 = sphi 0, %s176
      %s180 = sphi 0, %s179
      %s196 = sphi 0, %s180
    $region4: #{bert_base_cased_forward.10} parent=1 // loop_header_branch
      %17 = sbr.rel (%p15) target = $region8
    $region5: #{bert_base_cased_forward.10} parent=1 // loop_body
      %s19 = ssub.s32 %s14, 1
      %s20 = ssub.s32 %s14, 2
      %s21 = sadd.s32 %s14, 1
      %s22 = ssub.s32 %s14, %s21
      %p23 = scmp.eq.s32.totalorder %s22, 0
      %s25 = sadd.s32 %s24, 1
      %s26 = scalar_select %p23, %s24, %s25
      %p29 = pneg %p23
      %p30 = scmp.eq.s32.totalorder %s14, 1
      %p31 = por %p29, %p30
      %p32 = scmp.ne.s32.totalorder %s24, %s27
      %p33 = scmp.eq.s32.totalorder %s14, 0
      %p34 = por %p32, %p33
      %p35 = scmp.ne.s32.totalorder %s24, %s27
      %p36 = scmp.eq.s32.totalorder %s19, 1
      %p37 = por %p35, %p36
      %p38 = scmp.ne.s32.totalorder %s27, %s28
      %p39 = scmp.eq.s32.totalorder %s19, 0
      %p40 = por %p38, %p39
      %p41 = scmp.ne.s32.totalorder %s27, %s28
      %p42 = scmp.eq.s32.totalorder %s20, 1
      %p43 = por %p41, %p42
      %p45 = scmp.ne.s32.totalorder %s28, %s44
      %p46 = scmp.eq.s32.totalorder %s20, 0
      %p47 = por %p45, %p46
      %s49 = sadd.s32 %s48, 1
      %p52 = scmp.eq.s32.totalorder %s14, 1
      %p53 = scmp.ne.s32.totalorder %s48, %s50
      %p54 = scmp.eq.s32.totalorder %s14, 0
      %p55 = por %p53, %p54
      %p56 = scmp.ne.s32.totalorder %s48, %s50
      %p57 = scmp.eq.s32.totalorder %s19, 1
      %p58 = por %p56, %p57
      %p59 = scmp.ne.s32.totalorder %s50, %s51
      %p60 = scmp.eq.s32.totalorder %s19, 0
      %p61 = por %p59, %p60
      %p62 = scmp.ne.s32.totalorder %s50, %s51
      %p63 = scmp.eq.s32.totalorder %s20, 1
      %p64 = por %p62, %p63
      %p66 = scmp.ne.s32.totalorder %s51, %s65
      %p67 = scmp.eq.s32.totalorder %s20, 0
      %p68 = por %p66, %p67
      %s70 = sadd.s32 %s69, 1
      %p73 = scmp.eq.s32.totalorder %s14, 1
      %p74 = scmp.ne.s32.totalorder %s69, %s71
      %p75 = scmp.eq.s32.totalorder %s14, 0
      %p76 = por %p74, %p75
      %p77 = scmp.ne.s32.totalorder %s69, %s71
      %p78 = scmp.eq.s32.totalorder %s19, 1
      %p79 = por %p77, %p78
      %p80 = scmp.ne.s32.totalorder %s71, %s72
      %p81 = scmp.eq.s32.totalorder %s19, 0
      %p82 = por %p80, %p81
      %p83 = scmp.ne.s32.totalorder %s71, %s72
      %p84 = scmp.eq.s32.totalorder %s20, 1
      %p85 = por %p83, %p84
      %p87 = scmp.ne.s32.totalorder %s72, %s86
      %p88 = scmp.eq.s32.totalorder %s20, 0
      %p89 = por %p87, %p88
      %s91 = sadd.s32 %s90, 1
      %p94 = scmp.eq.s32.totalorder %s14, 1
      %p95 = scmp.ne.s32.totalorder %s90, %s92
      %p96 = scmp.eq.s32.totalorder %s14, 0
      %p97 = por %p95, %p96
      %p98 = scmp.ne.s32.totalorder %s90, %s92
      %p99 = scmp.eq.s32.totalorder %s19, 1
      %p100 = por %p98, %p99
      %p101 = scmp.ne.s32.totalorder %s92, %s93
      %p102 = scmp.eq.s32.totalorder %s19, 0
      %p103 = por %p101, %p102
      %p104 = scmp.ne.s32.totalorder %s92, %s93
      %p105 = scmp.eq.s32.totalorder %s20, 1
      %p106 = por %p104, %p105
      %p108 = scmp.ne.s32.totalorder %s93, %s107
      %p109 = scmp.eq.s32.totalorder %s20, 0
      %p110 = por %p108, %p109
      %s112 = sadd.s32 %s111, 1
      %p115 = scmp.eq.s32.totalorder %s14, 1
      %p116 = scmp.ne.s32.totalorder %s111, %s113
      %p117 = scmp.eq.s32.totalorder %s14, 0
      %p118 = por %p116, %p117
      %p119 = scmp.ne.s32.totalorder %s111, %s113
      %p120 = scmp.eq.s32.totalorder %s19, 1
      %p121 = por %p119, %p120
      %p122 = scmp.ne.s32.totalorder %s113, %s114
      %p123 = scmp.eq.s32.totalorder %s19, 0
      %p124 = por %p122, %p123
      %p125 = scmp.ne.s32.totalorder %s113, %s114
      %p126 = scmp.eq.s32.totalorder %s20, 1
      %p127 = por %p125, %p126
      %p129 = scmp.ne.s32.totalorder %s114, %s128
      %p130 = scmp.eq.s32.totalorder %s20, 0
      %p131 = por %p129, %p130
      %s133 = sadd.s32 %s132, 1
      %p136 = scmp.eq.s32.totalorder %s14, 1
      %p137 = scmp.ne.s32.totalorder %s132, %s134
      %p138 = scmp.eq.s32.totalorder %s14, 0
      %p139 = por %p137, %p138
      %p140 = scmp.ne.s32.totalorder %s132, %s134
      %p141 = scmp.eq.s32.totalorder %s19, 1
      %p142 = por %p140, %p141
      %p143 = scmp.ne.s32.totalorder %s134, %s135
      %p144 = scmp.eq.s32.totalorder %s19, 0
      %p145 = por %p143, %p144
      %p146 = scmp.ne.s32.totalorder %s134, %s135
      %p147 = scmp.eq.s32.totalorder %s20, 1
      %p148 = por %p146, %p147
      %p150 = scmp.ne.s32.totalorder %s135, %s149
      %p151 = scmp.eq.s32.totalorder %s20, 0
      %p152 = por %p150, %p151
      %s154 = sadd.s32 %s153, 1
      %p157 = scmp.eq.s32.totalorder %s14, 1
      %p158 = scmp.ne.s32.totalorder %s153, %s155
      %p159 = scmp.eq.s32.totalorder %s14, 0
      %p160 = por %p158, %p159
      %p161 = scmp.ne.s32.totalorder %s153, %s155
      %p162 = scmp.eq.s32.totalorder %s19, 1
      %p163 = por %p161, %p162
      %p164 = scmp.ne.s32.totalorder %s155, %s156
      %p165 = scmp.eq.s32.totalorder %s19, 0
      %p166 = por %p164, %p165
      %p167 = scmp.ne.s32.totalorder %s155, %s156
      %p168 = scmp.eq.s32.totalorder %s20, 1
      %p169 = por %p167, %p168
      %p171 = scmp.ne.s32.totalorder %s156, %s170
      %p172 = scmp.eq.s32.totalorder %s20, 0
      %p173 = por %p171, %p172
      %s174 = ssub.s32 %s14, %s21
      %p175 = scmp.eq.s32.totalorder %s174, 0
      %s177 = sadd.s32 %s176, 1
      %s178 = scalar_select %p175, %s176, %s177
      %p181 = pneg %p175
      %p182 = scmp.eq.s32.totalorder %s14, 1
      %p183 = por %p181, %p182
      %p184 = scmp.ne.s32.totalorder %s176, %s179
      %p185 = scmp.eq.s32.totalorder %s14, 0
      %p186 = por %p184, %p185
      %p187 = scmp.ne.s32.totalorder %s176, %s179
      %p188 = scmp.eq.s32.totalorder %s19, 1
      %p189 = por %p187, %p188
      %p190 = scmp.ne.s32.totalorder %s179, %s180
      %p191 = scmp.eq.s32.totalorder %s19, 0
      %p192 = por %p190, %p191
      %p193 = scmp.ne.s32.totalorder %s179, %s180
      %p194 = scmp.eq.s32.totalorder %s20, 1
      %p195 = por %p193, %p194
      %p197 = scmp.ne.s32.totalorder %s180, %s196
      %p198 = scmp.eq.s32.totalorder %s20, 0
      %p199 = por %p197, %p198
      %p200 = scmp.le.s32.totalorder 1, %s14
      %p201 = scmp.lt.s32.totalorder %s14, 3
      %p202 = pnand %p200, %p201
      %p203 = pneg %p202
      // Predicated region
      $region9: #{bert_base_cased_forward.10} parent=5 // pred_check
        _
      $region10: #{bert_base_cased_forward.10} parent=5 // pred_check_branch
        %205 = sbr.rel (%p202) target = $region12
      $region11: #{bert_base_cased_forward.10} parent=5 // pred_region
        %s206 = ssub.s32 %s14, 1
        // Predicated region
        $region13: #{bert_base_cased_forward.10} parent=11 // pred_check
          %p207 = pneg %p61
        $region14: #{bert_base_cased_forward.10} parent=11 // pred_check_branch
          %209 = sbr.rel (%p207) target = $region16
        $region15: #{bert_base_cased_forward.10} parent=11 // pred_region
          _
        $region16: #{bert_base_cased_forward.10} parent=11 // pred_fallthru
          _
        // Predicated region
        $region17: #{bert_base_cased_forward.10} parent=11 // pred_check
          %p210 = pneg %p82
        $region18: #{bert_base_cased_forward.10} parent=11 // pred_check_branch
          %212 = sbr.rel (%p210) target = $region20
        $region19: #{bert_base_cased_forward.10} parent=11 // pred_region
          _
        $region20: #{bert_base_cased_forward.10} parent=11 // pred_fallthru
          _
        // Predicated region
        $region21: #{bert_base_cased_forward.10} parent=11 // pred_check
          %p213 = pneg %p103
        $region22: #{bert_base_cased_forward.10} parent=11 // pred_check_branch
          %215 = sbr.rel (%p213) target = $region24
        $region23: #{bert_base_cased_forward.10} parent=11 // pred_region
          %217 = vsyncadd [#allocation3], 0
          %s218 = sshll.u32 %s3, 4
          %s219 = int_to_ptr.hbm [resolvable:$true] %s218
          %s220 = sshll.u32 [#allocation2], 4
          %s221 = int_to_ptr.vmem [resolvable:$true] %s220
          %226 = dma.hbm_to_vmem [thread:$0]  %s219, 4096, %s221, [#allocation3], 64, 64, 4
        $region24: #{bert_base_cased_forward.10} parent=11 // pred_fallthru
          _
        // Predicated region
        $region25: #{bert_base_cased_forward.10} parent=11 // pred_check
          %p227 = pneg %p124
        $region26: #{bert_base_cased_forward.10} parent=11 // pred_check_branch
          %229 = sbr.rel (%p227) target = $region28
        $region27: #{bert_base_cased_forward.10} parent=11 // pred_region
          _
        $region28: #{bert_base_cased_forward.10} parent=11 // pred_fallthru
          _
        // Predicated region
        $region29: #{bert_base_cased_forward.10} parent=11 // pred_check
          %p230 = pneg %p145
        $region30: #{bert_base_cased_forward.10} parent=11 // pred_check_branch
          %232 = sbr.rel (%p230) target = $region32
        $region31: #{bert_base_cased_forward.10} parent=11 // pred_region
          _
        $region32: #{bert_base_cased_forward.10} parent=11 // pred_fallthru
          _
        // Predicated region
        $region33: #{bert_base_cased_forward.10} parent=11 // pred_check
          %p233 = pneg %p166
        $region34: #{bert_base_cased_forward.10} parent=11 // pred_check_branch
          %235 = sbr.rel (%p233) target = $region36
        $region35: #{bert_base_cased_forward.10} parent=11 // pred_region
          _
        $region36: #{bert_base_cased_forward.10} parent=11 // pred_fallthru
          _
      $region12: #{bert_base_cased_forward.10} parent=5 // pred_fallthru
        _
      %p236 = scmp.lt.s32.totalorder %s14, 2
      // Predicated region
      $region37: #{bert_base_cased_forward.10} parent=5 // pred_check
        %p237 = pneg %p236
      $region38: #{bert_base_cased_forward.10} parent=5 // pred_check_branch
        %239 = sbr.rel (%p237) target = $region40
      $region39: #{bert_base_cased_forward.10} parent=5 // pred_region
        // Predicated region
        $region41: #{bert_base_cased_forward.10} parent=39 // pred_check
          %p240 = pneg %p34
        $region42: #{bert_base_cased_forward.10} parent=39 // pred_check_branch
          %242 = sbr.rel (%p240) target = $region44
        $region43: #{bert_base_cased_forward.10} parent=39 // pred_region
          %p243 = scmp.lt.s32.totalorder %s14, 1
          %s244 = scalar_select %p243, %s14, 1
          %s245 = smul.addr %s244, 4
          %s246 = scalar_lea.vmem %s0, %s245
        $region44: #{bert_base_cased_forward.10} parent=39 // pred_fallthru
          _
      $region40: #{bert_base_cased_forward.10} parent=5 // pred_fallthru
        _
      %p247 = scmp.le.s32.totalorder 1, %s14
      %p248 = scmp.lt.s32.totalorder %s14, 3
      %p249 = pnand %p247, %p248
      %p250 = pneg %p249
      // Predicated region
      $region45: #{bert_base_cased_forward.10} parent=5 // pred_check
        _
      $region46: #{bert_base_cased_forward.10} parent=5 // pred_check_branch
        %252 = sbr.rel (%p249) target = $region48
      $region47: #{bert_base_cased_forward.10} parent=5 // pred_region
        %s253 = ssub.s32 %s14, 1
        // Predicated region
        $region49: #{bert_base_cased_forward.10} parent=47 // pred_check
          %p254 = pneg %p103
        $region50: #{bert_base_cased_forward.10} parent=47 // pred_check_branch
          %256 = sbr.rel (%p254) target = $region52
        $region51: #{bert_base_cased_forward.10} parent=47 // pred_region
          %258 = dma.done [#allocation3], 4096
        $region52: #{bert_base_cased_forward.10} parent=47 // pred_fallthru
          _
        %p259 = scmp.lt.s32.totalorder %s19, 1
        %s260 = scalar_select %p259, %s19, 1
        %s261 = smul.addr %s260, 4
        %s262 = scalar_lea.vmem %s0, %s261
        %p263 = pneg %p40
        %p264 = pneg %p37
        %p265 = pneg %p61
        %p266 = pneg %p58
        %p267 = pneg %p82
        %p268 = pneg %p79
        %p269 = pneg %p103
        %p270 = pneg %p100
        %p271 = pneg %p124
        %p272 = pneg %p121
        %p273 = pneg %p145
        %p274 = pneg %p142
        %p275 = pneg %p166
        %p276 = pneg %p163
        %p277 = pneg %p192
        %p278 = pneg %p189
        %p279 = scmp.lt.s32.totalorder %s19, 1
        %s280 = scalar_select %p279, %s19, 1
        %s281 = smul.addr %s280, 4
        %s282 = scalar_lea.vmem %s7, %s281
        %p283 = scmp.lt.s32.totalorder %s19, 1
        %s284 = scalar_select %p283, %s19, 1
        %s285 = smul.addr %s284, 4
        %s286 = scalar_lea.vmem %s0, %s285
        %p287 = scmp.lt.s32.totalorder %s19, 1
        %s288 = scalar_select %p287, %s19, 1
        %s289 = smul.addr %s288, 4
        %s290 = scalar_lea.vmem %s7, %s289
        %v291 = vld [vmem:[%s286] sm:$0xf]
        %v292 = vld [vmem:[%s1] sm:$0xff]
        %v293 = vld [vmem:[%s1 + $0x8] sm:$0xff]
        %v294 = vld [vmem:[%s1 + $0x10] sm:$0xff]
        %v295 = vld [vmem:[%s1 + $0x18] sm:$0xff]
        %v296 = vld [vmem:[%s1 + $0x20] sm:$0xff]
        %v297 = vld [vmem:[%s1 + $0x28] sm:$0xff]
        %v298 = vld [vmem:[%s1 + $0x30] sm:$0xff]
        %v299 = vld [vmem:[%s1 + $0x38] sm:$0xff]
        %v300 = vld [vmem:[%s1 + $0x40] sm:$0xff]
        %v301 = vld [vmem:[%s1 + $0x48] sm:$0xff]
        %v302 = vld [vmem:[%s1 + $0x50] sm:$0xff]
        %v303 = vld [vmem:[%s1 + $0x58] sm:$0xff]
        %v304 = vld [vmem:[%s1 + $0x60] sm:$0xff]
        %v305 = vld [vmem:[%s1 + $0x68] sm:$0xff]
        %v306 = vld [vmem:[%s1 + $0x70] sm:$0xff]
        %v307 = vld [vmem:[%s1 + $0x78] sm:$0xff]
        %v308 = vld [vmem:[%s1 + $0x80] sm:$0xff]
        %v309 = vld [vmem:[%s1 + $0x88] sm:$0xff]
        %v310 = vld [vmem:[%s1 + $0x90] sm:$0xff]
        %v311 = vld [vmem:[%s1 + $0x98] sm:$0xff]
        %v312 = vld [vmem:[%s1 + $0xa0] sm:$0xff]
        %v313 = vld [vmem:[%s1 + $0xa8] sm:$0xff]
        %v314 = vld [vmem:[%s1 + $0xb0] sm:$0xff]
        %v315 = vld [vmem:[%s1 + $0xb8] sm:$0xff]
        %v316 = vld [vmem:[%s1 + $0xc0] sm:$0xff]
        %v317 = vld [vmem:[%s1 + $0xc8] sm:$0xff]
        %v318 = vld [vmem:[%s1 + $0xd0] sm:$0xff]
        %v319 = vld [vmem:[%s1 + $0xd8] sm:$0xff]
        %v320 = vld [vmem:[%s1 + $0xe0] sm:$0xff]
        %v321 = vld [vmem:[%s1 + $0xe8] sm:$0xff]
        %v322 = vld [vmem:[%s1 + $0xf0] sm:$0xff]
        %v323 = vld [vmem:[%s1 + $0xf8] sm:$0xff]
        %v324 = vld [vmem:[%s2] sm:$0xf]
        %v326 = vperm.slane %v324, 0
        %v327 = vperm.slane %v324, 1
        %v328 = vperm.slane %v324, 2
        %v329 = vperm.slane %v324, 3
        %v366 = vunpack.c.l.b16 %v292
        %v367 = vunpack.c.h.b16 %v292
        %v368 = vunpack.c.l.b16 %v293
        %v369 = vunpack.c.h.b16 %v293
        %v370 = vunpack.c.l.b16 %v294
        %v371 = vunpack.c.h.b16 %v294
        %v372 = vunpack.c.l.b16 %v295
        %v373 = vunpack.c.h.b16 %v295
        %v374 = vunpack.c.l.b16 %v296
        %v375 = vunpack.c.h.b16 %v296
        %v376 = vunpack.c.l.b16 %v297
        %v377 = vunpack.c.h.b16 %v297
        %v378 = vunpack.c.l.b16 %v298
        %v379 = vunpack.c.h.b16 %v298
        %v380 = vunpack.c.l.b16 %v299
        %v381 = vunpack.c.h.b16 %v299
        %v382 = vunpack.c.l.b16 %v300
        %v383 = vunpack.c.h.b16 %v300
        %v384 = vunpack.c.l.b16 %v301
        %v385 = vunpack.c.h.b16 %v301
        %v386 = vunpack.c.l.b16 %v302
        %v387 = vunpack.c.h.b16 %v302
        %v388 = vunpack.c.l.b16 %v303
        %v389 = vunpack.c.h.b16 %v303
        %v390 = vunpack.c.l.b16 %v304
        %v391 = vunpack.c.h.b16 %v304
        %v392 = vunpack.c.l.b16 %v305
        %v393 = vunpack.c.h.b16 %v305
        %v394 = vunpack.c.l.b16 %v306
        %v395 = vunpack.c.h.b16 %v306
        %v396 = vunpack.c.l.b16 %v307
        %v397 = vunpack.c.h.b16 %v307
        %v398 = vunpack.c.l.b16 %v308
        %v399 = vunpack.c.h.b16 %v308
        %v400 = vunpack.c.l.b16 %v309
        %v401 = vunpack.c.h.b16 %v309
        %v402 = vunpack.c.l.b16 %v310
        %v403 = vunpack.c.h.b16 %v310
        %v404 = vunpack.c.l.b16 %v311
        %v405 = vunpack.c.h.b16 %v311
        %v406 = vunpack.c.l.b16 %v312
        %v407 = vunpack.c.h.b16 %v312
        %v408 = vunpack.c.l.b16 %v313
        %v409 = vunpack.c.h.b16 %v313
        %v410 = vunpack.c.l.b16 %v314
        %v411 = vunpack.c.h.b16 %v314
        %v412 = vunpack.c.l.b16 %v315
        %v413 = vunpack.c.h.b16 %v315
        %v414 = vunpack.c.l.b16 %v316
        %v415 = vunpack.c.h.b16 %v316
        %v416 = vunpack.c.l.b16 %v317
        %v417 = vunpack.c.h.b16 %v317
        %v418 = vunpack.c.l.b16 %v318
        %v419 = vunpack.c.h.b16 %v318
        %v420 = vunpack.c.l.b16 %v319
        %v421 = vunpack.c.h.b16 %v319
        %v422 = vunpack.c.l.b16 %v320
        %v423 = vunpack.c.h.b16 %v320
        %v424 = vunpack.c.l.b16 %v321
        %v425 = vunpack.c.h.b16 %v321
        %v426 = vunpack.c.l.b16 %v322
        %v427 = vunpack.c.h.b16 %v322
        %v428 = vunpack.c.l.b16 %v323
        %v429 = vunpack.c.h.b16 %v323
        %v430 = vpack.c.b16 %v370, %v366
        %v431 = vpack.c.b16 %v371, %v367
        %v432 = vpack.c.b16 %v372, %v368
        %v433 = vpack.c.b16 %v373, %v369
        %v434 = vpack.c.b16 %v378, %v374
        %v435 = vpack.c.b16 %v379, %v375
        %v436 = vpack.c.b16 %v380, %v376
        %v437 = vpack.c.b16 %v381, %v377
        %v438 = vpack.c.b16 %v386, %v382
        %v439 = vpack.c.b16 %v387, %v383
        %v440 = vpack.c.b16 %v388, %v384
        %v441 = vpack.c.b16 %v389, %v385
        %v442 = vpack.c.b16 %v394, %v390
        %v443 = vpack.c.b16 %v395, %v391
        %v444 = vpack.c.b16 %v396, %v392
        %v445 = vpack.c.b16 %v397, %v393
        %v446 = vpack.c.b16 %v402, %v398
        %v447 = vpack.c.b16 %v403, %v399
        %v448 = vpack.c.b16 %v404, %v400
        %v449 = vpack.c.b16 %v405, %v401
        %v450 = vpack.c.b16 %v410, %v406
        %v451 = vpack.c.b16 %v411, %v407
        %v452 = vpack.c.b16 %v412, %v408
        %v453 = vpack.c.b16 %v413, %v409
        %v454 = vpack.c.b16 %v418, %v414
        %v455 = vpack.c.b16 %v419, %v415
        %v456 = vpack.c.b16 %v420, %v416
        %v457 = vpack.c.b16 %v421, %v417
        %v458 = vpack.c.b16 %v426, %v422
        %v459 = vpack.c.b16 %v427, %v423
        %v460 = vpack.c.b16 %v428, %v424
        %v461 = vpack.c.b16 %v429, %v425
        %494 = vmatpush.bf16.msra.mxu0 %v458
        %495 = vmatpush.bf16.msra.mxu0 %v454
        %496 = vmatpush.bf16.msra.mxu0 %v450
        %497 = vmatpush.bf16.msra.mxu0 %v446
        %498 = vmatpush.bf16.msra.mxu0 %v442
        %499 = vmatpush.bf16.msra.mxu0 %v438
        %500 = vmatpush.bf16.msra.mxu0 %v434
        %501 = vmatpush.bf16.msra.mxu0 %v430
        %502 = vmatmul.bf16.gmra.mxu0 %v291
        %v503 = vpop.f32.mrf.mxu0
        %v504 = vadd.f32 %v326, %v503
        %v505 = vpop.f32.mrf.mxu0
        %506 = vdwg.mxu0
        %507 = vmatpush.bf16.msra.mxu0 %v459
        %508 = vmatpush.bf16.msra.mxu0 %v455
        %509 = vmatpush.bf16.msra.mxu0 %v451
        %510 = vmatpush.bf16.msra.mxu0 %v447
        %511 = vmatpush.bf16.msra.mxu0 %v443
        %512 = vmatpush.bf16.msra.mxu0 %v439
        %513 = vmatpush.bf16.msra.mxu0 %v435
        %514 = vmatpush.bf16.msra.mxu0 %v431
        %515 = vmatmul.bf16.gmra.mxu0 %v291
        %v516 = vpop.f32.mrf.mxu0
        %v517 = vadd.f32 %v327, %v516
        %v518 = vpop.f32.mrf.mxu0
        %519 = vdwg.mxu0
        %520 = vmatpush.bf16.msra.mxu0 %v460
        %521 = vmatpush.bf16.msra.mxu0 %v456
        %522 = vmatpush.bf16.msra.mxu0 %v452
        %523 = vmatpush.bf16.msra.mxu0 %v448
        %524 = vmatpush.bf16.msra.mxu0 %v444
        %525 = vmatpush.bf16.msra.mxu0 %v440
        %526 = vmatpush.bf16.msra.mxu0 %v436
        %527 = vmatpush.bf16.msra.mxu0 %v432
        %528 = vmatmul.bf16.gmra.mxu0 %v291
        %v529 = vpop.f32.mrf.mxu0
        %v530 = vadd.f32 %v328, %v529
        %v531 = vpop.f32.mrf.mxu0
        %532 = vdwg.mxu0
        %533 = vmatpush.bf16.msra.mxu0 %v461
        %534 = vmatpush.bf16.msra.mxu0 %v457
        %535 = vmatpush.bf16.msra.mxu0 %v453
        %536 = vmatpush.bf16.msra.mxu0 %v449
        %537 = vmatpush.bf16.msra.mxu0 %v445
        %538 = vmatpush.bf16.msra.mxu0 %v441
        %539 = vmatpush.bf16.msra.mxu0 %v437
        %540 = vmatpush.bf16.msra.mxu0 %v433
        %541 = vmatmul.bf16.gmra.mxu0 %v291
        %v542 = vpop.f32.mrf.mxu0
        %v543 = vadd.f32 %v329, %v542
        %v544 = vpop.f32.mrf.mxu0
        %545 = vdwg.mxu0
        %v546 = vmul.f32 %v504, %v504
        %v547 = vmul.f32 %v517, %v517
        %v548 = vmul.f32 %v530, %v530
        %v549 = vmul.f32 %v543, %v543
        %v550 = vmul.f32 %v504, %v546
        %v551 = vmul.f32 %v517, %v547
        %v552 = vmul.f32 %v530, %v548
        %v553 = vmul.f32 %v543, %v549
        %v554 = vmul.f32 %v550, 0.044715
        %v555 = vmul.f32 %v551, 0.044715
        %v556 = vmul.f32 %v552, 0.044715
        %v557 = vmul.f32 %v553, 0.044715
        %v558 = vadd.f32 %v504, %v554
        %v559 = vadd.f32 %v517, %v555
        %v560 = vadd.f32 %v530, %v556
        %v561 = vadd.f32 %v543, %v557
        %v562 = vmul.f32 %v558, 0.7978846
        %v563 = vmul.f32 %v559, 0.7978846
        %v564 = vmul.f32 %v560, 0.7978846
        %v565 = vmul.f32 %v561, 0.7978846
        %v566 = vtanh.pop %v562
        %v567 = vtanh.pop %v563
        %v568 = vtanh.pop %v564
        %v569 = vtanh.pop %v565
        %v570 = vadd.f32 %v566, 1.0
        %v571 = vadd.f32 %v567, 1.0
        %v572 = vadd.f32 %v568, 1.0
        %v573 = vadd.f32 %v569, 1.0
        %v574 = vmul.f32 %v570, 0.5
        %v575 = vmul.f32 %v571, 0.5
        %v576 = vmul.f32 %v572, 0.5
        %v577 = vmul.f32 %v573, 0.5
        %v578 = vmul.f32 %v504, %v574
        %v579 = vmul.f32 %v517, %v575
        %v580 = vmul.f32 %v530, %v576
        %v581 = vmul.f32 %v543, %v577
        %v582 = vpack.c.bf16 %v578, %v578
        %v583 = vpack.c.bf16 %v579, %v579
        %v584 = vpack.c.bf16 %v580, %v580
        %v585 = vpack.c.bf16 %v581, %v581
        %v586 = vld [vmem:[#allocation2] sm:$0xf]
        %v587 = vld [vmem:[#allocation2 + $0x4] sm:$0xf]
        %v588 = vld [vmem:[#allocation2 + $0x8] sm:$0xf]
        %v589 = vld [vmem:[#allocation2 + $0xc] sm:$0xf]
        %v590 = vld [vmem:[#allocation2 + $0x10] sm:$0xf]
        %v591 = vld [vmem:[#allocation2 + $0x14] sm:$0xf]
        %v592 = vld [vmem:[#allocation2 + $0x18] sm:$0xf]
        %v593 = vld [vmem:[#allocation2 + $0x1c] sm:$0xf]
        %v594 = vld [vmem:[#allocation2 + $0x20] sm:$0xf]
        %v595 = vld [vmem:[#allocation2 + $0x24] sm:$0xf]
        %v596 = vld [vmem:[#allocation2 + $0x28] sm:$0xf]
        %v597 = vld [vmem:[#allocation2 + $0x2c] sm:$0xf]
        %v598 = vld [vmem:[#allocation2 + $0x30] sm:$0xf]
        %v599 = vld [vmem:[#allocation2 + $0x34] sm:$0xf]
        %v600 = vld [vmem:[#allocation2 + $0x38] sm:$0xf]
        %v601 = vld [vmem:[#allocation2 + $0x3c] sm:$0xf]
        %v602 = vld [vmem:[#allocation2 + $0x40] sm:$0xf]
        %v603 = vld [vmem:[#allocation2 + $0x44] sm:$0xf]
        %v604 = vld [vmem:[#allocation2 + $0x48] sm:$0xf]
        %v605 = vld [vmem:[#allocation2 + $0x4c] sm:$0xf]
        %v606 = vld [vmem:[#allocation2 + $0x50] sm:$0xf]
        %v607 = vld [vmem:[#allocation2 + $0x54] sm:$0xf]
        %v608 = vld [vmem:[#allocation2 + $0x58] sm:$0xf]
        %v609 = vld [vmem:[#allocation2 + $0x5c] sm:$0xf]
        %v610 = vld [vmem:[#allocation2 + $0x60] sm:$0xf]
        %v611 = vld [vmem:[#allocation2 + $0x64] sm:$0xf]
        %v612 = vld [vmem:[#allocation2 + $0x68] sm:$0xf]
        %v613 = vld [vmem:[#allocation2 + $0x6c] sm:$0xf]
        %v614 = vld [vmem:[#allocation2 + $0x70] sm:$0xf]
        %v615 = vld [vmem:[#allocation2 + $0x74] sm:$0xf]
        %v616 = vld [vmem:[#allocation2 + $0x78] sm:$0xf]
        %v617 = vld [vmem:[#allocation2 + $0x7c] sm:$0xf]
        %v618 = vld [vmem:[#allocation2 + $0x80] sm:$0xf]
        %v619 = vld [vmem:[#allocation2 + $0x84] sm:$0xf]
        %v620 = vld [vmem:[#allocation2 + $0x88] sm:$0xf]
        %v621 = vld [vmem:[#allocation2 + $0x8c] sm:$0xf]
        %v622 = vld [vmem:[#allocation2 + $0x90] sm:$0xf]
        %v623 = vld [vmem:[#allocation2 + $0x94] sm:$0xf]
        %v624 = vld [vmem:[#allocation2 + $0x98] sm:$0xf]
        %v625 = vld [vmem:[#allocation2 + $0x9c] sm:$0xf]
        %v626 = vld [vmem:[#allocation2 + $0xa0] sm:$0xf]
        %v627 = vld [vmem:[#allocation2 + $0xa4] sm:$0xf]
        %v628 = vld [vmem:[#allocation2 + $0xa8] sm:$0xf]
        %v629 = vld [vmem:[#allocation2 + $0xac] sm:$0xf]
        %v630 = vld [vmem:[#allocation2 + $0xb0] sm:$0xf]
        %v631 = vld [vmem:[#allocation2 + $0xb4] sm:$0xf]
        %v632 = vld [vmem:[#allocation2 + $0xb8] sm:$0xf]
        %v633 = vld [vmem:[#allocation2 + $0xbc] sm:$0xf]
        %v634 = vld [vmem:[#allocation2 + $0xc0] sm:$0xf]
        %v635 = vld [vmem:[#allocation2 + $0xc4] sm:$0xf]
        %v636 = vld [vmem:[#allocation2 + $0xc8] sm:$0xf]
        %v637 = vld [vmem:[#allocation2 + $0xcc] sm:$0xf]
        %v638 = vld [vmem:[#allocation2 + $0xd0] sm:$0xf]
        %v639 = vld [vmem:[#allocation2 + $0xd4] sm:$0xf]
        %v640 = vld [vmem:[#allocation2 + $0xd8] sm:$0xf]
        %v641 = vld [vmem:[#allocation2 + $0xdc] sm:$0xf]
        %v642 = vld [vmem:[#allocation2 + $0xe0] sm:$0xf]
        %v643 = vld [vmem:[#allocation2 + $0xe4] sm:$0xf]
        %v644 = vld [vmem:[#allocation2 + $0xe8] sm:$0xf]
        %v645 = vld [vmem:[#allocation2 + $0xec] sm:$0xf]
        %v646 = vld [vmem:[#allocation2 + $0xf0] sm:$0xf]
        %v647 = vld [vmem:[#allocation2 + $0xf4] sm:$0xf]
        %v648 = vld [vmem:[#allocation2 + $0xf8] sm:$0xf]
        %v649 = vld [vmem:[#allocation2 + $0xfc] sm:$0xf]
        %v650 = vld [vmem:[%s4] sm:$0x1]
        %v652 = vperm.slane %v650, 0
        %v718 = vunpack.c.l.b16 %v586
        %v719 = vunpack.c.l.b16 %v587
        %v720 = vunpack.c.l.b16 %v588
        %v721 = vunpack.c.l.b16 %v589
        %v722 = vunpack.c.l.b16 %v590
        %v723 = vunpack.c.l.b16 %v591
        %v724 = vunpack.c.l.b16 %v592
        %v725 = vunpack.c.l.b16 %v593
        %v726 = vunpack.c.l.b16 %v594
        %v727 = vunpack.c.l.b16 %v595
        %v728 = vunpack.c.l.b16 %v596
        %v729 = vunpack.c.l.b16 %v597
        %v730 = vunpack.c.l.b16 %v598
        %v731 = vunpack.c.l.b16 %v599
        %v732 = vunpack.c.l.b16 %v600
        %v733 = vunpack.c.l.b16 %v601
        %v734 = vunpack.c.l.b16 %v602
        %v735 = vunpack.c.l.b16 %v603
        %v736 = vunpack.c.l.b16 %v604
        %v737 = vunpack.c.l.b16 %v605
        %v738 = vunpack.c.l.b16 %v606
        %v739 = vunpack.c.l.b16 %v607
        %v740 = vunpack.c.l.b16 %v608
        %v741 = vunpack.c.l.b16 %v609
        %v742 = vunpack.c.l.b16 %v610
        %v743 = vunpack.c.l.b16 %v611
        %v744 = vunpack.c.l.b16 %v612
        %v745 = vunpack.c.l.b16 %v613
        %v746 = vunpack.c.l.b16 %v614
        %v747 = vunpack.c.l.b16 %v615
        %v748 = vunpack.c.l.b16 %v616
        %v749 = vunpack.c.l.b16 %v617
        %v750 = vunpack.c.l.b16 %v618
        %v751 = vunpack.c.l.b16 %v619
        %v752 = vunpack.c.l.b16 %v620
        %v753 = vunpack.c.l.b16 %v621
        %v754 = vunpack.c.l.b16 %v622
        %v755 = vunpack.c.l.b16 %v623
        %v756 = vunpack.c.l.b16 %v624
        %v757 = vunpack.c.l.b16 %v625
        %v758 = vunpack.c.l.b16 %v626
        %v759 = vunpack.c.l.b16 %v627
        %v760 = vunpack.c.l.b16 %v628
        %v761 = vunpack.c.l.b16 %v629
        %v762 = vunpack.c.l.b16 %v630
        %v763 = vunpack.c.l.b16 %v631
        %v764 = vunpack.c.l.b16 %v632
        %v765 = vunpack.c.l.b16 %v633
        %v766 = vunpack.c.l.b16 %v634
        %v767 = vunpack.c.l.b16 %v635
        %v768 = vunpack.c.l.b16 %v636
        %v769 = vunpack.c.l.b16 %v637
        %v770 = vunpack.c.l.b16 %v638
        %v771 = vunpack.c.l.b16 %v639
        %v772 = vunpack.c.l.b16 %v640
        %v773 = vunpack.c.l.b16 %v641
        %v774 = vunpack.c.l.b16 %v642
        %v775 = vunpack.c.l.b16 %v643
        %v776 = vunpack.c.l.b16 %v644
        %v777 = vunpack.c.l.b16 %v645
        %v778 = vunpack.c.l.b16 %v646
        %v779 = vunpack.c.l.b16 %v647
        %v780 = vunpack.c.l.b16 %v648
        %v781 = vunpack.c.l.b16 %v649
        %v782 = vpack.c.b16 %v719, %v718
        %v783 = vpack.c.b16 %v721, %v720
        %v784 = vpack.c.b16 %v723, %v722
        %v785 = vpack.c.b16 %v725, %v724
        %v786 = vpack.c.b16 %v727, %v726
        %v787 = vpack.c.b16 %v729, %v728
        %v788 = vpack.c.b16 %v731, %v730
        %v789 = vpack.c.b16 %v733, %v732
        %v790 = vpack.c.b16 %v735, %v734
        %v791 = vpack.c.b16 %v737, %v736
        %v792 = vpack.c.b16 %v739, %v738
        %v793 = vpack.c.b16 %v741, %v740
        %v794 = vpack.c.b16 %v743, %v742
        %v795 = vpack.c.b16 %v745, %v744
        %v796 = vpack.c.b16 %v747, %v746
        %v797 = vpack.c.b16 %v749, %v748
        %v798 = vpack.c.b16 %v751, %v750
        %v799 = vpack.c.b16 %v753, %v752
        %v800 = vpack.c.b16 %v755, %v754
        %v801 = vpack.c.b16 %v757, %v756
        %v802 = vpack.c.b16 %v759, %v758
        %v803 = vpack.c.b16 %v761, %v760
        %v804 = vpack.c.b16 %v763, %v762
        %v805 = vpack.c.b16 %v765, %v764
        %v806 = vpack.c.b16 %v767, %v766
        %v807 = vpack.c.b16 %v769, %v768
        %v808 = vpack.c.b16 %v771, %v770
        %v809 = vpack.c.b16 %v773, %v772
        %v810 = vpack.c.b16 %v775, %v774
        %v811 = vpack.c.b16 %v777, %v776
        %v812 = vpack.c.b16 %v779, %v778
        %v813 = vpack.c.b16 %v781, %v780
        %846 = vmatpush.bf16.msra.mxu0 %v789
        %847 = vmatpush.bf16.msra.mxu0 %v788
        %848 = vmatpush.bf16.msra.mxu0 %v787
        %849 = vmatpush.bf16.msra.mxu0 %v786
        %850 = vmatpush.bf16.msra.mxu0 %v785
        %851 = vmatpush.bf16.msra.mxu0 %v784
        %852 = vmatpush.bf16.msra.mxu0 %v783
        %853 = vmatpush.bf16.msra.mxu0 %v782
        %854 = vmatmul.bf16.gmra.mxu0 %v582
        %v855 = vpop.f32.mrf.mxu0
        %v856 = vadd.f32 %v652, %v855
        %v857 = vpop.f32.mrf.mxu0
        %858 = vdwg.mxu0
        %859 = vmatpush.bf16.msra.mxu0 %v797
        %860 = vmatpush.bf16.msra.mxu0 %v796
        %861 = vmatpush.bf16.msra.mxu0 %v795
        %862 = vmatpush.bf16.msra.mxu0 %v794
        %863 = vmatpush.bf16.msra.mxu0 %v793
        %864 = vmatpush.bf16.msra.mxu0 %v792
        %865 = vmatpush.bf16.msra.mxu0 %v791
        %866 = vmatpush.bf16.msra.mxu0 %v790
        %867 = vmatmul.bf16.gmra.mxu0 %v583
        %v868 = vpop.f32.mrf.mxu0
        %v869 = vadd.f32 %v856, %v868
        %v870 = vpop.f32.mrf.mxu0
        %871 = vdwg.mxu0
        %872 = vmatpush.bf16.msra.mxu0 %v805
        %873 = vmatpush.bf16.msra.mxu0 %v804
        %874 = vmatpush.bf16.msra.mxu0 %v803
        %875 = vmatpush.bf16.msra.mxu0 %v802
        %876 = vmatpush.bf16.msra.mxu0 %v801
        %877 = vmatpush.bf16.msra.mxu0 %v800
        %878 = vmatpush.bf16.msra.mxu0 %v799
        %879 = vmatpush.bf16.msra.mxu0 %v798
        %880 = vmatmul.bf16.gmra.mxu0 %v584
        %v881 = vpop.f32.mrf.mxu0
        %v882 = vadd.f32 %v869, %v881
        %v883 = vpop.f32.mrf.mxu0
        %884 = vdwg.mxu0
        %885 = vmatpush.bf16.msra.mxu0 %v813
        %886 = vmatpush.bf16.msra.mxu0 %v812
        %887 = vmatpush.bf16.msra.mxu0 %v811
        %888 = vmatpush.bf16.msra.mxu0 %v810
        %889 = vmatpush.bf16.msra.mxu0 %v809
        %890 = vmatpush.bf16.msra.mxu0 %v808
        %891 = vmatpush.bf16.msra.mxu0 %v807
        %892 = vmatpush.bf16.msra.mxu0 %v806
        %893 = vmatmul.bf16.gmra.mxu0 %v585
        %v894 = vpop.f32.mrf.mxu0
        %v895 = vadd.f32 %v882, %v894
        %v896 = vpop.f32.mrf.mxu0
        %897 = vdwg.mxu0
        %v898 = vunpack.c.l.bf16 %v291
        %v899 = vadd.f32 %v895, %v898
        %900 = vadd.xlane.f32.xlu0 %v899
        %v901 = vpop.xlane.xlu0 %900
        %v902 = vrcp.pop 128.0
        %v903 = vmul.f32 128.0, %v902
        %v904 = vsub.f32 1.0, %v903
        %v905 = vmul.f32 %v902, %v904
        %v906 = vadd.f32 %v902, %v905
        %vm907 = vweird.f32 %v902
        %v908 = vsel %vm907, %v902, %v906
        %v909 = vmul.f32 %v901, %v908
        %v910 = vsub.f32 %v899, %v909
        %v911 = vmul.f32 %v910, %v910
        %912 = vadd.xlane.f32.xlu0 %v911
        %v913 = vpop.xlane.xlu0 %912
        %v914 = vmul.f32 %v913, %v908
        %v915 = vadd.f32 %v914, 1e-12
        %v916 = vrsqrt.pop %v915
        %v917 = vmul.f32 %v916, %v915
        %v918 = vmul.f32 %v917, %v916
        %v919 = vmul.f32 0.5, %v918
        %v920 = vsub.f32 1.5, %v919
        %v921 = vmul.f32 %v916, %v920
        %vm922 = vweird.f32 %v915
        %vm923 = vweird.f32 %v916
        %vm924 = vmor %vm922, %vm923
        %v925 = vsel %vm924, %v916, %v921
        %v926 = vmul.f32 %v910, %v925
        %v927 = vld [vmem:[%s5] sm:$0x1]
        %v929 = vperm.slane %v927, 0
        %v931 = vmul.f32 %v926, %v929
        %v932 = vld [vmem:[%s6] sm:$0x1]
        %v934 = vperm.slane %v932, 0
        %v936 = vadd.f32 %v931, %v934
        %v937 = vpack.c.bf16 %v936, %v936
        %938 = vst [vmem:[%s290] sm:$0xf] %v937
        %p939 = scmp.lt.s32.totalorder %s19, 1
        %s940 = scalar_select %p939, %s19, 1
        %s941 = smul.addr %s940, 4
        %s942 = scalar_lea.vmem %s7, %s941
        // Predicated region
        $region53: #{bert_base_cased_forward.10} parent=47 // pred_check
          %p943 = pneg %p189
        $region54: #{bert_base_cased_forward.10} parent=47 // pred_check_branch
          %945 = sbr.rel (%p943) target = $region56
        $region55: #{bert_base_cased_forward.10} parent=47 // pred_region
          _
        $region56: #{bert_base_cased_forward.10} parent=47 // pred_fallthru
          _
      $region48: #{bert_base_cased_forward.10} parent=5 // pred_fallthru
        _
      %p946 = scmp.le.s32.totalorder 2, %s14
      // Predicated region
      $region57: #{bert_base_cased_forward.10} parent=5 // pred_check
        %p947 = pneg %p946
      $region58: #{bert_base_cased_forward.10} parent=5 // pred_check_branch
        %949 = sbr.rel (%p947) target = $region60
      $region59: #{bert_base_cased_forward.10} parent=5 // pred_region
        %s950 = ssub.s32 %s14, 2
        // Predicated region
        $region61: #{bert_base_cased_forward.10} parent=59 // pred_check
          %p951 = pneg %p195
        $region62: #{bert_base_cased_forward.10} parent=59 // pred_check_branch
          %953 = sbr.rel (%p951) target = $region64
        $region63: #{bert_base_cased_forward.10} parent=59 // pred_region
          %p954 = scmp.lt.s32.totalorder %s20, 1
          %s955 = scalar_select %p954, %s20, 1
          %s956 = smul.addr %s955, 4
          %s957 = scalar_lea.vmem %s7, %s956
        $region64: #{bert_base_cased_forward.10} parent=59 // pred_fallthru
          _
      $region60: #{bert_base_cased_forward.10} parent=5 // pred_fallthru
        _
    $region6: #{bert_base_cased_forward.10} parent=1 // loop_footer
      %s18 = sadd.s32 1, %s14
    $region7: #{bert_base_cased_forward.10} parent=1 // loop_footer_branch
      %13 = sbr.rel target = $region3
    $region8: #{bert_base_cased_forward.10} parent=1 // loop_exit
      _
    %958 = vsyncpa [#allocation3], 1
    %s959 = scalar_lea.sflag [#allocation3], 1
    %960 = vsyncpa %s959, 1

// kernel: bert_base_cased_forward.13
$region0: #{bert_base_cased_forward.13}
  #allocation0 [shape = 'u32[]', space=smem, size = 0x4, offset = 0x4, fixed_abs, tag = 'smem constant byte address 0x4 - core index']
  #allocation1 [shape = 'u32[72,128]{1,0:T(1,128)}', space=vmem, size = 0x9000, scoped, tag = 'internal scratch']
  %s0 = inlined_call_operand.vmem [shape: bf16[16,128], index: 0, kind: input, shape index: {}]
  %s1 = inlined_call_operand.hbm [shape: bf16[128,512], index: 1, kind: input, shape index: {}]
  %s2 = inlined_call_operand.vmem [shape: f32[1,512], index: 2, kind: input, shape index: {}]
  %s3 = inlined_call_operand.hbm [shape: bf16[512,128], index: 3, kind: input, shape index: {}]
  %s4 = inlined_call_operand.vmem [shape: f32[1,128], index: 4, kind: input, shape index: {}]
  %s5 = inlined_call_operand.vmem [shape: f32[1,128], index: 5, kind: input, shape index: {}]
  %s6 = inlined_call_operand.vmem [shape: f32[1,128], index: 6, kind: input, shape index: {}]
  %s7 = inlined_call_operand.hbm [shape: bf16[128,128], index: 7, kind: input, shape index: {}]
  %s8 = inlined_call_operand.vmem [shape: f32[1,128], index: 8, kind: input, shape index: {}]
  %s9 = inlined_call_operand.hbm [shape: bf16[16,128], index: 9, kind: output, shape index: {0}]
  %s10 = inlined_call_operand.vmem [shape: f32[16,128], index: 10, kind: output, shape index: {1}]
  %11 = xla_tuple %s9, %s10
  %s12 = sld [smem:[#allocation0]]
  $region89: #{bert_base_cased_forward.13} parent=0
    _
  %s14 = ssub.s32 1, %s12
  %s15 = scalar_select 0, %s14, %s12
  $region1: #{bert_base_cased_forward.13} parent=0
    #allocation2 [shape = 'u8[131072]{0}', space=vmem, size = 0x20000, scoped, tag = 'input window, operand 1, single buffered']
    #allocation3 [shape = 's32[2]{0}', space=sflag, size = 0x8, scoped, tag = 'scoped memory for bert_base_cased_forward.13']
    #allocation4 [shape = 's32[2]{0}', space=sflag, size = 0x8, scoped, tag = 'scoped memory for bert_base_cased_forward.13']
    #allocation5 [shape = 'u8[131072]{0}', space=vmem, size = 0x20000, scoped, tag = 'input window, operand 3, single buffered']
    #allocation6 [shape = 's32[1]{0}', space=sflag, size = 0x4, scoped, tag = 'scoped memory for bert_base_cased_forward.13']
    #allocation7 [shape = 'u8[32768]{0}', space=vmem, size = 0x8000, scoped, tag = 'input window, operand 7, single buffered']
    #allocation8 [shape = 'u8[4096]{0}', space=vmem, size = 0x1000, scoped, tag = 'output window, operand 0']
    %16 = vsyncpa [#allocation3], 0
    %17 = vsyncpa [#allocation6], 0
    %18 = vsyncpa [#allocation4], 0
    %s19 = scalar_lea.sflag [#allocation4], 1
    %20 = vsyncpa %s19, 0
    loop: start=0, step=1, limit=4
    $region2: #{bert_base_cased_forward.13} parent=1 // loop_pre_header
      _
    $region3: #{bert_base_cased_forward.13} parent=1 // loop_header
      %s22 = sphi 0, %s26
      %p23 = scmp.ge.s32.totalorder %s22, 4
      %s32 = sphi 0, %s34
      %s35 = sphi 0, %s32
      %s36 = sphi 0, %s35
      %s52 = sphi 0, %s36
      %s56 = sphi 0, %s56
      %s58 = sphi 0, %s56
      %s59 = sphi 0, %s58
      %s73 = sphi 0, %s59
      %s77 = sphi 0, %s77
      %s79 = sphi 0, %s77
      %s80 = sphi 0, %s79
      %s94 = sphi 0, %s80
      %s98 = sphi 0, %s98
      %s100 = sphi 0, %s98
      %s101 = sphi 0, %s100
      %s115 = sphi 0, %s101
      %s119 = sphi 0, %s119
      %s121 = sphi 0, %s119
      %s122 = sphi 0, %s121
      %s136 = sphi 0, %s122
      %s140 = sphi 0, %s140
      %s142 = sphi 0, %s140
      %s143 = sphi 0, %s142
      %s157 = sphi 0, %s143
      %s161 = sphi 0, %s161
      %s163 = sphi 0, %s161
      %s164 = sphi 0, %s163
      %s178 = sphi 0, %s164
      %s182 = sphi 0, %s182
      %s184 = sphi 0, %s182
      %s185 = sphi 0, %s184
      %s199 = sphi 0, %s185
      %s203 = sphi 0, %s203
      %s205 = sphi 0, %s203
      %s206 = sphi 0, %s205
      %s220 = sphi 0, %s206
      %s226 = sphi 0, %s228
      %s229 = sphi 0, %s226
      %s230 = sphi 0, %s229
      %s246 = sphi 0, %s230
      %s252 = sphi 0, %s254
      %s255 = sphi 0, %s252
      %s256 = sphi 0, %s255
      %s272 = sphi 0, %s256
    $region4: #{bert_base_cased_forward.13} parent=1 // loop_header_branch
      %25 = sbr.rel (%p23) target = $region8
    $region5: #{bert_base_cased_forward.13} parent=1 // loop_body
      %s27 = ssub.s32 %s22, 1
      %s28 = ssub.s32 %s22, 2
      %s29 = sadd.s32 %s22, 1
      %s30 = ssub.s32 %s22, %s29
      %p31 = scmp.eq.s32.totalorder %s30, 0
      %s33 = sadd.s32 %s32, 1
      %s34 = scalar_select %p31, %s32, %s33
      %p37 = pneg %p31
      %p38 = scmp.eq.s32.totalorder %s22, 1
      %p39 = por %p37, %p38
      %p40 = scmp.ne.s32.totalorder %s32, %s35
      %p41 = scmp.eq.s32.totalorder %s22, 0
      %p42 = por %p40, %p41
      %p43 = scmp.ne.s32.totalorder %s32, %s35
      %p44 = scmp.eq.s32.totalorder %s27, 1
      %p45 = por %p43, %p44
      %p46 = scmp.ne.s32.totalorder %s35, %s36
      %p47 = scmp.eq.s32.totalorder %s27, 0
      %p48 = por %p46, %p47
      %p49 = scmp.ne.s32.totalorder %s35, %s36
      %p50 = scmp.eq.s32.totalorder %s28, 1
      %p51 = por %p49, %p50
      %p53 = scmp.ne.s32.totalorder %s36, %s52
      %p54 = scmp.eq.s32.totalorder %s28, 0
      %p55 = por %p53, %p54
      %s57 = sadd.s32 %s56, 1
      %p60 = scmp.eq.s32.totalorder %s22, 1
      %p61 = scmp.ne.s32.totalorder %s56, %s58
      %p62 = scmp.eq.s32.totalorder %s22, 0
      %p63 = por %p61, %p62
      %p64 = scmp.ne.s32.totalorder %s56, %s58
      %p65 = scmp.eq.s32.totalorder %s27, 1
      %p66 = por %p64, %p65
      %p67 = scmp.ne.s32.totalorder %s58, %s59
      %p68 = scmp.eq.s32.totalorder %s27, 0
      %p69 = por %p67, %p68
      %p70 = scmp.ne.s32.totalorder %s58, %s59
      %p71 = scmp.eq.s32.totalorder %s28, 1
      %p72 = por %p70, %p71
      %p74 = scmp.ne.s32.totalorder %s59, %s73
      %p75 = scmp.eq.s32.totalorder %s28, 0
      %p76 = por %p74, %p75
      %s78 = sadd.s32 %s77, 1
      %p81 = scmp.eq.s32.totalorder %s22, 1
      %p82 = scmp.ne.s32.totalorder %s77, %s79
      %p83 = scmp.eq.s32.totalorder %s22, 0
      %p84 = por %p82, %p83
      %p85 = scmp.ne.s32.totalorder %s77, %s79
      %p86 = scmp.eq.s32.totalorder %s27, 1
      %p87 = por %p85, %p86
      %p88 = scmp.ne.s32.totalorder %s79, %s80
      %p89 = scmp.eq.s32.totalorder %s27, 0
      %p90 = por %p88, %p89
      %p91 = scmp.ne.s32.totalorder %s79, %s80
      %p92 = scmp.eq.s32.totalorder %s28, 1
      %p93 = por %p91, %p92
      %p95 = scmp.ne.s32.totalorder %s80, %s94
      %p96 = scmp.eq.s32.totalorder %s28, 0
      %p97 = por %p95, %p96
      %s99 = sadd.s32 %s98, 1
      %p102 = scmp.eq.s32.totalorder %s22, 1
      %p103 = scmp.ne.s32.totalorder %s98, %s100
      %p104 = scmp.eq.s32.totalorder %s22, 0
      %p105 = por %p103, %p104
      %p106 = scmp.ne.s32.totalorder %s98, %s100
      %p107 = scmp.eq.s32.totalorder %s27, 1
      %p108 = por %p106, %p107
      %p109 = scmp.ne.s32.totalorder %s100, %s101
      %p110 = scmp.eq.s32.totalorder %s27, 0
      %p111 = por %p109, %p110
      %p112 = scmp.ne.s32.totalorder %s100, %s101
      %p113 = scmp.eq.s32.totalorder %s28, 1
      %p114 = por %p112, %p113
      %p116 = scmp.ne.s32.totalorder %s101, %s115
      %p117 = scmp.eq.s32.totalorder %s28, 0
      %p118 = por %p116, %p117
      %s120 = sadd.s32 %s119, 1
      %p123 = scmp.eq.s32.totalorder %s22, 1
      %p124 = scmp.ne.s32.totalorder %s119, %s121
      %p125 = scmp.eq.s32.totalorder %s22, 0
      %p126 = por %p124, %p125
      %p127 = scmp.ne.s32.totalorder %s119, %s121
      %p128 = scmp.eq.s32.totalorder %s27, 1
      %p129 = por %p127, %p128
      %p130 = scmp.ne.s32.totalorder %s121, %s122
      %p131 = scmp.eq.s32.totalorder %s27, 0
      %p132 = por %p130, %p131
      %p133 = scmp.ne.s32.totalorder %s121, %s122
      %p134 = scmp.eq.s32.totalorder %s28, 1
      %p135 = por %p133, %p134
      %p137 = scmp.ne.s32.totalorder %s122, %s136
      %p138 = scmp.eq.s32.totalorder %s28, 0
      %p139 = por %p137, %p138
      %s141 = sadd.s32 %s140, 1
      %p144 = scmp.eq.s32.totalorder %s22, 1
      %p145 = scmp.ne.s32.totalorder %s140, %s142
      %p146 = scmp.eq.s32.totalorder %s22, 0
      %p147 = por %p145, %p146
      %p148 = scmp.ne.s32.totalorder %s140, %s142
      %p149 = scmp.eq.s32.totalorder %s27, 1
      %p150 = por %p148, %p149
      %p151 = scmp.ne.s32.totalorder %s142, %s143
      %p152 = scmp.eq.s32.totalorder %s27, 0
      %p153 = por %p151, %p152
      %p154 = scmp.ne.s32.totalorder %s142, %s143
      %p155 = scmp.eq.s32.totalorder %s28, 1
      %p156 = por %p154, %p155
      %p158 = scmp.ne.s32.totalorder %s143, %s157
      %p159 = scmp.eq.s32.totalorder %s28, 0
      %p160 = por %p158, %p159
      %s162 = sadd.s32 %s161, 1
      %p165 = scmp.eq.s32.totalorder %s22, 1
      %p166 = scmp.ne.s32.totalorder %s161, %s163
      %p167 = scmp.eq.s32.totalorder %s22, 0
      %p168 = por %p166, %p167
      %p169 = scmp.ne.s32.totalorder %s161, %s163
      %p170 = scmp.eq.s32.totalorder %s27, 1
      %p171 = por %p169, %p170
      %p172 = scmp.ne.s32.totalorder %s163, %s164
      %p173 = scmp.eq.s32.totalorder %s27, 0
      %p174 = por %p172, %p173
      %p175 = scmp.ne.s32.totalorder %s163, %s164
      %p176 = scmp.eq.s32.totalorder %s28, 1
      %p177 = por %p175, %p176
      %p179 = scmp.ne.s32.totalorder %s164, %s178
      %p180 = scmp.eq.s32.totalorder %s28, 0
      %p181 = por %p179, %p180
      %s183 = sadd.s32 %s182, 1
      %p186 = scmp.eq.s32.totalorder %s22, 1
      %p187 = scmp.ne.s32.totalorder %s182, %s184
      %p188 = scmp.eq.s32.totalorder %s22, 0
      %p189 = por %p187, %p188
      %p190 = scmp.ne.s32.totalorder %s182, %s184
      %p191 = scmp.eq.s32.totalorder %s27, 1
      %p192 = por %p190, %p191
      %p193 = scmp.ne.s32.totalorder %s184, %s185
      %p194 = scmp.eq.s32.totalorder %s27, 0
      %p195 = por %p193, %p194
      %p196 = scmp.ne.s32.totalorder %s184, %s185
      %p197 = scmp.eq.s32.totalorder %s28, 1
      %p198 = por %p196, %p197
      %p200 = scmp.ne.s32.totalorder %s185, %s199
      %p201 = scmp.eq.s32.totalorder %s28, 0
      %p202 = por %p200, %p201
      %s204 = sadd.s32 %s203, 1
      %p207 = scmp.eq.s32.totalorder %s22, 1
      %p208 = scmp.ne.s32.totalorder %s203, %s205
      %p209 = scmp.eq.s32.totalorder %s22, 0
      %p210 = por %p208, %p209
      %p211 = scmp.ne.s32.totalorder %s203, %s205
      %p212 = scmp.eq.s32.totalorder %s27, 1
      %p213 = por %p211, %p212
      %p214 = scmp.ne.s32.totalorder %s205, %s206
      %p215 = scmp.eq.s32.totalorder %s27, 0
      %p216 = por %p214, %p215
      %p217 = scmp.ne.s32.totalorder %s205, %s206
      %p218 = scmp.eq.s32.totalorder %s28, 1
      %p219 = por %p217, %p218
      %p221 = scmp.ne.s32.totalorder %s206, %s220
      %p222 = scmp.eq.s32.totalorder %s28, 0
      %p223 = por %p221, %p222
      %s224 = ssub.s32 %s22, %s29
      %p225 = scmp.eq.s32.totalorder %s224, 0
      %s227 = sadd.s32 %s226, 1
      %s228 = scalar_select %p225, %s226, %s227
      %p231 = pneg %p225
      %p232 = scmp.eq.s32.totalorder %s22, 1
      %p233 = por %p231, %p232
      %p234 = scmp.ne.s32.totalorder %s226, %s229
      %p235 = scmp.eq.s32.totalorder %s22, 0
      %p236 = por %p234, %p235
      %p237 = scmp.ne.s32.totalorder %s226, %s229
      %p238 = scmp.eq.s32.totalorder %s27, 1
      %p239 = por %p237, %p238
      %p240 = scmp.ne.s32.totalorder %s229, %s230
      %p241 = scmp.eq.s32.totalorder %s27, 0
      %p242 = por %p240, %p241
      %p243 = scmp.ne.s32.totalorder %s229, %s230
      %p244 = scmp.eq.s32.totalorder %s28, 1
      %p245 = por %p243, %p244
      %p247 = scmp.ne.s32.totalorder %s230, %s246
      %p248 = scmp.eq.s32.totalorder %s28, 0
      %p249 = por %p247, %p248
      %s250 = ssub.s32 %s22, %s29
      %p251 = scmp.eq.s32.totalorder %s250, 0
      %s253 = sadd.s32 %s252, 1
      %s254 = scalar_select %p251, %s252, %s253
      %p257 = pneg %p251
      %p258 = scmp.eq.s32.totalorder %s22, 1
      %p259 = por %p257, %p258
      %p260 = scmp.ne.s32.totalorder %s252, %s255
      %p261 = scmp.eq.s32.totalorder %s22, 0
      %p262 = por %p260, %p261
      %p263 = scmp.ne.s32.totalorder %s252, %s255
      %p264 = scmp.eq.s32.totalorder %s27, 1
      %p265 = por %p263, %p264
      %p266 = scmp.ne.s32.totalorder %s255, %s256
      %p267 = scmp.eq.s32.totalorder %s27, 0
      %p268 = por %p266, %p267
      %p269 = scmp.ne.s32.totalorder %s255, %s256
      %p270 = scmp.eq.s32.totalorder %s28, 1
      %p271 = por %p269, %p270
      %p273 = scmp.ne.s32.totalorder %s256, %s272
      %p274 = scmp.eq.s32.totalorder %s28, 0
      %p275 = por %p273, %p274
      %p276 = scmp.le.s32.totalorder 1, %s22
      %p277 = scmp.lt.s32.totalorder %s22, 3
      %p278 = pnand %p276, %p277
      %p279 = pneg %p278
      // Predicated region
      $region9: #{bert_base_cased_forward.13} parent=5 // pred_check
        _
      $region10: #{bert_base_cased_forward.13} parent=5 // pred_check_branch
        %281 = sbr.rel (%p278) target = $region12
      $region11: #{bert_base_cased_forward.13} parent=5 // pred_region
        %s282 = ssub.s32 %s22, 1
        // Predicated region
        $region13: #{bert_base_cased_forward.13} parent=11 // pred_check
          %p283 = pneg %p69
        $region14: #{bert_base_cased_forward.13} parent=11 // pred_check_branch
          %285 = sbr.rel (%p283) target = $region16
        $region15: #{bert_base_cased_forward.13} parent=11 // pred_region
          %287 = vsyncadd [#allocation3], 0
          %s288 = sshll.u32 %s1, 4
          %s289 = int_to_ptr.hbm [resolvable:$true] %s288
          %s290 = sshll.u32 [#allocation2], 4
          %s291 = int_to_ptr.vmem [resolvable:$true] %s290
          %296 = dma.hbm_to_vmem [thread:$0]  %s289, 4096, %s291, [#allocation3], 256, 256, 16
        $region16: #{bert_base_cased_forward.13} parent=11 // pred_fallthru
          _
        // Predicated region
        $region17: #{bert_base_cased_forward.13} parent=11 // pred_check
          %p297 = pneg %p90
        $region18: #{bert_base_cased_forward.13} parent=11 // pred_check_branch
          %299 = sbr.rel (%p297) target = $region20
        $region19: #{bert_base_cased_forward.13} parent=11 // pred_region
          _
        $region20: #{bert_base_cased_forward.13} parent=11 // pred_fallthru
          _
        // Predicated region
        $region21: #{bert_base_cased_forward.13} parent=11 // pred_check
          %p300 = pneg %p111
        $region22: #{bert_base_cased_forward.13} parent=11 // pred_check_branch
          %302 = sbr.rel (%p300) target = $region24
        $region23: #{bert_base_cased_forward.13} parent=11 // pred_region
          %304 = vsyncadd [#allocation6], 0
          %s305 = sshll.u32 %s3, 4
          %s306 = int_to_ptr.hbm [resolvable:$true] %s305
          %s307 = sshll.u32 [#allocation5], 4
          %s308 = int_to_ptr.vmem [resolvable:$true] %s307
          %313 = dma.hbm_to_vmem [thread:$0]  %s306, 4096, %s308, [#allocation6], 64, 64, 4
        $region24: #{bert_base_cased_forward.13} parent=11 // pred_fallthru
          _
        // Predicated region
        $region25: #{bert_base_cased_forward.13} parent=11 // pred_check
          %p314 = pneg %p132
        $region26: #{bert_base_cased_forward.13} parent=11 // pred_check_branch
          %316 = sbr.rel (%p314) target = $region28
        $region27: #{bert_base_cased_forward.13} parent=11 // pred_region
          _
        $region28: #{bert_base_cased_forward.13} parent=11 // pred_fallthru
          _
        // Predicated region
        $region29: #{bert_base_cased_forward.13} parent=11 // pred_check
          %p317 = pneg %p153
        $region30: #{bert_base_cased_forward.13} parent=11 // pred_check_branch
          %319 = sbr.rel (%p317) target = $region32
        $region31: #{bert_base_cased_forward.13} parent=11 // pred_region
          _
        $region32: #{bert_base_cased_forward.13} parent=11 // pred_fallthru
          _
        // Predicated region
        $region33: #{bert_base_cased_forward.13} parent=11 // pred_check
          %p320 = pneg %p174
        $region34: #{bert_base_cased_forward.13} parent=11 // pred_check_branch
          %322 = sbr.rel (%p320) target = $region36
        $region35: #{bert_base_cased_forward.13} parent=11 // pred_region
          _
        $region36: #{bert_base_cased_forward.13} parent=11 // pred_fallthru
          _
        // Predicated region
        $region37: #{bert_base_cased_forward.13} parent=11 // pred_check
          %p323 = pneg %p195
        $region38: #{bert_base_cased_forward.13} parent=11 // pred_check_branch
          %325 = sbr.rel (%p323) target = $region40
        $region39: #{bert_base_cased_forward.13} parent=11 // pred_region
          %327 = vsyncadd [#allocation6], 0
          %s328 = sshll.u32 %s7, 4
          %s329 = int_to_ptr.hbm [resolvable:$true] %s328
          %s330 = sshll.u32 [#allocation7], 4
          %s331 = int_to_ptr.vmem [resolvable:$true] %s330
          %336 = dma.hbm_to_vmem [thread:$0]  %s329, 1024, %s331, [#allocation6], 64, 64, 4
        $region40: #{bert_base_cased_forward.13} parent=11 // pred_fallthru
          _
        // Predicated region
        $region41: #{bert_base_cased_forward.13} parent=11 // pred_check
          %p337 = pneg %p216
        $region42: #{bert_base_cased_forward.13} parent=11 // pred_check_branch
          %339 = sbr.rel (%p337) target = $region44
        $region43: #{bert_base_cased_forward.13} parent=11 // pred_region
          _
        $region44: #{bert_base_cased_forward.13} parent=11 // pred_fallthru
          _
      $region12: #{bert_base_cased_forward.13} parent=5 // pred_fallthru
        _
      %p340 = scmp.lt.s32.totalorder %s22, 2
      // Predicated region
      $region45: #{bert_base_cased_forward.13} parent=5 // pred_check
        %p341 = pneg %p340
      $region46: #{bert_base_cased_forward.13} parent=5 // pred_check_branch
        %343 = sbr.rel (%p341) target = $region48
      $region47: #{bert_base_cased_forward.13} parent=5 // pred_region
        // Predicated region
        $region49: #{bert_base_cased_forward.13} parent=47 // pred_check
          %p344 = pneg %p42
        $region50: #{bert_base_cased_forward.13} parent=47 // pred_check_branch
          %346 = sbr.rel (%p344) target = $region52
        $region51: #{bert_base_cased_forward.13} parent=47 // pred_region
          %p347 = scmp.lt.s32.totalorder %s22, 1
          %s348 = scalar_select %p347, %s22, 1
          %s349 = smul.addr %s348, 4
          %s350 = scalar_lea.vmem %s0, %s349
        $region52: #{bert_base_cased_forward.13} parent=47 // pred_fallthru
          _
      $region48: #{bert_base_cased_forward.13} parent=5 // pred_fallthru
        _
      %p351 = scmp.le.s32.totalorder 1, %s22
      %p352 = scmp.lt.s32.totalorder %s22, 3
      %p353 = pnand %p351, %p352
      %p354 = pneg %p353
      // Predicated region
      $region53: #{bert_base_cased_forward.13} parent=5 // pred_check
        _
      $region54: #{bert_base_cased_forward.13} parent=5 // pred_check_branch
        %356 = sbr.rel (%p353) target = $region56
      $region55: #{bert_base_cased_forward.13} parent=5 // pred_region
        %s357 = ssub.s32 %s22, 1
        // Predicated region
        $region57: #{bert_base_cased_forward.13} parent=55 // pred_check
          %p358 = pneg %p69
        $region58: #{bert_base_cased_forward.13} parent=55 // pred_check_branch
          %360 = sbr.rel (%p358) target = $region60
        $region59: #{bert_base_cased_forward.13} parent=55 // pred_region
          %362 = dma.done [#allocation3], 4096
        $region60: #{bert_base_cased_forward.13} parent=55 // pred_fallthru
          _
        // Predicated region
        $region61: #{bert_base_cased_forward.13} parent=55 // pred_check
          %p363 = pneg %p111
        $region62: #{bert_base_cased_forward.13} parent=55 // pred_check_branch
          %365 = sbr.rel (%p363) target = $region64
        $region63: #{bert_base_cased_forward.13} parent=55 // pred_region
          %367 = dma.done [#allocation6], 4096
        $region64: #{bert_base_cased_forward.13} parent=55 // pred_fallthru
          _
        // Predicated region
        $region65: #{bert_base_cased_forward.13} parent=55 // pred_check
          %p368 = pneg %p195
        $region66: #{bert_base_cased_forward.13} parent=55 // pred_check_branch
          %370 = sbr.rel (%p368) target = $region68
        $region67: #{bert_base_cased_forward.13} parent=55 // pred_region
          %372 = dma.done [#allocation6], 1024
        $region68: #{bert_base_cased_forward.13} parent=55 // pred_fallthru
          _
        %p373 = scmp.lt.s32.totalorder %s27, 1
        %s374 = scalar_select %p373, %s27, 1
        %s375 = smul.addr %s374, 4
        %s376 = scalar_lea.vmem %s0, %s375
        %p377 = pneg %p48
        %p378 = pneg %p45
        %p379 = pneg %p69
        %p380 = pneg %p66
        %p381 = pneg %p90
        %p382 = pneg %p87
        %p383 = pneg %p111
        %p384 = pneg %p108
        %p385 = pneg %p132
        %p386 = pneg %p129
        %p387 = pneg %p153
        %p388 = pneg %p150
        %p389 = pneg %p174
        %p390 = pneg %p171
        %p391 = pneg %p195
        %p392 = pneg %p192
        %p393 = pneg %p216
        %p394 = pneg %p213
        %p395 = pneg %p242
        %p396 = pneg %p239
        %s397 = sand.u32 %s229, 1
        %s398 = scalar_lea.sflag [#allocation4], %s397
        %s399 = sand.u32 %s229, 1
        %s400 = smul.addr %s399, 4
        %s401 = scalar_lea.vmem [#allocation8], %s400
        %p402 = pneg %p268
        %p403 = pneg %p265
        %p404 = scmp.lt.s32.totalorder %s27, 1
        %s405 = scalar_select %p404, %s27, 1
        %s406 = smul.addr %s405, 8
        %s407 = scalar_lea.vmem %s10, %s406
        %p408 = scmp.lt.s32.totalorder %s27, 1
        %s409 = scalar_select %p408, %s27, 1
        %s410 = smul.addr %s409, 4
        %s411 = scalar_lea.vmem %s0, %s410
        %p412 = scmp.lt.s32.totalorder %s27, 1
        %s413 = scalar_select %p412, %s27, 1
        %s414 = smul.addr %s413, 8
        %s415 = scalar_lea.vmem %s10, %s414
        %v416 = vld [vmem:[%s411] sm:$0xf]
        %v417 = vld [vmem:[#allocation2] sm:$0xff]
        %v418 = vld [vmem:[#allocation2 + $0x8] sm:$0xff]
        %v419 = vld [vmem:[#allocation2 + $0x10] sm:$0xff]
        %v420 = vld [vmem:[#allocation2 + $0x18] sm:$0xff]
        %v421 = vld [vmem:[#allocation2 + $0x20] sm:$0xff]
        %v422 = vld [vmem:[#allocation2 + $0x28] sm:$0xff]
        %v423 = vld [vmem:[#allocation2 + $0x30] sm:$0xff]
        %v424 = vld [vmem:[#allocation2 + $0x38] sm:$0xff]
        %v425 = vld [vmem:[#allocation2 + $0x40] sm:$0xff]
        %v426 = vld [vmem:[#allocation2 + $0x48] sm:$0xff]
        %v427 = vld [vmem:[#allocation2 + $0x50] sm:$0xff]
        %v428 = vld [vmem:[#allocation2 + $0x58] sm:$0xff]
        %v429 = vld [vmem:[#allocation2 + $0x60] sm:$0xff]
        %v430 = vld [vmem:[#allocation2 + $0x68] sm:$0xff]
        %v431 = vld [vmem:[#allocation2 + $0x70] sm:$0xff]
        %v432 = vld [vmem:[#allocation2 + $0x78] sm:$0xff]
        %v433 = vld [vmem:[#allocation2 + $0x80] sm:$0xff]
        %v434 = vld [vmem:[#allocation2 + $0x88] sm:$0xff]
        %v435 = vld [vmem:[#allocation2 + $0x90] sm:$0xff]
        %v436 = vld [vmem:[#allocation2 + $0x98] sm:$0xff]
        %v437 = vld [vmem:[#allocation2 + $0xa0] sm:$0xff]
        %v438 = vld [vmem:[#allocation2 + $0xa8] sm:$0xff]
        %v439 = vld [vmem:[#allocation2 + $0xb0] sm:$0xff]
        %v440 = vld [vmem:[#allocation2 + $0xb8] sm:$0xff]
        %v441 = vld [vmem:[#allocation2 + $0xc0] sm:$0xff]
        %v442 = vld [vmem:[#allocation2 + $0xc8] sm:$0xff]
        %v443 = vld [vmem:[#allocation2 + $0xd0] sm:$0xff]
        %v444 = vld [vmem:[#allocation2 + $0xd8] sm:$0xff]
        %v445 = vld [vmem:[#allocation2 + $0xe0] sm:$0xff]
        %v446 = vld [vmem:[#allocation2 + $0xe8] sm:$0xff]
        %v447 = vld [vmem:[#allocation2 + $0xf0] sm:$0xff]
        %v448 = vld [vmem:[#allocation2 + $0xf8] sm:$0xff]
        %v449 = vld [vmem:[%s2] sm:$0xf]
        %v451 = vperm.slane %v449, 0
        %v452 = vperm.slane %v449, 1
        %v453 = vperm.slane %v449, 2
        %v454 = vperm.slane %v449, 3
        %v491 = vunpack.c.l.b16 %v417
        %v492 = vunpack.c.h.b16 %v417
        %v493 = vunpack.c.l.b16 %v418
        %v494 = vunpack.c.h.b16 %v418
        %v495 = vunpack.c.l.b16 %v419
        %v496 = vunpack.c.h.b16 %v419
        %v497 = vunpack.c.l.b16 %v420
        %v498 = vunpack.c.h.b16 %v420
        %v499 = vunpack.c.l.b16 %v421
        %v500 = vunpack.c.h.b16 %v421
        %v501 = vunpack.c.l.b16 %v422
        %v502 = vunpack.c.h.b16 %v422
        %v503 = vunpack.c.l.b16 %v423
        %v504 = vunpack.c.h.b16 %v423
        %v505 = vunpack.c.l.b16 %v424
        %v506 = vunpack.c.h.b16 %v424
        %v507 = vunpack.c.l.b16 %v425
        %v508 = vunpack.c.h.b16 %v425
        %v509 = vunpack.c.l.b16 %v426
        %v510 = vunpack.c.h.b16 %v426
        %v511 = vunpack.c.l.b16 %v427
        %v512 = vunpack.c.h.b16 %v427
        %v513 = vunpack.c.l.b16 %v428
        %v514 = vunpack.c.h.b16 %v428
        %v515 = vunpack.c.l.b16 %v429
        %v516 = vunpack.c.h.b16 %v429
        %v517 = vunpack.c.l.b16 %v430
        %v518 = vunpack.c.h.b16 %v430
        %v519 = vunpack.c.l.b16 %v431
        %v520 = vunpack.c.h.b16 %v431
        %v521 = vunpack.c.l.b16 %v432
        %v522 = vunpack.c.h.b16 %v432
        %v523 = vunpack.c.l.b16 %v433
        %v524 = vunpack.c.h.b16 %v433
        %v525 = vunpack.c.l.b16 %v434
        %v526 = vunpack.c.h.b16 %v434
        %v527 = vunpack.c.l.b16 %v435
        %v528 = vunpack.c.h.b16 %v435
        %v529 = vunpack.c.l.b16 %v436
        %v530 = vunpack.c.h.b16 %v436
        %v531 = vunpack.c.l.b16 %v437
        %v532 = vunpack.c.h.b16 %v437
        %v533 = vunpack.c.l.b16 %v438
        %v534 = vunpack.c.h.b16 %v438
        %v535 = vunpack.c.l.b16 %v439
        %v536 = vunpack.c.h.b16 %v439
        %v537 = vunpack.c.l.b16 %v440
        %v538 = vunpack.c.h.b16 %v440
        %v539 = vunpack.c.l.b16 %v441
        %v540 = vunpack.c.h.b16 %v441
        %v541 = vunpack.c.l.b16 %v442
        %v542 = vunpack.c.h.b16 %v442
        %v543 = vunpack.c.l.b16 %v443
        %v544 = vunpack.c.h.b16 %v443
        %v545 = vunpack.c.l.b16 %v444
        %v546 = vunpack.c.h.b16 %v444
        %v547 = vunpack.c.l.b16 %v445
        %v548 = vunpack.c.h.b16 %v445
        %v549 = vunpack.c.l.b16 %v446
        %v550 = vunpack.c.h.b16 %v446
        %v551 = vunpack.c.l.b16 %v447
        %v552 = vunpack.c.h.b16 %v447
        %v553 = vunpack.c.l.b16 %v448
        %v554 = vunpack.c.h.b16 %v448
        %v555 = vpack.c.b16 %v495, %v491
        %v556 = vpack.c.b16 %v496, %v492
        %v557 = vpack.c.b16 %v497, %v493
        %v558 = vpack.c.b16 %v498, %v494
        %v559 = vpack.c.b16 %v503, %v499
        %v560 = vpack.c.b16 %v504, %v500
        %v561 = vpack.c.b16 %v505, %v501
        %v562 = vpack.c.b16 %v506, %v502
        %v563 = vpack.c.b16 %v511, %v507
        %v564 = vpack.c.b16 %v512, %v508
        %v565 = vpack.c.b16 %v513, %v509
        %v566 = vpack.c.b16 %v514, %v510
        %v567 = vpack.c.b16 %v519, %v515
        %v568 = vpack.c.b16 %v520, %v516
        %v569 = vpack.c.b16 %v521, %v517
        %v570 = vpack.c.b16 %v522, %v518
        %v571 = vpack.c.b16 %v527, %v523
        %v572 = vpack.c.b16 %v528, %v524
        %v573 = vpack.c.b16 %v529, %v525
        %v574 = vpack.c.b16 %v530, %v526
        %v575 = vpack.c.b16 %v535, %v531
        %v576 = vpack.c.b16 %v536, %v532
        %v577 = vpack.c.b16 %v537, %v533
        %v578 = vpack.c.b16 %v538, %v534
        %v579 = vpack.c.b16 %v543, %v539
        %v580 = vpack.c.b16 %v544, %v540
        %v581 = vpack.c.b16 %v545, %v541
        %v582 = vpack.c.b16 %v546, %v542
        %v583 = vpack.c.b16 %v551, %v547
        %v584 = vpack.c.b16 %v552, %v548
        %v585 = vpack.c.b16 %v553, %v549
        %v586 = vpack.c.b16 %v554, %v550
        %619 = vmatpush.bf16.msra.mxu0 %v583
        %620 = vmatpush.bf16.msra.mxu0 %v579
        %621 = vmatpush.bf16.msra.mxu0 %v575
        %622 = vmatpush.bf16.msra.mxu0 %v571
        %623 = vmatpush.bf16.msra.mxu0 %v567
        %624 = vmatpush.bf16.msra.mxu0 %v563
        %625 = vmatpush.bf16.msra.mxu0 %v559
        %626 = vmatpush.bf16.msra.mxu0 %v555
        %627 = vmatmul.bf16.gmra.mxu0 %v416
        %v628 = vpop.f32.mrf.mxu0
        %v629 = vadd.f32 %v451, %v628
        %v630 = vpop.f32.mrf.mxu0
        %631 = vdwg.mxu0
        %632 = vmatpush.bf16.msra.mxu0 %v584
        %633 = vmatpush.bf16.msra.mxu0 %v580
        %634 = vmatpush.bf16.msra.mxu0 %v576
        %635 = vmatpush.bf16.msra.mxu0 %v572
        %636 = vmatpush.bf16.msra.mxu0 %v568
        %637 = vmatpush.bf16.msra.mxu0 %v564
        %638 = vmatpush.bf16.msra.mxu0 %v560
        %639 = vmatpush.bf16.msra.mxu0 %v556
        %640 = vmatmul.bf16.gmra.mxu0 %v416
        %v641 = vpop.f32.mrf.mxu0
        %v642 = vadd.f32 %v452, %v641
        %v643 = vpop.f32.mrf.mxu0
        %644 = vdwg.mxu0
        %645 = vmatpush.bf16.msra.mxu0 %v585
        %646 = vmatpush.bf16.msra.mxu0 %v581
        %647 = vmatpush.bf16.msra.mxu0 %v577
        %648 = vmatpush.bf16.msra.mxu0 %v573
        %649 = vmatpush.bf16.msra.mxu0 %v569
        %650 = vmatpush.bf16.msra.mxu0 %v565
        %651 = vmatpush.bf16.msra.mxu0 %v561
        %652 = vmatpush.bf16.msra.mxu0 %v557
        %653 = vmatmul.bf16.gmra.mxu0 %v416
        %v654 = vpop.f32.mrf.mxu0
        %v655 = vadd.f32 %v453, %v654
        %v656 = vpop.f32.mrf.mxu0
        %657 = vdwg.mxu0
        %658 = vmatpush.bf16.msra.mxu0 %v586
        %659 = vmatpush.bf16.msra.mxu0 %v582
        %660 = vmatpush.bf16.msra.mxu0 %v578
        %661 = vmatpush.bf16.msra.mxu0 %v574
        %662 = vmatpush.bf16.msra.mxu0 %v570
        %663 = vmatpush.bf16.msra.mxu0 %v566
        %664 = vmatpush.bf16.msra.mxu0 %v562
        %665 = vmatpush.bf16.msra.mxu0 %v558
        %666 = vmatmul.bf16.gmra.mxu0 %v416
        %v667 = vpop.f32.mrf.mxu0
        %v668 = vadd.f32 %v454, %v667
        %v669 = vpop.f32.mrf.mxu0
        %670 = vdwg.mxu0
        %v671 = vmul.f32 %v629, %v629
        %v672 = vmul.f32 %v642, %v642
        %v673 = vmul.f32 %v655, %v655
        %v674 = vmul.f32 %v668, %v668
        %v675 = vmul.f32 %v629, %v671
        %v676 = vmul.f32 %v642, %v672
        %v677 = vmul.f32 %v655, %v673
        %v678 = vmul.f32 %v668, %v674
        %v679 = vmul.f32 %v675, 0.044715
        %v680 = vmul.f32 %v676, 0.044715
        %v681 = vmul.f32 %v677, 0.044715
        %v682 = vmul.f32 %v678, 0.044715
        %v683 = vadd.f32 %v629, %v679
        %v684 = vadd.f32 %v642, %v680
        %v685 = vadd.f32 %v655, %v681
        %v686 = vadd.f32 %v668, %v682
        %v687 = vmul.f32 %v683, 0.7978846
        %v688 = vmul.f32 %v684, 0.7978846
        %v689 = vmul.f32 %v685, 0.7978846
        %v690 = vmul.f32 %v686, 0.7978846
        %v691 = vtanh.pop %v687
        %v692 = vtanh.pop %v688
        %v693 = vtanh.pop %v689
        %v694 = vtanh.pop %v690
        %v695 = vadd.f32 %v691, 1.0
        %v696 = vadd.f32 %v692, 1.0
        %v697 = vadd.f32 %v693, 1.0
        %v698 = vadd.f32 %v694, 1.0
        %v699 = vmul.f32 %v695, 0.5
        %v700 = vmul.f32 %v696, 0.5
        %v701 = vmul.f32 %v697, 0.5
        %v702 = vmul.f32 %v698, 0.5
        %v703 = vmul.f32 %v629, %v699
        %v704 = vmul.f32 %v642, %v700
        %v705 = vmul.f32 %v655, %v701
        %v706 = vmul.f32 %v668, %v702
        %v707 = vpack.c.bf16 %v703, %v703
        %v708 = vpack.c.bf16 %v704, %v704
        %v709 = vpack.c.bf16 %v705, %v705
        %v710 = vpack.c.bf16 %v706, %v706
        %v711 = vld [vmem:[#allocation5] sm:$0xf]
        %v712 = vld [vmem:[#allocation5 + $0x4] sm:$0xf]
        %v713 = vld [vmem:[#allocation5 + $0x8] sm:$0xf]
        %v714 = vld [vmem:[#allocation5 + $0xc] sm:$0xf]
        %v715 = vld [vmem:[#allocation5 + $0x10] sm:$0xf]
        %v716 = vld [vmem:[#allocation5 + $0x14] sm:$0xf]
        %v717 = vld [vmem:[#allocation5 + $0x18] sm:$0xf]
        %v718 = vld [vmem:[#allocation5 + $0x1c] sm:$0xf]
        %v719 = vld [vmem:[#allocation5 + $0x20] sm:$0xf]
        %v720 = vld [vmem:[#allocation5 + $0x24] sm:$0xf]
        %v721 = vld [vmem:[#allocation5 + $0x28] sm:$0xf]
        %v722 = vld [vmem:[#allocation5 + $0x2c] sm:$0xf]
        %v723 = vld [vmem:[#allocation5 + $0x30] sm:$0xf]
        %v724 = vld [vmem:[#allocation5 + $0x34] sm:$0xf]
        %v725 = vld [vmem:[#allocation5 + $0x38] sm:$0xf]
        %v726 = vld [vmem:[#allocation5 + $0x3c] sm:$0xf]
        %v727 = vld [vmem:[#allocation5 + $0x40] sm:$0xf]
        %v728 = vld [vmem:[#allocation5 + $0x44] sm:$0xf]
        %v729 = vld [vmem:[#allocation5 + $0x48] sm:$0xf]
        %v730 = vld [vmem:[#allocation5 + $0x4c] sm:$0xf]
        %v731 = vld [vmem:[#allocation5 + $0x50] sm:$0xf]
        %v732 = vld [vmem:[#allocation5 + $0x54] sm:$0xf]
        %v733 = vld [vmem:[#allocation5 + $0x58] sm:$0xf]
        %v734 = vld [vmem:[#allocation5 + $0x5c] sm:$0xf]
        %v735 = vld [vmem:[#allocation5 + $0x60] sm:$0xf]
        %v736 = vld [vmem:[#allocation5 + $0x64] sm:$0xf]
        %v737 = vld [vmem:[#allocation5 + $0x68] sm:$0xf]
        %v738 = vld [vmem:[#allocation5 + $0x6c] sm:$0xf]
        %v739 = vld [vmem:[#allocation5 + $0x70] sm:$0xf]
        %v740 = vld [vmem:[#allocation5 + $0x74] sm:$0xf]
        %v741 = vld [vmem:[#allocation5 + $0x78] sm:$0xf]
        %v742 = vld [vmem:[#allocation5 + $0x7c] sm:$0xf]
        %v743 = vld [vmem:[#allocation5 + $0x80] sm:$0xf]
        %v744 = vld [vmem:[#allocation5 + $0x84] sm:$0xf]
        %v745 = vld [vmem:[#allocation5 + $0x88] sm:$0xf]
        %v746 = vld [vmem:[#allocation5 + $0x8c] sm:$0xf]
        %v747 = vld [vmem:[#allocation5 + $0x90] sm:$0xf]
        %v748 = vld [vmem:[#allocation5 + $0x94] sm:$0xf]
        %v749 = vld [vmem:[#allocation5 + $0x98] sm:$0xf]
        %v750 = vld [vmem:[#allocation5 + $0x9c] sm:$0xf]
        %v751 = vld [vmem:[#allocation5 + $0xa0] sm:$0xf]
        %v752 = vld [vmem:[#allocation5 + $0xa4] sm:$0xf]
        %v753 = vld [vmem:[#allocation5 + $0xa8] sm:$0xf]
        %v754 = vld [vmem:[#allocation5 + $0xac] sm:$0xf]
        %v755 = vld [vmem:[#allocation5 + $0xb0] sm:$0xf]
        %v756 = vld [vmem:[#allocation5 + $0xb4] sm:$0xf]
        %v757 = vld [vmem:[#allocation5 + $0xb8] sm:$0xf]
        %v758 = vld [vmem:[#allocation5 + $0xbc] sm:$0xf]
        %v759 = vld [vmem:[#allocation5 + $0xc0] sm:$0xf]
        %v760 = vld [vmem:[#allocation5 + $0xc4] sm:$0xf]
        %v761 = vld [vmem:[#allocation5 + $0xc8] sm:$0xf]
        %v762 = vld [vmem:[#allocation5 + $0xcc] sm:$0xf]
        %v763 = vld [vmem:[#allocation5 + $0xd0] sm:$0xf]
        %v764 = vld [vmem:[#allocation5 + $0xd4] sm:$0xf]
        %v765 = vld [vmem:[#allocation5 + $0xd8] sm:$0xf]
        %v766 = vld [vmem:[#allocation5 + $0xdc] sm:$0xf]
        %v767 = vld [vmem:[#allocation5 + $0xe0] sm:$0xf]
        %v768 = vld [vmem:[#allocation5 + $0xe4] sm:$0xf]
        %v769 = vld [vmem:[#allocation5 + $0xe8] sm:$0xf]
        %v770 = vld [vmem:[#allocation5 + $0xec] sm:$0xf]
        %v771 = vld [vmem:[#allocation5 + $0xf0] sm:$0xf]
        %v772 = vld [vmem:[#allocation5 + $0xf4] sm:$0xf]
        %v773 = vld [vmem:[#allocation5 + $0xf8] sm:$0xf]
        %v774 = vld [vmem:[#allocation5 + $0xfc] sm:$0xf]
        %v775 = vld [vmem:[%s4] sm:$0x1]
        %v777 = vperm.slane %v775, 0
        %v843 = vunpack.c.l.b16 %v711
        %v844 = vunpack.c.l.b16 %v712
        %v845 = vunpack.c.l.b16 %v713
        %v846 = vunpack.c.l.b16 %v714
        %v847 = vunpack.c.l.b16 %v715
        %v848 = vunpack.c.l.b16 %v716
        %v849 = vunpack.c.l.b16 %v717
        %v850 = vunpack.c.l.b16 %v718
        %v851 = vunpack.c.l.b16 %v719
        %v852 = vunpack.c.l.b16 %v720
        %v853 = vunpack.c.l.b16 %v721
        %v854 = vunpack.c.l.b16 %v722
        %v855 = vunpack.c.l.b16 %v723
        %v856 = vunpack.c.l.b16 %v724
        %v857 = vunpack.c.l.b16 %v725
        %v858 = vunpack.c.l.b16 %v726
        %v859 = vunpack.c.l.b16 %v727
        %v860 = vunpack.c.l.b16 %v728
        %v861 = vunpack.c.l.b16 %v729
        %v862 = vunpack.c.l.b16 %v730
        %v863 = vunpack.c.l.b16 %v731
        %v864 = vunpack.c.l.b16 %v732
        %v865 = vunpack.c.l.b16 %v733
        %v866 = vunpack.c.l.b16 %v734
        %v867 = vunpack.c.l.b16 %v735
        %v868 = vunpack.c.l.b16 %v736
        %v869 = vunpack.c.l.b16 %v737
        %v870 = vunpack.c.l.b16 %v738
        %v871 = vunpack.c.l.b16 %v739
        %v872 = vunpack.c.l.b16 %v740
        %v873 = vunpack.c.l.b16 %v741
        %v874 = vunpack.c.l.b16 %v742
        %v875 = vunpack.c.l.b16 %v743
        %v876 = vunpack.c.l.b16 %v744
        %v877 = vunpack.c.l.b16 %v745
        %v878 = vunpack.c.l.b16 %v746
        %v879 = vunpack.c.l.b16 %v747
        %v880 = vunpack.c.l.b16 %v748
        %v881 = vunpack.c.l.b16 %v749
        %v882 = vunpack.c.l.b16 %v750
        %v883 = vunpack.c.l.b16 %v751
        %v884 = vunpack.c.l.b16 %v752
        %v885 = vunpack.c.l.b16 %v753
        %v886 = vunpack.c.l.b16 %v754
        %v887 = vunpack.c.l.b16 %v755
        %v888 = vunpack.c.l.b16 %v756
        %v889 = vunpack.c.l.b16 %v757
        %v890 = vunpack.c.l.b16 %v758
        %v891 = vunpack.c.l.b16 %v759
        %v892 = vunpack.c.l.b16 %v760
        %v893 = vunpack.c.l.b16 %v761
        %v894 = vunpack.c.l.b16 %v762
        %v895 = vunpack.c.l.b16 %v763
        %v896 = vunpack.c.l.b16 %v764
        %v897 = vunpack.c.l.b16 %v765
        %v898 = vunpack.c.l.b16 %v766
        %v899 = vunpack.c.l.b16 %v767
        %v900 = vunpack.c.l.b16 %v768
        %v901 = vunpack.c.l.b16 %v769
        %v902 = vunpack.c.l.b16 %v770
        %v903 = vunpack.c.l.b16 %v771
        %v904 = vunpack.c.l.b16 %v772
        %v905 = vunpack.c.l.b16 %v773
        %v906 = vunpack.c.l.b16 %v774
        %v907 = vpack.c.b16 %v844, %v843
        %v908 = vpack.c.b16 %v846, %v845
        %v909 = vpack.c.b16 %v848, %v847
        %v910 = vpack.c.b16 %v850, %v849
        %v911 = vpack.c.b16 %v852, %v851
        %v912 = vpack.c.b16 %v854, %v853
        %v913 = vpack.c.b16 %v856, %v855
        %v914 = vpack.c.b16 %v858, %v857
        %v915 = vpack.c.b16 %v860, %v859
        %v916 = vpack.c.b16 %v862, %v861
        %v917 = vpack.c.b16 %v864, %v863
        %v918 = vpack.c.b16 %v866, %v865
        %v919 = vpack.c.b16 %v868, %v867
        %v920 = vpack.c.b16 %v870, %v869
        %v921 = vpack.c.b16 %v872, %v871
        %v922 = vpack.c.b16 %v874, %v873
        %v923 = vpack.c.b16 %v876, %v875
        %v924 = vpack.c.b16 %v878, %v877
        %v925 = vpack.c.b16 %v880, %v879
        %v926 = vpack.c.b16 %v882, %v881
        %v927 = vpack.c.b16 %v884, %v883
        %v928 = vpack.c.b16 %v886, %v885
        %v929 = vpack.c.b16 %v888, %v887
        %v930 = vpack.c.b16 %v890, %v889
        %v931 = vpack.c.b16 %v892, %v891
        %v932 = vpack.c.b16 %v894, %v893
        %v933 = vpack.c.b16 %v896, %v895
        %v934 = vpack.c.b16 %v898, %v897
        %v935 = vpack.c.b16 %v900, %v899
        %v936 = vpack.c.b16 %v902, %v901
        %v937 = vpack.c.b16 %v904, %v903
        %v938 = vpack.c.b16 %v906, %v905
        %971 = vmatpush.bf16.msra.mxu0 %v914
        %972 = vmatpush.bf16.msra.mxu0 %v913
        %973 = vmatpush.bf16.msra.mxu0 %v912
        %974 = vmatpush.bf16.msra.mxu0 %v911
        %975 = vmatpush.bf16.msra.mxu0 %v910
        %976 = vmatpush.bf16.msra.mxu0 %v909
        %977 = vmatpush.bf16.msra.mxu0 %v908
        %978 = vmatpush.bf16.msra.mxu0 %v907
        %979 = vmatmul.bf16.gmra.mxu0 %v707
        %v980 = vpop.f32.mrf.mxu0
        %v981 = vadd.f32 %v777, %v980
        %v982 = vpop.f32.mrf.mxu0
        %983 = vdwg.mxu0
        %984 = vmatpush.bf16.msra.mxu0 %v922
        %985 = vmatpush.bf16.msra.mxu0 %v921
        %986 = vmatpush.bf16.msra.mxu0 %v920
        %987 = vmatpush.bf16.msra.mxu0 %v919
        %988 = vmatpush.bf16.msra.mxu0 %v918
        %989 = vmatpush.bf16.msra.mxu0 %v917
        %990 = vmatpush.bf16.msra.mxu0 %v916
        %991 = vmatpush.bf16.msra.mxu0 %v915
        %992 = vmatmul.bf16.gmra.mxu0 %v708
        %v993 = vpop.f32.mrf.mxu0
        %v994 = vadd.f32 %v981, %v993
        %v995 = vpop.f32.mrf.mxu0
        %996 = vdwg.mxu0
        %997 = vmatpush.bf16.msra.mxu0 %v930
        %998 = vmatpush.bf16.msra.mxu0 %v929
        %999 = vmatpush.bf16.msra.mxu0 %v928
        %1000 = vmatpush.bf16.msra.mxu0 %v927
        %1001 = vmatpush.bf16.msra.mxu0 %v926
        %1002 = vmatpush.bf16.msra.mxu0 %v925
        %1003 = vmatpush.bf16.msra.mxu0 %v924
        %1004 = vmatpush.bf16.msra.mxu0 %v923
        %1005 = vmatmul.bf16.gmra.mxu0 %v709
        %v1006 = vpop.f32.mrf.mxu0
        %v1007 = vadd.f32 %v994, %v1006
        %v1008 = vpop.f32.mrf.mxu0
        %1009 = vdwg.mxu0
        %1010 = vmatpush.bf16.msra.mxu0 %v938
        %1011 = vmatpush.bf16.msra.mxu0 %v937
        %1012 = vmatpush.bf16.msra.mxu0 %v936
        %1013 = vmatpush.bf16.msra.mxu0 %v935
        %1014 = vmatpush.bf16.msra.mxu0 %v934
        %1015 = vmatpush.bf16.msra.mxu0 %v933
        %1016 = vmatpush.bf16.msra.mxu0 %v932
        %1017 = vmatpush.bf16.msra.mxu0 %v931
        %1018 = vmatmul.bf16.gmra.mxu0 %v710
        %v1019 = vpop.f32.mrf.mxu0
        %v1020 = vadd.f32 %v1007, %v1019
        %v1021 = vpop.f32.mrf.mxu0
        %1022 = vdwg.mxu0
        %v1023 = vunpack.c.l.bf16 %v416
        %v1024 = vadd.f32 %v1020, %v1023
        %1025 = vadd.xlane.f32.xlu0 %v1024
        %v1026 = vpop.xlane.xlu0 %1025
        %v1027 = vrcp.pop 128.0
        %v1028 = vmul.f32 128.0, %v1027
        %v1029 = vsub.f32 1.0, %v1028
        %v1030 = vmul.f32 %v1027, %v1029
        %v1031 = vadd.f32 %v1027, %v1030
        %vm1032 = vweird.f32 %v1027
        %v1033 = vsel %vm1032, %v1027, %v1031
        %v1034 = vmul.f32 %v1026, %v1033
        %v1035 = vsub.f32 %v1024, %v1034
        %v1036 = vmul.f32 %v1035, %v1035
        %1037 = vadd.xlane.f32.xlu0 %v1036
        %v1038 = vpop.xlane.xlu0 %1037
        %v1039 = vmul.f32 %v1038, %v1033
        %v1040 = vadd.f32 %v1039, 1e-12
        %v1041 = vrsqrt.pop %v1040
        %v1042 = vmul.f32 %v1041, %v1040
        %v1043 = vmul.f32 %v1042, %v1041
        %v1044 = vmul.f32 0.5, %v1043
        %v1045 = vsub.f32 1.5, %v1044
        %v1046 = vmul.f32 %v1041, %v1045
        %vm1047 = vweird.f32 %v1040
        %vm1048 = vweird.f32 %v1041
        %vm1049 = vmor %vm1047, %vm1048
        %v1050 = vsel %vm1049, %v1041, %v1046
        %v1051 = vmul.f32 %v1035, %v1050
        %v1052 = vld [vmem:[%s5] sm:$0x1]
        %v1054 = vperm.slane %v1052, 0
        %v1056 = vmul.f32 %v1051, %v1054
        %v1057 = vld [vmem:[%s6] sm:$0x1]
        %v1059 = vperm.slane %v1057, 0
        %v1061 = vadd.f32 %v1056, %v1059
        %v1062 = vpack.c.bf16 %v1061, %v1061
        %1063 = vst [vmem:[%s401] sm:$0xf] %v1062
        %v1064 = vld [vmem:[#allocation7] sm:$0xf]
        %v1065 = vld [vmem:[#allocation7 + $0x4] sm:$0xf]
        %v1066 = vld [vmem:[#allocation7 + $0x8] sm:$0xf]
        %v1067 = vld [vmem:[#allocation7 + $0xc] sm:$0xf]
        %v1068 = vld [vmem:[#allocation7 + $0x10] sm:$0xf]
        %v1069 = vld [vmem:[#allocation7 + $0x14] sm:$0xf]
        %v1070 = vld [vmem:[#allocation7 + $0x18] sm:$0xf]
        %v1071 = vld [vmem:[#allocation7 + $0x1c] sm:$0xf]
        %v1072 = vld [vmem:[#allocation7 + $0x20] sm:$0xf]
        %v1073 = vld [vmem:[#allocation7 + $0x24] sm:$0xf]
        %v1074 = vld [vmem:[#allocation7 + $0x28] sm:$0xf]
        %v1075 = vld [vmem:[#allocation7 + $0x2c] sm:$0xf]
        %v1076 = vld [vmem:[#allocation7 + $0x30] sm:$0xf]
        %v1077 = vld [vmem:[#allocation7 + $0x34] sm:$0xf]
        %v1078 = vld [vmem:[#allocation7 + $0x38] sm:$0xf]
        %v1079 = vld [vmem:[#allocation7 + $0x3c] sm:$0xf]
        %v1080 = vld [vmem:[%s8] sm:$0x1]
        %v1082 = vperm.slane %v1080, 0
        %v1100 = vunpack.c.l.b16 %v1064
        %v1101 = vunpack.c.l.b16 %v1065
        %v1102 = vunpack.c.l.b16 %v1066
        %v1103 = vunpack.c.l.b16 %v1067
        %v1104 = vunpack.c.l.b16 %v1068
        %v1105 = vunpack.c.l.b16 %v1069
        %v1106 = vunpack.c.l.b16 %v1070
        %v1107 = vunpack.c.l.b16 %v1071
        %v1108 = vunpack.c.l.b16 %v1072
        %v1109 = vunpack.c.l.b16 %v1073
        %v1110 = vunpack.c.l.b16 %v1074
        %v1111 = vunpack.c.l.b16 %v1075
        %v1112 = vunpack.c.l.b16 %v1076
        %v1113 = vunpack.c.l.b16 %v1077
        %v1114 = vunpack.c.l.b16 %v1078
        %v1115 = vunpack.c.l.b16 %v1079
        %v1116 = vpack.c.b16 %v1101, %v1100
        %v1117 = vpack.c.b16 %v1103, %v1102
        %v1118 = vpack.c.b16 %v1105, %v1104
        %v1119 = vpack.c.b16 %v1107, %v1106
        %v1120 = vpack.c.b16 %v1109, %v1108
        %v1121 = vpack.c.b16 %v1111, %v1110
        %v1122 = vpack.c.b16 %v1113, %v1112
        %v1123 = vpack.c.b16 %v1115, %v1114
        %1132 = vmatpush.bf16.msra.mxu0 %v1123
        %1133 = vmatpush.bf16.msra.mxu0 %v1122
        %1134 = vmatpush.bf16.msra.mxu0 %v1121
        %1135 = vmatpush.bf16.msra.mxu0 %v1120
        %1136 = vmatpush.bf16.msra.mxu0 %v1119
        %1137 = vmatpush.bf16.msra.mxu0 %v1118
        %1138 = vmatpush.bf16.msra.mxu0 %v1117
        %1139 = vmatpush.bf16.msra.mxu0 %v1116
        %1140 = vmatmul.bf16.gmra.mxu0 %v1062
        %v1141 = vpop.f32.mrf.mxu0
        %v1142 = vadd.f32 %v1082, %v1141
        %v1143 = vpop.f32.mrf.mxu0
        %1144 = vdwg.mxu0
        %1145 = vst [vmem:[%s415] sm:$0xff] %v1142
        %s1146 = sand.u32 %s229, 1
        %s1147 = scalar_lea.sflag [#allocation4], %s1146
        %s1148 = sand.u32 %s229, 1
        %s1149 = smul.addr %s1148, 4
        %s1150 = scalar_lea.vmem [#allocation8], %s1149
        %p1151 = scmp.lt.s32.totalorder %s27, 1
        %s1152 = scalar_select %p1151, %s27, 1
        %s1153 = smul.addr %s1152, 8
        %s1154 = scalar_lea.vmem %s10, %s1153
        // Predicated region
        $region69: #{bert_base_cased_forward.13} parent=55 // pred_check
          %p1155 = pneg %p239
        $region70: #{bert_base_cased_forward.13} parent=55 // pred_check_branch
          %1157 = sbr.rel (%p1155) target = $region72
        $region71: #{bert_base_cased_forward.13} parent=55 // pred_region
          %1159 = vsyncadd %s1147, 0
          %s1160 = smul.addr %s27, 4
          %s1161 = scalar_lea.hbm %s9, %s1160
          %s1163 = sshll.u32 %s1150, 4
          %s1164 = int_to_ptr.vmem [resolvable:$true] %s1163
          %s1165 = sshll.u32 %s1161, 4
          %s1166 = int_to_ptr.hbm [resolvable:$true] %s1165
          %1168 = dma.vmem_to_hbm [thread:$0]  %s1164, 64, %s1166, %s1147
        $region72: #{bert_base_cased_forward.13} parent=55 // pred_fallthru
          _
        // Predicated region
        $region73: #{bert_base_cased_forward.13} parent=55 // pred_check
          %p1169 = pneg %p265
        $region74: #{bert_base_cased_forward.13} parent=55 // pred_check_branch
          %1171 = sbr.rel (%p1169) target = $region76
        $region75: #{bert_base_cased_forward.13} parent=55 // pred_region
          _
        $region76: #{bert_base_cased_forward.13} parent=55 // pred_fallthru
          _
      $region56: #{bert_base_cased_forward.13} parent=5 // pred_fallthru
        _
      %p1172 = scmp.le.s32.totalorder 2, %s22
      // Predicated region
      $region77: #{bert_base_cased_forward.13} parent=5 // pred_check
        %p1173 = pneg %p1172
      $region78: #{bert_base_cased_forward.13} parent=5 // pred_check_branch
        %1175 = sbr.rel (%p1173) target = $region80
      $region79: #{bert_base_cased_forward.13} parent=5 // pred_region
        %s1176 = ssub.s32 %s22, 2
        // Predicated region
        $region81: #{bert_base_cased_forward.13} parent=79 // pred_check
          %p1177 = pneg %p245
        $region82: #{bert_base_cased_forward.13} parent=79 // pred_check_branch
          %1179 = sbr.rel (%p1177) target = $region84
        $region83: #{bert_base_cased_forward.13} parent=79 // pred_region
          %s1180 = sand.u32 %s230, 1
          %s1181 = scalar_lea.sflag [#allocation4], %s1180
          %s1182 = sand.u32 %s230, 1
          %s1183 = smul.addr %s1182, 4
          %s1184 = scalar_lea.vmem [#allocation8], %s1183
          %1186 = dma.done %s1181, 64
        $region84: #{bert_base_cased_forward.13} parent=79 // pred_fallthru
          _
        // Predicated region
        $region85: #{bert_base_cased_forward.13} parent=79 // pred_check
          %p1187 = pneg %p271
        $region86: #{bert_base_cased_forward.13} parent=79 // pred_check_branch
          %1189 = sbr.rel (%p1187) target = $region88
        $region87: #{bert_base_cased_forward.13} parent=79 // pred_region
          %p1190 = scmp.lt.s32.totalorder %s28, 1
          %s1191 = scalar_select %p1190, %s28, 1
          %s1192 = smul.addr %s1191, 8
          %s1193 = scalar_lea.vmem %s10, %s1192
        $region88: #{bert_base_cased_forward.13} parent=79 // pred_fallthru
          _
      $region80: #{bert_base_cased_forward.13} parent=5 // pred_fallthru
        _
    $region6: #{bert_base_cased_forward.13} parent=1 // loop_footer
      %s26 = sadd.s32 1, %s22
    $region7: #{bert_base_cased_forward.13} parent=1 // loop_footer_branch
      %21 = sbr.rel target = $region3
    $region8: #{bert_base_cased_forward.13} parent=1 // loop_exit
      _
    %1194 = vsyncpa [#allocation3], 1
    %s1195 = scalar_lea.sflag [#allocation3], 1
    %1196 = vsyncpa %s1195, 1
    %1197 = vsyncpa [#allocation6], 1
    %1198 = vsyncpa [#allocation4], 1
    %s1199 = scalar_lea.sflag [#allocation4], 1
    %1200 = vsyncpa %s1199, 1

</llo_original>
